<compile_context>
chip_gen: v6e
topology: v6e:2x2x1
jax: 0.10.0
libtpu: 0.0.40
codegen_flags: <defaults>
</compile_context>

<pallas_src>
import math
import numpy as np
import jax
import jax.numpy as jnp
from jax import lax
from jax.experimental import pallas as pl
from jax.experimental.pallas import tpu as pltpu

NUM_JOINTS = 33
JP = 40                                  # joints padded to a multiple of 8
FEAT_DIM = 6
NUM_COMPS = 4
NUM_PAIRS = FEAT_DIM * (FEAT_DIM + 1) // 2   # 21 unordered (c, e) pairs
LANE_CHUNK = 128
LOG_2PI = FEAT_DIM * math.log(2.0 * math.pi)


def gmm_prior_kernel(x_ref, cquad_ref, clin_ref, cconst_ref, out_ref):
    """One B-block; streams 128-lane chunks to bound the live vreg set.

    x_ref:      (D, JP, blk)       pose features, batch in lanes
    cquad_ref:  (K*21, JP, 128)    coefficients of x_c*x_e (c<=e), lane-broadcast
    clin_ref:   (K*6, JP, 128)     coefficients of x_e
    cconst_ref: (K, JP, 128)       0.5*mu^T P mu - (logw - 0.5*(log2pi - logdet))
    out_ref:    (JP, blk)          -max_k log_prob
    """
    n_chunks = x_ref.shape[-1] // LANE_CHUNK

    def chunk_body(i, carry):
        off = pl.multiple_of(i * LANE_CHUNK, LANE_CHUNK)
        xs = [x_ref[c, :, pl.ds(off, LANE_CHUNK)] for c in range(FEAT_DIM)]

        # per-component score accumulators, initialized with the affine constant
        accs = [cconst_ref[k] for k in range(NUM_COMPS)]

        # shared pairwise products x_c*x_e — computed once, used by all 4 comps
        p = 0
        for c in range(FEAT_DIM):
            for e in range(c, FEAT_DIM):
                prod = xs[c] * xs[e]
                for k in range(NUM_COMPS):
                    accs[k] = accs[k] + cquad_ref[k * NUM_PAIRS + p] * prod
                p += 1

        # linear terms
        for c in range(FEAT_DIM):
            for k in range(NUM_COMPS):
                accs[k] = accs[k] + clin_ref[k * FEAT_DIM + c] * xs[c]

        # out = min_k score_k  (== -max_k log_prob)
        res = accs[0]
        for k in range(1, NUM_COMPS):
            res = jnp.minimum(res, accs[k])
        out_ref[:, pl.ds(off, LANE_CHUNK)] = res
        return carry

    lax.fori_loop(0, n_chunks, chunk_body, 0)


def _choose_block(batch):
    """Lane-dense B block (multiple of 128, <=1024), sized for >=2 grid steps
    when possible so the 'parallel' B axis shards across v7x's two cores."""
    half = -(-batch // 2)
    blk = min(1024, max(LANE_CHUNK,
                        ((half + LANE_CHUNK - 1) // LANE_CHUNK) * LANE_CHUNK))
    b_pad = ((batch + blk - 1) // blk) * blk
    return blk, b_pad


def _expand_coeffs(a):
    """(R, 33) -> (R, 40, 128): zero-pad joints, broadcast across lanes so the
    kernel's per-row reads are plain (40, 128) vreg loads."""
    a = jnp.pad(a, ((0, 0), (0, JP - NUM_JOINTS)))
    return jnp.broadcast_to(a[:, :, None], (a.shape[0], JP, LANE_CHUNK))


def body_pose_per_joint_gmm_prior(pose_params, model_mu, model_precision,
                                  model_logdet, model_logweights):
    """Layout / coefficient prep in plain JAX, hot path in Pallas."""
    x = pose_params.reshape(-1, NUM_JOINTS, FEAT_DIM).astype(jnp.float32)
    B = x.shape[0]
    blk, b_pad = _choose_block(B)

    # pose: (B, J, D) -> (D, JP, B_pad), batch in lanes.
    # TODO(synk): producing pose in (D, J, B) layout upstream would remove this
    # extra HBM pass over the input.
    x_t = jnp.transpose(x, (2, 1, 0))
    x_t = jnp.pad(x_t, ((0, 0), (0, JP - NUM_JOINTS), (0, b_pad - B)))

    # --- expand 0.5*(x-mu)^T P (x-mu) - const into an affine form in
    #     (x_c*x_e, x_c); all scaling folded into tiny coefficient tensors ---
    mu = model_mu[0].astype(jnp.float32)                  # (J, K, D)
    P = model_precision[0].astype(jnp.float32)            # (J, K, D, D)
    Ps = 0.5 * (P + jnp.swapaxes(P, -1, -2))              # symmetric part

    logdet_kj = model_logdet[:, :, 0].astype(jnp.float32)                      # (K, J)
    logw_kj = jnp.transpose(model_logweights[0, :, :, 0]).astype(jnp.float32)  # (K, J)
    const_kj = logw_kj - 0.5 * (LOG_2PI - logdet_kj)                           # (K, J)

    # quadratic coefficients: 0.5*x^T P x = sum_{c<=e} Q[c,e] * x_c * x_e
    quad_rows = []
    for c in range(FEAT_DIM):
        for e in range(c, FEAT_DIM):
            coef = 0.5 * Ps[:, :, c, c] if c == e else Ps[:, :, c, e]   # (J, K)
            quad_rows.append(coef)
    quad_pjk = jnp.stack(quad_rows, axis=0)                             # (21, J, K)
    cquad = jnp.transpose(quad_pjk, (2, 0, 1)).reshape(
        NUM_COMPS * NUM_PAIRS, NUM_JOINTS)                              # row = k*21+p

    # linear coefficients: -(mu^T Ps)[e]
    w = -jnp.einsum('jkc,jkce->jke', mu, Ps)                            # (J, K, D)
    clin = jnp.transpose(w, (1, 2, 0)).reshape(
        NUM_COMPS * FEAT_DIM, NUM_JOINTS)                               # row = k*6+e

    # constant: 0.5*mu^T P mu - (logw - 0.5*(log2pi - logdet))
    cq_jk = 0.5 * jnp.einsum('jkc,jkce,jke->jk', mu, Ps, mu)            # (J, K)
    cconst = jnp.transpose(cq_jk) - const_kj                            # (K, J)

    cquad_b = _expand_coeffs(cquad)       # (84, 40, 128)
    clin_b = _expand_coeffs(clin)         # (24, 40, 128)
    cconst_b = _expand_coeffs(cconst)     # (4, 40, 128)

    grid = (b_pad // blk,)
    out_padded = pl.pallas_call(
        gmm_prior_kernel,
        out_shape=jax.ShapeDtypeStruct((JP, b_pad), jnp.float32),
        grid_spec=pltpu.PrefetchScalarGridSpec(
            num_scalar_prefetch=0,
            grid=grid,
            in_specs=[
                # pose block: streamed over B (double-buffered by Pallas)
                pl.BlockSpec((FEAT_DIM, JP, blk), lambda i: (0, 0, i)),
                # small coefficient tensors: constant index map -> VMEM-resident
                pl.BlockSpec((NUM_COMPS * NUM_PAIRS, JP, LANE_CHUNK),
                             lambda i: (0, 0, 0)),
                pl.BlockSpec((NUM_COMPS * FEAT_DIM, JP, LANE_CHUNK),
                             lambda i: (0, 0, 0)),
                pl.BlockSpec((NUM_COMPS, JP, LANE_CHUNK), lambda i: (0, 0, 0)),
            ],
            out_specs=pl.BlockSpec((JP, blk), lambda i: (0, i)),
        ),
        compiler_params=pltpu.CompilerParams(
            dimension_semantics=("parallel",),
            vmem_limit_bytes=32 * 1024 * 1024),
    )(x_t, cquad_b, clin_b, cconst_b)

    # back to the module's (B, 33) layout
    return jnp.transpose(out_padded[:NUM_JOINTS, :B], (1, 0))


def reference(pose_params, mu, precision, logdet, logweights):
    """Pure-JAX transcription of the PyTorch forward (for verification)."""
    x = pose_params.reshape(-1, NUM_JOINTS, FEAT_DIM)
    sub = x[:, :, None, :] - mu                                   # (B, 33, K, 6)
    t = jnp.einsum('afbc,dfbce->afbde', sub, precision)
    q = (jnp.squeeze(t, 3) * sub).sum(axis=3, keepdims=True)      # (B, 33, K, 1)
    lp = q + LOG_2PI
    lp = lp - jnp.transpose(logdet, (1, 0, 2))
    lp = lp * -0.5
    lp = lp + logweights
    lp = jnp.squeeze(lp, 3)
    return -jnp.max(lp, axis=2)


if __name__ == "__main__":
    # TODO(synk): real module loads per_joint_gmm_prior.pkl; parameters are
    # synthesized deterministically here with the same shapes instead.
    key = jax.random.PRNGKey(0)
    k1, k2, k3, k4, k5 = jax.random.split(key, 5)
    B = 2

    pose_params = 0.3 * jax.random.normal(
        k1, (B, NUM_JOINTS * FEAT_DIM), jnp.float32)
    model_mu = 0.2 * jax.random.normal(
        k2, (1, NUM_JOINTS, NUM_COMPS, FEAT_DIM), jnp.float32)
    A = 0.3 * jax.random.normal(
        k3, (1, NUM_JOINTS, NUM_COMPS, FEAT_DIM, FEAT_DIM), jnp.float32)
    model_precision = jnp.einsum('...ij,...kj->...ik', A, A) + jnp.eye(FEAT_DIM)
    model_logdet = jax.random.normal(k4, (NUM_COMPS, NUM_JOINTS, 1), jnp.float32)
    logits = jax.random.normal(k5, (1, NUM_JOINTS, NUM_COMPS, 1), jnp.float32)
    model_logweights = jax.nn.log_softmax(logits, axis=2)

    out = body_pose_per_joint_gmm_prior(
        pose_params, model_mu, model_precision, model_logdet, model_logweights)
    out = jax.block_until_ready(out)

    ref = reference(pose_params, model_mu, model_precision,
                    model_logdet, model_logweights)
    assert out.shape == (B, NUM_JOINTS)
    np.testing.assert_allclose(np.asarray(out), np.asarray(ref),
                               rtol=1e-4, atol=1e-4)
    print("KERNEL_OK")
</pallas_src>

<mosaic_0001>
module attributes {stable_mosaic.version = 11 : i64} {
  func.func @gmm_prior_kernel(%arg0: i32, %arg1: memref<6x40x128xf32, #tpu.memory_space<vmem>>, %arg2: memref<84x40x128xf32, #tpu.memory_space<vmem>>, %arg3: memref<24x40x128xf32, #tpu.memory_space<vmem>>, %arg4: memref<4x40x128xf32, #tpu.memory_space<vmem>>, %arg5: memref<40x128xf32, #tpu.memory_space<vmem>>) attributes {dimension_semantics = [#tpu.dimension_semantics<parallel>], iteration_bounds = array<i64: 1>, scalar_prefetch = 0 : i64, scratch_operands = 0 : i64, tpu.core_type = #tpu.core_type<tc>, window_params = [{transform_indices = @transform_0, window_bounds = array<i64: 6, 40, 128>}, {pipeline_mode = #tpu.pipeline_mode<synchronous>, transform_indices = @transform_1, window_bounds = array<i64: 84, 40, 128>}, {pipeline_mode = #tpu.pipeline_mode<synchronous>, transform_indices = @transform_2, window_bounds = array<i64: 24, 40, 128>}, {pipeline_mode = #tpu.pipeline_mode<synchronous>, transform_indices = @transform_3, window_bounds = array<i64: 4, 40, 128>}, {transform_indices = @transform_4, window_bounds = array<i64: 40, 128>}]} {
    %c0_i32 = arith.constant 0 : i32
    %c128_i32 = arith.constant 128 : i32
    %0 = arith.muli %c0_i32, %c128_i32 : i32
    %1 = tpu.assume_multiple %0, 128 : i32
    %c0 = arith.constant 0 : index
    %c0_0 = arith.constant 0 : index
    %2 = arith.index_cast %1 : i32 to index
    %3 = vector.load %arg1[%c0, %c0_0, %2] : memref<6x40x128xf32, #tpu.memory_space<vmem>>, vector<1x40x128xf32>
    %4 = vector.shape_cast %3 : vector<1x40x128xf32> to vector<40x128xf32>
    %c1 = arith.constant 1 : index
    %c0_1 = arith.constant 0 : index
    %5 = arith.index_cast %1 : i32 to index
    %6 = vector.load %arg1[%c1, %c0_1, %5] : memref<6x40x128xf32, #tpu.memory_space<vmem>>, vector<1x40x128xf32>
    %7 = vector.shape_cast %6 : vector<1x40x128xf32> to vector<40x128xf32>
    %c2 = arith.constant 2 : index
    %c0_2 = arith.constant 0 : index
    %8 = arith.index_cast %1 : i32 to index
    %9 = vector.load %arg1[%c2, %c0_2, %8] : memref<6x40x128xf32, #tpu.memory_space<vmem>>, vector<1x40x128xf32>
    %10 = vector.shape_cast %9 : vector<1x40x128xf32> to vector<40x128xf32>
    %c3 = arith.constant 3 : index
    %c0_3 = arith.constant 0 : index
    %11 = arith.index_cast %1 : i32 to index
    %12 = vector.load %arg1[%c3, %c0_3, %11] : memref<6x40x128xf32, #tpu.memory_space<vmem>>, vector<1x40x128xf32>
    %13 = vector.shape_cast %12 : vector<1x40x128xf32> to vector<40x128xf32>
    %c4 = arith.constant 4 : index
    %c0_4 = arith.constant 0 : index
    %14 = arith.index_cast %1 : i32 to index
    %15 = vector.load %arg1[%c4, %c0_4, %14] : memref<6x40x128xf32, #tpu.memory_space<vmem>>, vector<1x40x128xf32>
    %16 = vector.shape_cast %15 : vector<1x40x128xf32> to vector<40x128xf32>
    %c5 = arith.constant 5 : index
    %c0_5 = arith.constant 0 : index
    %17 = arith.index_cast %1 : i32 to index
    %18 = vector.load %arg1[%c5, %c0_5, %17] : memref<6x40x128xf32, #tpu.memory_space<vmem>>, vector<1x40x128xf32>
    %19 = vector.shape_cast %18 : vector<1x40x128xf32> to vector<40x128xf32>
    %c0_6 = arith.constant 0 : index
    %c0_7 = arith.constant 0 : index
    %c0_8 = arith.constant 0 : index
    %20 = vector.load %arg4[%c0_6, %c0_7, %c0_8] : memref<4x40x128xf32, #tpu.memory_space<vmem>>, vector<1x40x128xf32>
    %21 = vector.shape_cast %20 : vector<1x40x128xf32> to vector<40x128xf32>
    %c1_9 = arith.constant 1 : index
    %c0_10 = arith.constant 0 : index
    %c0_11 = arith.constant 0 : index
    %22 = vector.load %arg4[%c1_9, %c0_10, %c0_11] : memref<4x40x128xf32, #tpu.memory_space<vmem>>, vector<1x40x128xf32>
    %23 = vector.shape_cast %22 : vector<1x40x128xf32> to vector<40x128xf32>
    %c2_12 = arith.constant 2 : index
    %c0_13 = arith.constant 0 : index
    %c0_14 = arith.constant 0 : index
    %24 = vector.load %arg4[%c2_12, %c0_13, %c0_14] : memref<4x40x128xf32, #tpu.memory_space<vmem>>, vector<1x40x128xf32>
    %25 = vector.shape_cast %24 : vector<1x40x128xf32> to vector<40x128xf32>
    %c3_15 = arith.constant 3 : index
    %c0_16 = arith.constant 0 : index
    %c0_17 = arith.constant 0 : index
    %26 = vector.load %arg4[%c3_15, %c0_16, %c0_17] : memref<4x40x128xf32, #tpu.memory_space<vmem>>, vector<1x40x128xf32>
    %27 = vector.shape_cast %26 : vector<1x40x128xf32> to vector<40x128xf32>
    %28 = arith.mulf %4, %4 : vector<40x128xf32>
    %c0_18 = arith.constant 0 : index
    %c0_19 = arith.constant 0 : index
    %c0_20 = arith.constant 0 : index
    %29 = vector.load %arg2[%c0_18, %c0_19, %c0_20] : memref<84x40x128xf32, #tpu.memory_space<vmem>>, vector<1x40x128xf32>
    %30 = vector.shape_cast %29 : vector<1x40x128xf32> to vector<40x128xf32>
    %31 = arith.mulf %30, %28 : vector<40x128xf32>
    %32 = arith.addf %21, %31 : vector<40x128xf32>
    %c21 = arith.constant 21 : index
    %c0_21 = arith.constant 0 : index
    %c0_22 = arith.constant 0 : index
    %33 = vector.load %arg2[%c21, %c0_21, %c0_22] : memref<84x40x128xf32, #tpu.memory_space<vmem>>, vector<1x40x128xf32>
    %34 = vector.shape_cast %33 : vector<1x40x128xf32> to vector<40x128xf32>
    %35 = arith.mulf %34, %28 : vector<40x128xf32>
    %36 = arith.addf %23, %35 : vector<40x128xf32>
    %c42 = arith.constant 42 : index
    %c0_23 = arith.constant 0 : index
    %c0_24 = arith.constant 0 : index
    %37 = vector.load %arg2[%c42, %c0_23, %c0_24] : memref<84x40x128xf32, #tpu.memory_space<vmem>>, vector<1x40x128xf32>
    %38 = vector.shape_cast %37 : vector<1x40x128xf32> to vector<40x128xf32>
    %39 = arith.mulf %38, %28 : vector<40x128xf32>
    %40 = arith.addf %25, %39 : vector<40x128xf32>
    %c63 = arith.constant 63 : index
    %c0_25 = arith.constant 0 : index
    %c0_26 = arith.constant 0 : index
    %41 = vector.load %arg2[%c63, %c0_25, %c0_26] : memref<84x40x128xf32, #tpu.memory_space<vmem>>, vector<1x40x128xf32>
    %42 = vector.shape_cast %41 : vector<1x40x128xf32> to vector<40x128xf32>
    %43 = arith.mulf %42, %28 : vector<40x128xf32>
    %44 = arith.addf %27, %43 : vector<40x128xf32>
    %45 = arith.mulf %4, %7 : vector<40x128xf32>
    %c1_27 = arith.constant 1 : index
    %c0_28 = arith.constant 0 : index
    %c0_29 = arith.constant 0 : index
    %46 = vector.load %arg2[%c1_27, %c0_28, %c0_29] : memref<84x40x128xf32, #tpu.memory_space<vmem>>, vector<1x40x128xf32>
    %47 = vector.shape_cast %46 : vector<1x40x128xf32> to vector<40x128xf32>
    %48 = arith.mulf %47, %45 : vector<40x128xf32>
    %49 = arith.addf %32, %48 : vector<40x128xf32>
    %c22 = arith.constant 22 : index
    %c0_30 = arith.constant 0 : index
    %c0_31 = arith.constant 0 : index
    %50 = vector.load %arg2[%c22, %c0_30, %c0_31] : memref<84x40x128xf32, #tpu.memory_space<vmem>>, vector<1x40x128xf32>
    %51 = vector.shape_cast %50 : vector<1x40x128xf32> to vector<40x128xf32>
    %52 = arith.mulf %51, %45 : vector<40x128xf32>
    %53 = arith.addf %36, %52 : vector<40x128xf32>
    %c43 = arith.constant 43 : index
    %c0_32 = arith.constant 0 : index
    %c0_33 = arith.constant 0 : index
    %54 = vector.load %arg2[%c43, %c0_32, %c0_33] : memref<84x40x128xf32, #tpu.memory_space<vmem>>, vector<1x40x128xf32>
    %55 = vector.shape_cast %54 : vector<1x40x128xf32> to vector<40x128xf32>
    %56 = arith.mulf %55, %45 : vector<40x128xf32>
    %57 = arith.addf %40, %56 : vector<40x128xf32>
    %c64 = arith.constant 64 : index
    %c0_34 = arith.constant 0 : index
    %c0_35 = arith.constant 0 : index
    %58 = vector.load %arg2[%c64, %c0_34, %c0_35] : memref<84x40x128xf32, #tpu.memory_space<vmem>>, vector<1x40x128xf32>
    %59 = vector.shape_cast %58 : vector<1x40x128xf32> to vector<40x128xf32>
    %60 = arith.mulf %59, %45 : vector<40x128xf32>
    %61 = arith.addf %44, %60 : vector<40x128xf32>
    %62 = arith.mulf %4, %10 : vector<40x128xf32>
    %c2_36 = arith.constant 2 : index
    %c0_37 = arith.constant 0 : index
    %c0_38 = arith.constant 0 : index
    %63 = vector.load %arg2[%c2_36, %c0_37, %c0_38] : memref<84x40x128xf32, #tpu.memory_space<vmem>>, vector<1x40x128xf32>
    %64 = vector.shape_cast %63 : vector<1x40x128xf32> to vector<40x128xf32>
    %65 = arith.mulf %64, %62 : vector<40x128xf32>
    %66 = arith.addf %49, %65 : vector<40x128xf32>
    %c23 = arith.constant 23 : index
    %c0_39 = arith.constant 0 : index
    %c0_40 = arith.constant 0 : index
    %67 = vector.load %arg2[%c23, %c0_39, %c0_40] : memref<84x40x128xf32, #tpu.memory_space<vmem>>, vector<1x40x128xf32>
    %68 = vector.shape_cast %67 : vector<1x40x128xf32> to vector<40x128xf32>
    %69 = arith.mulf %68, %62 : vector<40x128xf32>
    %70 = arith.addf %53, %69 : vector<40x128xf32>
    %c44 = arith.constant 44 : index
    %c0_41 = arith.constant 0 : index
    %c0_42 = arith.constant 0 : index
    %71 = vector.load %arg2[%c44, %c0_41, %c0_42] : memref<84x40x128xf32, #tpu.memory_space<vmem>>, vector<1x40x128xf32>
    %72 = vector.shape_cast %71 : vector<1x40x128xf32> to vector<40x128xf32>
    %73 = arith.mulf %72, %62 : vector<40x128xf32>
    %74 = arith.addf %57, %73 : vector<40x128xf32>
    %c65 = arith.constant 65 : index
    %c0_43 = arith.constant 0 : index
    %c0_44 = arith.constant 0 : index
    %75 = vector.load %arg2[%c65, %c0_43, %c0_44] : memref<84x40x128xf32, #tpu.memory_space<vmem>>, vector<1x40x128xf32>
    %76 = vector.shape_cast %75 : vector<1x40x128xf32> to vector<40x128xf32>
    %77 = arith.mulf %76, %62 : vector<40x128xf32>
    %78 = arith.addf %61, %77 : vector<40x128xf32>
    %79 = arith.mulf %4, %13 : vector<40x128xf32>
    %c3_45 = arith.constant 3 : index
    %c0_46 = arith.constant 0 : index
    %c0_47 = arith.constant 0 : index
    %80 = vector.load %arg2[%c3_45, %c0_46, %c0_47] : memref<84x40x128xf32, #tpu.memory_space<vmem>>, vector<1x40x128xf32>
    %81 = vector.shape_cast %80 : vector<1x40x128xf32> to vector<40x128xf32>
    %82 = arith.mulf %81, %79 : vector<40x128xf32>
    %83 = arith.addf %66, %82 : vector<40x128xf32>
    %c24 = arith.constant 24 : index
    %c0_48 = arith.constant 0 : index
    %c0_49 = arith.constant 0 : index
    %84 = vector.load %arg2[%c24, %c0_48, %c0_49] : memref<84x40x128xf32, #tpu.memory_space<vmem>>, vector<1x40x128xf32>
    %85 = vector.shape_cast %84 : vector<1x40x128xf32> to vector<40x128xf32>
    %86 = arith.mulf %85, %79 : vector<40x128xf32>
    %87 = arith.addf %70, %86 : vector<40x128xf32>
    %c45 = arith.constant 45 : index
    %c0_50 = arith.constant 0 : index
    %c0_51 = arith.constant 0 : index
    %88 = vector.load %arg2[%c45, %c0_50, %c0_51] : memref<84x40x128xf32, #tpu.memory_space<vmem>>, vector<1x40x128xf32>
    %89 = vector.shape_cast %88 : vector<1x40x128xf32> to vector<40x128xf32>
    %90 = arith.mulf %89, %79 : vector<40x128xf32>
    %91 = arith.addf %74, %90 : vector<40x128xf32>
    %c66 = arith.constant 66 : index
    %c0_52 = arith.constant 0 : index
    %c0_53 = arith.constant 0 : index
    %92 = vector.load %arg2[%c66, %c0_52, %c0_53] : memref<84x40x128xf32, #tpu.memory_space<vmem>>, vector<1x40x128xf32>
    %93 = vector.shape_cast %92 : vector<1x40x128xf32> to vector<40x128xf32>
    %94 = arith.mulf %93, %79 : vector<40x128xf32>
    %95 = arith.addf %78, %94 : vector<40x128xf32>
    %96 = arith.mulf %4, %16 : vector<40x128xf32>
    %c4_54 = arith.constant 4 : index
    %c0_55 = arith.constant 0 : index
    %c0_56 = arith.constant 0 : index
    %97 = vector.load %arg2[%c4_54, %c0_55, %c0_56] : memref<84x40x128xf32, #tpu.memory_space<vmem>>, vector<1x40x128xf32>
    %98 = vector.shape_cast %97 : vector<1x40x128xf32> to vector<40x128xf32>
    %99 = arith.mulf %98, %96 : vector<40x128xf32>
    %100 = arith.addf %83, %99 : vector<40x128xf32>
    %c25 = arith.constant 25 : index
    %c0_57 = arith.constant 0 : index
    %c0_58 = arith.constant 0 : index
    %101 = vector.load %arg2[%c25, %c0_57, %c0_58] : memref<84x40x128xf32, #tpu.memory_space<vmem>>, vector<1x40x128xf32>
    %102 = vector.shape_cast %101 : vector<1x40x128xf32> to vector<40x128xf32>
    %103 = arith.mulf %102, %96 : vector<40x128xf32>
    %104 = arith.addf %87, %103 : vector<40x128xf32>
    %c46 = arith.constant 46 : index
    %c0_59 = arith.constant 0 : index
    %c0_60 = arith.constant 0 : index
    %105 = vector.load %arg2[%c46, %c0_59, %c0_60] : memref<84x40x128xf32, #tpu.memory_space<vmem>>, vector<1x40x128xf32>
    %106 = vector.shape_cast %105 : vector<1x40x128xf32> to vector<40x128xf32>
    %107 = arith.mulf %106, %96 : vector<40x128xf32>
    %108 = arith.addf %91, %107 : vector<40x128xf32>
    %c67 = arith.constant 67 : index
    %c0_61 = arith.constant 0 : index
    %c0_62 = arith.constant 0 : index
    %109 = vector.load %arg2[%c67, %c0_61, %c0_62] : memref<84x40x128xf32, #tpu.memory_space<vmem>>, vector<1x40x128xf32>
    %110 = vector.shape_cast %109 : vector<1x40x128xf32> to vector<40x128xf32>
    %111 = arith.mulf %110, %96 : vector<40x128xf32>
    %112 = arith.addf %95, %111 : vector<40x128xf32>
    %113 = arith.mulf %4, %19 : vector<40x128xf32>
    %c5_63 = arith.constant 5 : index
    %c0_64 = arith.constant 0 : index
    %c0_65 = arith.constant 0 : index
    %114 = vector.load %arg2[%c5_63, %c0_64, %c0_65] : memref<84x40x128xf32, #tpu.memory_space<vmem>>, vector<1x40x128xf32>
    %115 = vector.shape_cast %114 : vector<1x40x128xf32> to vector<40x128xf32>
    %116 = arith.mulf %115, %113 : vector<40x128xf32>
    %117 = arith.addf %100, %116 : vector<40x128xf32>
    %c26 = arith.constant 26 : index
    %c0_66 = arith.constant 0 : index
    %c0_67 = arith.constant 0 : index
    %118 = vector.load %arg2[%c26, %c0_66, %c0_67] : memref<84x40x128xf32, #tpu.memory_space<vmem>>, vector<1x40x128xf32>
    %119 = vector.shape_cast %118 : vector<1x40x128xf32> to vector<40x128xf32>
    %120 = arith.mulf %119, %113 : vector<40x128xf32>
    %121 = arith.addf %104, %120 : vector<40x128xf32>
    %c47 = arith.constant 47 : index
    %c0_68 = arith.constant 0 : index
    %c0_69 = arith.constant 0 : index
    %122 = vector.load %arg2[%c47, %c0_68, %c0_69] : memref<84x40x128xf32, #tpu.memory_space<vmem>>, vector<1x40x128xf32>
    %123 = vector.shape_cast %122 : vector<1x40x128xf32> to vector<40x128xf32>
    %124 = arith.mulf %123, %113 : vector<40x128xf32>
    %125 = arith.addf %108, %124 : vector<40x128xf32>
    %c68 = arith.constant 68 : index
    %c0_70 = arith.constant 0 : index
    %c0_71 = arith.constant 0 : index
    %126 = vector.load %arg2[%c68, %c0_70, %c0_71] : memref<84x40x128xf32, #tpu.memory_space<vmem>>, vector<1x40x128xf32>
    %127 = vector.shape_cast %126 : vector<1x40x128xf32> to vector<40x128xf32>
    %128 = arith.mulf %127, %113 : vector<40x128xf32>
    %129 = arith.addf %112, %128 : vector<40x128xf32>
    %130 = arith.mulf %7, %7 : vector<40x128xf32>
    %c6 = arith.constant 6 : index
    %c0_72 = arith.constant 0 : index
    %c0_73 = arith.constant 0 : index
    %131 = vector.load %arg2[%c6, %c0_72, %c0_73] : memref<84x40x128xf32, #tpu.memory_space<vmem>>, vector<1x40x128xf32>
    %132 = vector.shape_cast %131 : vector<1x40x128xf32> to vector<40x128xf32>
    %133 = arith.mulf %132, %130 : vector<40x128xf32>
    %134 = arith.addf %117, %133 : vector<40x128xf32>
    %c27 = arith.constant 27 : index
    %c0_74 = arith.constant 0 : index
    %c0_75 = arith.constant 0 : index
    %135 = vector.load %arg2[%c27, %c0_74, %c0_75] : memref<84x40x128xf32, #tpu.memory_space<vmem>>, vector<1x40x128xf32>
    %136 = vector.shape_cast %135 : vector<1x40x128xf32> to vector<40x128xf32>
    %137 = arith.mulf %136, %130 : vector<40x128xf32>
    %138 = arith.addf %121, %137 : vector<40x128xf32>
    %c48 = arith.constant 48 : index
    %c0_76 = arith.constant 0 : index
    %c0_77 = arith.constant 0 : index
    %139 = vector.load %arg2[%c48, %c0_76, %c0_77] : memref<84x40x128xf32, #tpu.memory_space<vmem>>, vector<1x40x128xf32>
    %140 = vector.shape_cast %139 : vector<1x40x128xf32> to vector<40x128xf32>
    %141 = arith.mulf %140, %130 : vector<40x128xf32>
    %142 = arith.addf %125, %141 : vector<40x128xf32>
    %c69 = arith.constant 69 : index
    %c0_78 = arith.constant 0 : index
    %c0_79 = arith.constant 0 : index
    %143 = vector.load %arg2[%c69, %c0_78, %c0_79] : memref<84x40x128xf32, #tpu.memory_space<vmem>>, vector<1x40x128xf32>
    %144 = vector.shape_cast %143 : vector<1x40x128xf32> to vector<40x128xf32>
    %145 = arith.mulf %144, %130 : vector<40x128xf32>
    %146 = arith.addf %129, %145 : vector<40x128xf32>
    %147 = arith.mulf %7, %10 : vector<40x128xf32>
    %c7 = arith.constant 7 : index
    %c0_80 = arith.constant 0 : index
    %c0_81 = arith.constant 0 : index
    %148 = vector.load %arg2[%c7, %c0_80, %c0_81] : memref<84x40x128xf32, #tpu.memory_space<vmem>>, vector<1x40x128xf32>
    %149 = vector.shape_cast %148 : vector<1x40x128xf32> to vector<40x128xf32>
    %150 = arith.mulf %149, %147 : vector<40x128xf32>
    %151 = arith.addf %134, %150 : vector<40x128xf32>
    %c28 = arith.constant 28 : index
    %c0_82 = arith.constant 0 : index
    %c0_83 = arith.constant 0 : index
    %152 = vector.load %arg2[%c28, %c0_82, %c0_83] : memref<84x40x128xf32, #tpu.memory_space<vmem>>, vector<1x40x128xf32>
    %153 = vector.shape_cast %152 : vector<1x40x128xf32> to vector<40x128xf32>
    %154 = arith.mulf %153, %147 : vector<40x128xf32>
    %155 = arith.addf %138, %154 : vector<40x128xf32>
    %c49 = arith.constant 49 : index
    %c0_84 = arith.constant 0 : index
    %c0_85 = arith.constant 0 : index
    %156 = vector.load %arg2[%c49, %c0_84, %c0_85] : memref<84x40x128xf32, #tpu.memory_space<vmem>>, vector<1x40x128xf32>
    %157 = vector.shape_cast %156 : vector<1x40x128xf32> to vector<40x128xf32>
    %158 = arith.mulf %157, %147 : vector<40x128xf32>
    %159 = arith.addf %142, %158 : vector<40x128xf32>
    %c70 = arith.constant 70 : index
    %c0_86 = arith.constant 0 : index
    %c0_87 = arith.constant 0 : index
    %160 = vector.load %arg2[%c70, %c0_86, %c0_87] : memref<84x40x128xf32, #tpu.memory_space<vmem>>, vector<1x40x128xf32>
    %161 = vector.shape_cast %160 : vector<1x40x128xf32> to vector<40x128xf32>
    %162 = arith.mulf %161, %147 : vector<40x128xf32>
    %163 = arith.addf %146, %162 : vector<40x128xf32>
    %164 = arith.mulf %7, %13 : vector<40x128xf32>
    %c8 = arith.constant 8 : index
    %c0_88 = arith.constant 0 : index
    %c0_89 = arith.constant 0 : index
    %165 = vector.load %arg2[%c8, %c0_88, %c0_89] : memref<84x40x128xf32, #tpu.memory_space<vmem>>, vector<1x40x128xf32>
    %166 = vector.shape_cast %165 : vector<1x40x128xf32> to vector<40x128xf32>
    %167 = arith.mulf %166, %164 : vector<40x128xf32>
    %168 = arith.addf %151, %167 : vector<40x128xf32>
    %c29 = arith.constant 29 : index
    %c0_90 = arith.constant 0 : index
    %c0_91 = arith.constant 0 : index
    %169 = vector.load %arg2[%c29, %c0_90, %c0_91] : memref<84x40x128xf32, #tpu.memory_space<vmem>>, vector<1x40x128xf32>
    %170 = vector.shape_cast %169 : vector<1x40x128xf32> to vector<40x128xf32>
    %171 = arith.mulf %170, %164 : vector<40x128xf32>
    %172 = arith.addf %155, %171 : vector<40x128xf32>
    %c50 = arith.constant 50 : index
    %c0_92 = arith.constant 0 : index
    %c0_93 = arith.constant 0 : index
    %173 = vector.load %arg2[%c50, %c0_92, %c0_93] : memref<84x40x128xf32, #tpu.memory_space<vmem>>, vector<1x40x128xf32>
    %174 = vector.shape_cast %173 : vector<1x40x128xf32> to vector<40x128xf32>
    %175 = arith.mulf %174, %164 : vector<40x128xf32>
    %176 = arith.addf %159, %175 : vector<40x128xf32>
    %c71 = arith.constant 71 : index
    %c0_94 = arith.constant 0 : index
    %c0_95 = arith.constant 0 : index
    %177 = vector.load %arg2[%c71, %c0_94, %c0_95] : memref<84x40x128xf32, #tpu.memory_space<vmem>>, vector<1x40x128xf32>
    %178 = vector.shape_cast %177 : vector<1x40x128xf32> to vector<40x128xf32>
    %179 = arith.mulf %178, %164 : vector<40x128xf32>
    %180 = arith.addf %163, %179 : vector<40x128xf32>
    %181 = arith.mulf %7, %16 : vector<40x128xf32>
    %c9 = arith.constant 9 : index
    %c0_96 = arith.constant 0 : index
    %c0_97 = arith.constant 0 : index
    %182 = vector.load %arg2[%c9, %c0_96, %c0_97] : memref<84x40x128xf32, #tpu.memory_space<vmem>>, vector<1x40x128xf32>
    %183 = vector.shape_cast %182 : vector<1x40x128xf32> to vector<40x128xf32>
    %184 = arith.mulf %183, %181 : vector<40x128xf32>
    %185 = arith.addf %168, %184 : vector<40x128xf32>
    %c30 = arith.constant 30 : index
    %c0_98 = arith.constant 0 : index
    %c0_99 = arith.constant 0 : index
    %186 = vector.load %arg2[%c30, %c0_98, %c0_99] : memref<84x40x128xf32, #tpu.memory_space<vmem>>, vector<1x40x128xf32>
    %187 = vector.shape_cast %186 : vector<1x40x128xf32> to vector<40x128xf32>
    %188 = arith.mulf %187, %181 : vector<40x128xf32>
    %189 = arith.addf %172, %188 : vector<40x128xf32>
    %c51 = arith.constant 51 : index
    %c0_100 = arith.constant 0 : index
    %c0_101 = arith.constant 0 : index
    %190 = vector.load %arg2[%c51, %c0_100, %c0_101] : memref<84x40x128xf32, #tpu.memory_space<vmem>>, vector<1x40x128xf32>
    %191 = vector.shape_cast %190 : vector<1x40x128xf32> to vector<40x128xf32>
    %192 = arith.mulf %191, %181 : vector<40x128xf32>
    %193 = arith.addf %176, %192 : vector<40x128xf32>
    %c72 = arith.constant 72 : index
    %c0_102 = arith.constant 0 : index
    %c0_103 = arith.constant 0 : index
    %194 = vector.load %arg2[%c72, %c0_102, %c0_103] : memref<84x40x128xf32, #tpu.memory_space<vmem>>, vector<1x40x128xf32>
    %195 = vector.shape_cast %194 : vector<1x40x128xf32> to vector<40x128xf32>
    %196 = arith.mulf %195, %181 : vector<40x128xf32>
    %197 = arith.addf %180, %196 : vector<40x128xf32>
    %198 = arith.mulf %7, %19 : vector<40x128xf32>
    %c10 = arith.constant 10 : index
    %c0_104 = arith.constant 0 : index
    %c0_105 = arith.constant 0 : index
    %199 = vector.load %arg2[%c10, %c0_104, %c0_105] : memref<84x40x128xf32, #tpu.memory_space<vmem>>, vector<1x40x128xf32>
    %200 = vector.shape_cast %199 : vector<1x40x128xf32> to vector<40x128xf32>
    %201 = arith.mulf %200, %198 : vector<40x128xf32>
    %202 = arith.addf %185, %201 : vector<40x128xf32>
    %c31 = arith.constant 31 : index
    %c0_106 = arith.constant 0 : index
    %c0_107 = arith.constant 0 : index
    %203 = vector.load %arg2[%c31, %c0_106, %c0_107] : memref<84x40x128xf32, #tpu.memory_space<vmem>>, vector<1x40x128xf32>
    %204 = vector.shape_cast %203 : vector<1x40x128xf32> to vector<40x128xf32>
    %205 = arith.mulf %204, %198 : vector<40x128xf32>
    %206 = arith.addf %189, %205 : vector<40x128xf32>
    %c52 = arith.constant 52 : index
    %c0_108 = arith.constant 0 : index
    %c0_109 = arith.constant 0 : index
    %207 = vector.load %arg2[%c52, %c0_108, %c0_109] : memref<84x40x128xf32, #tpu.memory_space<vmem>>, vector<1x40x128xf32>
    %208 = vector.shape_cast %207 : vector<1x40x128xf32> to vector<40x128xf32>
    %209 = arith.mulf %208, %198 : vector<40x128xf32>
    %210 = arith.addf %193, %209 : vector<40x128xf32>
    %c73 = arith.constant 73 : index
    %c0_110 = arith.constant 0 : index
    %c0_111 = arith.constant 0 : index
    %211 = vector.load %arg2[%c73, %c0_110, %c0_111] : memref<84x40x128xf32, #tpu.memory_space<vmem>>, vector<1x40x128xf32>
    %212 = vector.shape_cast %211 : vector<1x40x128xf32> to vector<40x128xf32>
    %213 = arith.mulf %212, %198 : vector<40x128xf32>
    %214 = arith.addf %197, %213 : vector<40x128xf32>
    %215 = arith.mulf %10, %10 : vector<40x128xf32>
    %c11 = arith.constant 11 : index
    %c0_112 = arith.constant 0 : index
    %c0_113 = arith.constant 0 : index
    %216 = vector.load %arg2[%c11, %c0_112, %c0_113] : memref<84x40x128xf32, #tpu.memory_space<vmem>>, vector<1x40x128xf32>
    %217 = vector.shape_cast %216 : vector<1x40x128xf32> to vector<40x128xf32>
    %218 = arith.mulf %217, %215 : vector<40x128xf32>
    %219 = arith.addf %202, %218 : vector<40x128xf32>
    %c32 = arith.constant 32 : index
    %c0_114 = arith.constant 0 : index
    %c0_115 = arith.constant 0 : index
    %220 = vector.load %arg2[%c32, %c0_114, %c0_115] : memref<84x40x128xf32, #tpu.memory_space<vmem>>, vector<1x40x128xf32>
    %221 = vector.shape_cast %220 : vector<1x40x128xf32> to vector<40x128xf32>
    %222 = arith.mulf %221, %215 : vector<40x128xf32>
    %223 = arith.addf %206, %222 : vector<40x128xf32>
    %c53 = arith.constant 53 : index
    %c0_116 = arith.constant 0 : index
    %c0_117 = arith.constant 0 : index
    %224 = vector.load %arg2[%c53, %c0_116, %c0_117] : memref<84x40x128xf32, #tpu.memory_space<vmem>>, vector<1x40x128xf32>
    %225 = vector.shape_cast %224 : vector<1x40x128xf32> to vector<40x128xf32>
    %226 = arith.mulf %225, %215 : vector<40x128xf32>
    %227 = arith.addf %210, %226 : vector<40x128xf32>
    %c74 = arith.constant 74 : index
    %c0_118 = arith.constant 0 : index
    %c0_119 = arith.constant 0 : index
    %228 = vector.load %arg2[%c74, %c0_118, %c0_119] : memref<84x40x128xf32, #tpu.memory_space<vmem>>, vector<1x40x128xf32>
    %229 = vector.shape_cast %228 : vector<1x40x128xf32> to vector<40x128xf32>
    %230 = arith.mulf %229, %215 : vector<40x128xf32>
    %231 = arith.addf %214, %230 : vector<40x128xf32>
    %232 = arith.mulf %10, %13 : vector<40x128xf32>
    %c12 = arith.constant 12 : index
    %c0_120 = arith.constant 0 : index
    %c0_121 = arith.constant 0 : index
    %233 = vector.load %arg2[%c12, %c0_120, %c0_121] : memref<84x40x128xf32, #tpu.memory_space<vmem>>, vector<1x40x128xf32>
    %234 = vector.shape_cast %233 : vector<1x40x128xf32> to vector<40x128xf32>
    %235 = arith.mulf %234, %232 : vector<40x128xf32>
    %236 = arith.addf %219, %235 : vector<40x128xf32>
    %c33 = arith.constant 33 : index
    %c0_122 = arith.constant 0 : index
    %c0_123 = arith.constant 0 : index
    %237 = vector.load %arg2[%c33, %c0_122, %c0_123] : memref<84x40x128xf32, #tpu.memory_space<vmem>>, vector<1x40x128xf32>
    %238 = vector.shape_cast %237 : vector<1x40x128xf32> to vector<40x128xf32>
    %239 = arith.mulf %238, %232 : vector<40x128xf32>
    %240 = arith.addf %223, %239 : vector<40x128xf32>
    %c54 = arith.constant 54 : index
    %c0_124 = arith.constant 0 : index
    %c0_125 = arith.constant 0 : index
    %241 = vector.load %arg2[%c54, %c0_124, %c0_125] : memref<84x40x128xf32, #tpu.memory_space<vmem>>, vector<1x40x128xf32>
    %242 = vector.shape_cast %241 : vector<1x40x128xf32> to vector<40x128xf32>
    %243 = arith.mulf %242, %232 : vector<40x128xf32>
    %244 = arith.addf %227, %243 : vector<40x128xf32>
    %c75 = arith.constant 75 : index
    %c0_126 = arith.constant 0 : index
    %c0_127 = arith.constant 0 : index
    %245 = vector.load %arg2[%c75, %c0_126, %c0_127] : memref<84x40x128xf32, #tpu.memory_space<vmem>>, vector<1x40x128xf32>
    %246 = vector.shape_cast %245 : vector<1x40x128xf32> to vector<40x128xf32>
    %247 = arith.mulf %246, %232 : vector<40x128xf32>
    %248 = arith.addf %231, %247 : vector<40x128xf32>
    %249 = arith.mulf %10, %16 : vector<40x128xf32>
    %c13 = arith.constant 13 : index
    %c0_128 = arith.constant 0 : index
    %c0_129 = arith.constant 0 : index
    %250 = vector.load %arg2[%c13, %c0_128, %c0_129] : memref<84x40x128xf32, #tpu.memory_space<vmem>>, vector<1x40x128xf32>
    %251 = vector.shape_cast %250 : vector<1x40x128xf32> to vector<40x128xf32>
    %252 = arith.mulf %251, %249 : vector<40x128xf32>
    %253 = arith.addf %236, %252 : vector<40x128xf32>
    %c34 = arith.constant 34 : index
    %c0_130 = arith.constant 0 : index
    %c0_131 = arith.constant 0 : index
    %254 = vector.load %arg2[%c34, %c0_130, %c0_131] : memref<84x40x128xf32, #tpu.memory_space<vmem>>, vector<1x40x128xf32>
    %255 = vector.shape_cast %254 : vector<1x40x128xf32> to vector<40x128xf32>
    %256 = arith.mulf %255, %249 : vector<40x128xf32>
    %257 = arith.addf %240, %256 : vector<40x128xf32>
    %c55 = arith.constant 55 : index
    %c0_132 = arith.constant 0 : index
    %c0_133 = arith.constant 0 : index
    %258 = vector.load %arg2[%c55, %c0_132, %c0_133] : memref<84x40x128xf32, #tpu.memory_space<vmem>>, vector<1x40x128xf32>
    %259 = vector.shape_cast %258 : vector<1x40x128xf32> to vector<40x128xf32>
    %260 = arith.mulf %259, %249 : vector<40x128xf32>
    %261 = arith.addf %244, %260 : vector<40x128xf32>
    %c76 = arith.constant 76 : index
    %c0_134 = arith.constant 0 : index
    %c0_135 = arith.constant 0 : index
    %262 = vector.load %arg2[%c76, %c0_134, %c0_135] : memref<84x40x128xf32, #tpu.memory_space<vmem>>, vector<1x40x128xf32>
    %263 = vector.shape_cast %262 : vector<1x40x128xf32> to vector<40x128xf32>
    %264 = arith.mulf %263, %249 : vector<40x128xf32>
    %265 = arith.addf %248, %264 : vector<40x128xf32>
    %266 = arith.mulf %10, %19 : vector<40x128xf32>
    %c14 = arith.constant 14 : index
    %c0_136 = arith.constant 0 : index
    %c0_137 = arith.constant 0 : index
    %267 = vector.load %arg2[%c14, %c0_136, %c0_137] : memref<84x40x128xf32, #tpu.memory_space<vmem>>, vector<1x40x128xf32>
    %268 = vector.shape_cast %267 : vector<1x40x128xf32> to vector<40x128xf32>
    %269 = arith.mulf %268, %266 : vector<40x128xf32>
    %270 = arith.addf %253, %269 : vector<40x128xf32>
    %c35 = arith.constant 35 : index
    %c0_138 = arith.constant 0 : index
    %c0_139 = arith.constant 0 : index
    %271 = vector.load %arg2[%c35, %c0_138, %c0_139] : memref<84x40x128xf32, #tpu.memory_space<vmem>>, vector<1x40x128xf32>
    %272 = vector.shape_cast %271 : vector<1x40x128xf32> to vector<40x128xf32>
    %273 = arith.mulf %272, %266 : vector<40x128xf32>
    %274 = arith.addf %257, %273 : vector<40x128xf32>
    %c56 = arith.constant 56 : index
    %c0_140 = arith.constant 0 : index
    %c0_141 = arith.constant 0 : index
    %275 = vector.load %arg2[%c56, %c0_140, %c0_141] : memref<84x40x128xf32, #tpu.memory_space<vmem>>, vector<1x40x128xf32>
    %276 = vector.shape_cast %275 : vector<1x40x128xf32> to vector<40x128xf32>
    %277 = arith.mulf %276, %266 : vector<40x128xf32>
    %278 = arith.addf %261, %277 : vector<40x128xf32>
    %c77 = arith.constant 77 : index
    %c0_142 = arith.constant 0 : index
    %c0_143 = arith.constant 0 : index
    %279 = vector.load %arg2[%c77, %c0_142, %c0_143] : memref<84x40x128xf32, #tpu.memory_space<vmem>>, vector<1x40x128xf32>
    %280 = vector.shape_cast %279 : vector<1x40x128xf32> to vector<40x128xf32>
    %281 = arith.mulf %280, %266 : vector<40x128xf32>
    %282 = arith.addf %265, %281 : vector<40x128xf32>
    %283 = arith.mulf %13, %13 : vector<40x128xf32>
    %c15 = arith.constant 15 : index
    %c0_144 = arith.constant 0 : index
    %c0_145 = arith.constant 0 : index
    %284 = vector.load %arg2[%c15, %c0_144, %c0_145] : memref<84x40x128xf32, #tpu.memory_space<vmem>>, vector<1x40x128xf32>
    %285 = vector.shape_cast %284 : vector<1x40x128xf32> to vector<40x128xf32>
    %286 = arith.mulf %285, %283 : vector<40x128xf32>
    %287 = arith.addf %270, %286 : vector<40x128xf32>
    %c36 = arith.constant 36 : index
    %c0_146 = arith.constant 0 : index
    %c0_147 = arith.constant 0 : index
    %288 = vector.load %arg2[%c36, %c0_146, %c0_147] : memref<84x40x128xf32, #tpu.memory_space<vmem>>, vector<1x40x128xf32>
    %289 = vector.shape_cast %288 : vector<1x40x128xf32> to vector<40x128xf32>
    %290 = arith.mulf %289, %283 : vector<40x128xf32>
    %291 = arith.addf %274, %290 : vector<40x128xf32>
    %c57 = arith.constant 57 : index
    %c0_148 = arith.constant 0 : index
    %c0_149 = arith.constant 0 : index
    %292 = vector.load %arg2[%c57, %c0_148, %c0_149] : memref<84x40x128xf32, #tpu.memory_space<vmem>>, vector<1x40x128xf32>
    %293 = vector.shape_cast %292 : vector<1x40x128xf32> to vector<40x128xf32>
    %294 = arith.mulf %293, %283 : vector<40x128xf32>
    %295 = arith.addf %278, %294 : vector<40x128xf32>
    %c78 = arith.constant 78 : index
    %c0_150 = arith.constant 0 : index
    %c0_151 = arith.constant 0 : index
    %296 = vector.load %arg2[%c78, %c0_150, %c0_151] : memref<84x40x128xf32, #tpu.memory_space<vmem>>, vector<1x40x128xf32>
    %297 = vector.shape_cast %296 : vector<1x40x128xf32> to vector<40x128xf32>
    %298 = arith.mulf %297, %283 : vector<40x128xf32>
    %299 = arith.addf %282, %298 : vector<40x128xf32>
    %300 = arith.mulf %13, %16 : vector<40x128xf32>
    %c16 = arith.constant 16 : index
    %c0_152 = arith.constant 0 : index
    %c0_153 = arith.constant 0 : index
    %301 = vector.load %arg2[%c16, %c0_152, %c0_153] : memref<84x40x128xf32, #tpu.memory_space<vmem>>, vector<1x40x128xf32>
    %302 = vector.shape_cast %301 : vector<1x40x128xf32> to vector<40x128xf32>
    %303 = arith.mulf %302, %300 : vector<40x128xf32>
    %304 = arith.addf %287, %303 : vector<40x128xf32>
    %c37 = arith.constant 37 : index
    %c0_154 = arith.constant 0 : index
    %c0_155 = arith.constant 0 : index
    %305 = vector.load %arg2[%c37, %c0_154, %c0_155] : memref<84x40x128xf32, #tpu.memory_space<vmem>>, vector<1x40x128xf32>
    %306 = vector.shape_cast %305 : vector<1x40x128xf32> to vector<40x128xf32>
    %307 = arith.mulf %306, %300 : vector<40x128xf32>
    %308 = arith.addf %291, %307 : vector<40x128xf32>
    %c58 = arith.constant 58 : index
    %c0_156 = arith.constant 0 : index
    %c0_157 = arith.constant 0 : index
    %309 = vector.load %arg2[%c58, %c0_156, %c0_157] : memref<84x40x128xf32, #tpu.memory_space<vmem>>, vector<1x40x128xf32>
    %310 = vector.shape_cast %309 : vector<1x40x128xf32> to vector<40x128xf32>
    %311 = arith.mulf %310, %300 : vector<40x128xf32>
    %312 = arith.addf %295, %311 : vector<40x128xf32>
    %c79 = arith.constant 79 : index
    %c0_158 = arith.constant 0 : index
    %c0_159 = arith.constant 0 : index
    %313 = vector.load %arg2[%c79, %c0_158, %c0_159] : memref<84x40x128xf32, #tpu.memory_space<vmem>>, vector<1x40x128xf32>
    %314 = vector.shape_cast %313 : vector<1x40x128xf32> to vector<40x128xf32>
    %315 = arith.mulf %314, %300 : vector<40x128xf32>
    %316 = arith.addf %299, %315 : vector<40x128xf32>
    %317 = arith.mulf %13, %19 : vector<40x128xf32>
    %c17 = arith.constant 17 : index
    %c0_160 = arith.constant 0 : index
    %c0_161 = arith.constant 0 : index
    %318 = vector.load %arg2[%c17, %c0_160, %c0_161] : memref<84x40x128xf32, #tpu.memory_space<vmem>>, vector<1x40x128xf32>
    %319 = vector.shape_cast %318 : vector<1x40x128xf32> to vector<40x128xf32>
    %320 = arith.mulf %319, %317 : vector<40x128xf32>
    %321 = arith.addf %304, %320 : vector<40x128xf32>
    %c38 = arith.constant 38 : index
    %c0_162 = arith.constant 0 : index
    %c0_163 = arith.constant 0 : index
    %322 = vector.load %arg2[%c38, %c0_162, %c0_163] : memref<84x40x128xf32, #tpu.memory_space<vmem>>, vector<1x40x128xf32>
    %323 = vector.shape_cast %322 : vector<1x40x128xf32> to vector<40x128xf32>
    %324 = arith.mulf %323, %317 : vector<40x128xf32>
    %325 = arith.addf %308, %324 : vector<40x128xf32>
    %c59 = arith.constant 59 : index
    %c0_164 = arith.constant 0 : index
    %c0_165 = arith.constant 0 : index
    %326 = vector.load %arg2[%c59, %c0_164, %c0_165] : memref<84x40x128xf32, #tpu.memory_space<vmem>>, vector<1x40x128xf32>
    %327 = vector.shape_cast %326 : vector<1x40x128xf32> to vector<40x128xf32>
    %328 = arith.mulf %327, %317 : vector<40x128xf32>
    %329 = arith.addf %312, %328 : vector<40x128xf32>
    %c80 = arith.constant 80 : index
    %c0_166 = arith.constant 0 : index
    %c0_167 = arith.constant 0 : index
    %330 = vector.load %arg2[%c80, %c0_166, %c0_167] : memref<84x40x128xf32, #tpu.memory_space<vmem>>, vector<1x40x128xf32>
    %331 = vector.shape_cast %330 : vector<1x40x128xf32> to vector<40x128xf32>
    %332 = arith.mulf %331, %317 : vector<40x128xf32>
    %333 = arith.addf %316, %332 : vector<40x128xf32>
    %334 = arith.mulf %16, %16 : vector<40x128xf32>
    %c18 = arith.constant 18 : index
    %c0_168 = arith.constant 0 : index
    %c0_169 = arith.constant 0 : index
    %335 = vector.load %arg2[%c18, %c0_168, %c0_169] : memref<84x40x128xf32, #tpu.memory_space<vmem>>, vector<1x40x128xf32>
    %336 = vector.shape_cast %335 : vector<1x40x128xf32> to vector<40x128xf32>
    %337 = arith.mulf %336, %334 : vector<40x128xf32>
    %338 = arith.addf %321, %337 : vector<40x128xf32>
    %c39 = arith.constant 39 : index
    %c0_170 = arith.constant 0 : index
    %c0_171 = arith.constant 0 : index
    %339 = vector.load %arg2[%c39, %c0_170, %c0_171] : memref<84x40x128xf32, #tpu.memory_space<vmem>>, vector<1x40x128xf32>
    %340 = vector.shape_cast %339 : vector<1x40x128xf32> to vector<40x128xf32>
    %341 = arith.mulf %340, %334 : vector<40x128xf32>
    %342 = arith.addf %325, %341 : vector<40x128xf32>
    %c60 = arith.constant 60 : index
    %c0_172 = arith.constant 0 : index
    %c0_173 = arith.constant 0 : index
    %343 = vector.load %arg2[%c60, %c0_172, %c0_173] : memref<84x40x128xf32, #tpu.memory_space<vmem>>, vector<1x40x128xf32>
    %344 = vector.shape_cast %343 : vector<1x40x128xf32> to vector<40x128xf32>
    %345 = arith.mulf %344, %334 : vector<40x128xf32>
    %346 = arith.addf %329, %345 : vector<40x128xf32>
    %c81 = arith.constant 81 : index
    %c0_174 = arith.constant 0 : index
    %c0_175 = arith.constant 0 : index
    %347 = vector.load %arg2[%c81, %c0_174, %c0_175] : memref<84x40x128xf32, #tpu.memory_space<vmem>>, vector<1x40x128xf32>
    %348 = vector.shape_cast %347 : vector<1x40x128xf32> to vector<40x128xf32>
    %349 = arith.mulf %348, %334 : vector<40x128xf32>
    %350 = arith.addf %333, %349 : vector<40x128xf32>
    %351 = arith.mulf %16, %19 : vector<40x128xf32>
    %c19 = arith.constant 19 : index
    %c0_176 = arith.constant 0 : index
    %c0_177 = arith.constant 0 : index
    %352 = vector.load %arg2[%c19, %c0_176, %c0_177] : memref<84x40x128xf32, #tpu.memory_space<vmem>>, vector<1x40x128xf32>
    %353 = vector.shape_cast %352 : vector<1x40x128xf32> to vector<40x128xf32>
    %354 = arith.mulf %353, %351 : vector<40x128xf32>
    %355 = arith.addf %338, %354 : vector<40x128xf32>
    %c40 = arith.constant 40 : index
    %c0_178 = arith.constant 0 : index
    %c0_179 = arith.constant 0 : index
    %356 = vector.load %arg2[%c40, %c0_178, %c0_179] : memref<84x40x128xf32, #tpu.memory_space<vmem>>, vector<1x40x128xf32>
    %357 = vector.shape_cast %356 : vector<1x40x128xf32> to vector<40x128xf32>
    %358 = arith.mulf %357, %351 : vector<40x128xf32>
    %359 = arith.addf %342, %358 : vector<40x128xf32>
    %c61 = arith.constant 61 : index
    %c0_180 = arith.constant 0 : index
    %c0_181 = arith.constant 0 : index
    %360 = vector.load %arg2[%c61, %c0_180, %c0_181] : memref<84x40x128xf32, #tpu.memory_space<vmem>>, vector<1x40x128xf32>
    %361 = vector.shape_cast %360 : vector<1x40x128xf32> to vector<40x128xf32>
    %362 = arith.mulf %361, %351 : vector<40x128xf32>
    %363 = arith.addf %346, %362 : vector<40x128xf32>
    %c82 = arith.constant 82 : index
    %c0_182 = arith.constant 0 : index
    %c0_183 = arith.constant 0 : index
    %364 = vector.load %arg2[%c82, %c0_182, %c0_183] : memref<84x40x128xf32, #tpu.memory_space<vmem>>, vector<1x40x128xf32>
    %365 = vector.shape_cast %364 : vector<1x40x128xf32> to vector<40x128xf32>
    %366 = arith.mulf %365, %351 : vector<40x128xf32>
    %367 = arith.addf %350, %366 : vector<40x128xf32>
    %368 = arith.mulf %19, %19 : vector<40x128xf32>
    %c20 = arith.constant 20 : index
    %c0_184 = arith.constant 0 : index
    %c0_185 = arith.constant 0 : index
    %369 = vector.load %arg2[%c20, %c0_184, %c0_185] : memref<84x40x128xf32, #tpu.memory_space<vmem>>, vector<1x40x128xf32>
    %370 = vector.shape_cast %369 : vector<1x40x128xf32> to vector<40x128xf32>
    %371 = arith.mulf %370, %368 : vector<40x128xf32>
    %372 = arith.addf %355, %371 : vector<40x128xf32>
    %c41 = arith.constant 41 : index
    %c0_186 = arith.constant 0 : index
    %c0_187 = arith.constant 0 : index
    %373 = vector.load %arg2[%c41, %c0_186, %c0_187] : memref<84x40x128xf32, #tpu.memory_space<vmem>>, vector<1x40x128xf32>
    %374 = vector.shape_cast %373 : vector<1x40x128xf32> to vector<40x128xf32>
    %375 = arith.mulf %374, %368 : vector<40x128xf32>
    %376 = arith.addf %359, %375 : vector<40x128xf32>
    %c62 = arith.constant 62 : index
    %c0_188 = arith.constant 0 : index
    %c0_189 = arith.constant 0 : index
    %377 = vector.load %arg2[%c62, %c0_188, %c0_189] : memref<84x40x128xf32, #tpu.memory_space<vmem>>, vector<1x40x128xf32>
    %378 = vector.shape_cast %377 : vector<1x40x128xf32> to vector<40x128xf32>
    %379 = arith.mulf %378, %368 : vector<40x128xf32>
    %380 = arith.addf %363, %379 : vector<40x128xf32>
    %c83 = arith.constant 83 : index
    %c0_190 = arith.constant 0 : index
    %c0_191 = arith.constant 0 : index
    %381 = vector.load %arg2[%c83, %c0_190, %c0_191] : memref<84x40x128xf32, #tpu.memory_space<vmem>>, vector<1x40x128xf32>
    %382 = vector.shape_cast %381 : vector<1x40x128xf32> to vector<40x128xf32>
    %383 = arith.mulf %382, %368 : vector<40x128xf32>
    %384 = arith.addf %367, %383 : vector<40x128xf32>
    %c0_192 = arith.constant 0 : index
    %c0_193 = arith.constant 0 : index
    %c0_194 = arith.constant 0 : index
    %385 = vector.load %arg3[%c0_192, %c0_193, %c0_194] : memref<24x40x128xf32, #tpu.memory_space<vmem>>, vector<1x40x128xf32>
    %386 = vector.shape_cast %385 : vector<1x40x128xf32> to vector<40x128xf32>
    %387 = arith.mulf %386, %4 : vector<40x128xf32>
    %388 = arith.addf %372, %387 : vector<40x128xf32>
    %c6_195 = arith.constant 6 : index
    %c0_196 = arith.constant 0 : index
    %c0_197 = arith.constant 0 : index
    %389 = vector.load %arg3[%c6_195, %c0_196, %c0_197] : memref<24x40x128xf32, #tpu.memory_space<vmem>>, vector<1x40x128xf32>
    %390 = vector.shape_cast %389 : vector<1x40x128xf32> to vector<40x128xf32>
    %391 = arith.mulf %390, %4 : vector<40x128xf32>
    %392 = arith.addf %376, %391 : vector<40x128xf32>
    %c12_198 = arith.constant 12 : index
    %c0_199 = arith.constant 0 : index
    %c0_200 = arith.constant 0 : index
    %393 = vector.load %arg3[%c12_198, %c0_199, %c0_200] : memref<24x40x128xf32, #tpu.memory_space<vmem>>, vector<1x40x128xf32>
    %394 = vector.shape_cast %393 : vector<1x40x128xf32> to vector<40x128xf32>
    %395 = arith.mulf %394, %4 : vector<40x128xf32>
    %396 = arith.addf %380, %395 : vector<40x128xf32>
    %c18_201 = arith.constant 18 : index
    %c0_202 = arith.constant 0 : index
    %c0_203 = arith.constant 0 : index
    %397 = vector.load %arg3[%c18_201, %c0_202, %c0_203] : memref<24x40x128xf32, #tpu.memory_space<vmem>>, vector<1x40x128xf32>
    %398 = vector.shape_cast %397 : vector<1x40x128xf32> to vector<40x128xf32>
    %399 = arith.mulf %398, %4 : vector<40x128xf32>
    %400 = arith.addf %384, %399 : vector<40x128xf32>
    %c1_204 = arith.constant 1 : index
    %c0_205 = arith.constant 0 : index
    %c0_206 = arith.constant 0 : index
    %401 = vector.load %arg3[%c1_204, %c0_205, %c0_206] : memref<24x40x128xf32, #tpu.memory_space<vmem>>, vector<1x40x128xf32>
    %402 = vector.shape_cast %401 : vector<1x40x128xf32> to vector<40x128xf32>
    %403 = arith.mulf %402, %7 : vector<40x128xf32>
    %404 = arith.addf %388, %403 : vector<40x128xf32>
    %c7_207 = arith.constant 7 : index
    %c0_208 = arith.constant 0 : index
    %c0_209 = arith.constant 0 : index
    %405 = vector.load %arg3[%c7_207, %c0_208, %c0_209] : memref<24x40x128xf32, #tpu.memory_space<vmem>>, vector<1x40x128xf32>
    %406 = vector.shape_cast %405 : vector<1x40x128xf32> to vector<40x128xf32>
    %407 = arith.mulf %406, %7 : vector<40x128xf32>
    %408 = arith.addf %392, %407 : vector<40x128xf32>
    %c13_210 = arith.constant 13 : index
    %c0_211 = arith.constant 0 : index
    %c0_212 = arith.constant 0 : index
    %409 = vector.load %arg3[%c13_210, %c0_211, %c0_212] : memref<24x40x128xf32, #tpu.memory_space<vmem>>, vector<1x40x128xf32>
    %410 = vector.shape_cast %409 : vector<1x40x128xf32> to vector<40x128xf32>
    %411 = arith.mulf %410, %7 : vector<40x128xf32>
    %412 = arith.addf %396, %411 : vector<40x128xf32>
    %c19_213 = arith.constant 19 : index
    %c0_214 = arith.constant 0 : index
    %c0_215 = arith.constant 0 : index
    %413 = vector.load %arg3[%c19_213, %c0_214, %c0_215] : memref<24x40x128xf32, #tpu.memory_space<vmem>>, vector<1x40x128xf32>
    %414 = vector.shape_cast %413 : vector<1x40x128xf32> to vector<40x128xf32>
    %415 = arith.mulf %414, %7 : vector<40x128xf32>
    %416 = arith.addf %400, %415 : vector<40x128xf32>
    %c2_216 = arith.constant 2 : index
    %c0_217 = arith.constant 0 : index
    %c0_218 = arith.constant 0 : index
    %417 = vector.load %arg3[%c2_216, %c0_217, %c0_218] : memref<24x40x128xf32, #tpu.memory_space<vmem>>, vector<1x40x128xf32>
    %418 = vector.shape_cast %417 : vector<1x40x128xf32> to vector<40x128xf32>
    %419 = arith.mulf %418, %10 : vector<40x128xf32>
    %420 = arith.addf %404, %419 : vector<40x128xf32>
    %c8_219 = arith.constant 8 : index
    %c0_220 = arith.constant 0 : index
    %c0_221 = arith.constant 0 : index
    %421 = vector.load %arg3[%c8_219, %c0_220, %c0_221] : memref<24x40x128xf32, #tpu.memory_space<vmem>>, vector<1x40x128xf32>
    %422 = vector.shape_cast %421 : vector<1x40x128xf32> to vector<40x128xf32>
    %423 = arith.mulf %422, %10 : vector<40x128xf32>
    %424 = arith.addf %408, %423 : vector<40x128xf32>
    %c14_222 = arith.constant 14 : index
    %c0_223 = arith.constant 0 : index
    %c0_224 = arith.constant 0 : index
    %425 = vector.load %arg3[%c14_222, %c0_223, %c0_224] : memref<24x40x128xf32, #tpu.memory_space<vmem>>, vector<1x40x128xf32>
    %426 = vector.shape_cast %425 : vector<1x40x128xf32> to vector<40x128xf32>
    %427 = arith.mulf %426, %10 : vector<40x128xf32>
    %428 = arith.addf %412, %427 : vector<40x128xf32>
    %c20_225 = arith.constant 20 : index
    %c0_226 = arith.constant 0 : index
    %c0_227 = arith.constant 0 : index
    %429 = vector.load %arg3[%c20_225, %c0_226, %c0_227] : memref<24x40x128xf32, #tpu.memory_space<vmem>>, vector<1x40x128xf32>
    %430 = vector.shape_cast %429 : vector<1x40x128xf32> to vector<40x128xf32>
    %431 = arith.mulf %430, %10 : vector<40x128xf32>
    %432 = arith.addf %416, %431 : vector<40x128xf32>
    %c3_228 = arith.constant 3 : index
    %c0_229 = arith.constant 0 : index
    %c0_230 = arith.constant 0 : index
    %433 = vector.load %arg3[%c3_228, %c0_229, %c0_230] : memref<24x40x128xf32, #tpu.memory_space<vmem>>, vector<1x40x128xf32>
    %434 = vector.shape_cast %433 : vector<1x40x128xf32> to vector<40x128xf32>
    %435 = arith.mulf %434, %13 : vector<40x128xf32>
    %436 = arith.addf %420, %435 : vector<40x128xf32>
    %c9_231 = arith.constant 9 : index
    %c0_232 = arith.constant 0 : index
    %c0_233 = arith.constant 0 : index
    %437 = vector.load %arg3[%c9_231, %c0_232, %c0_233] : memref<24x40x128xf32, #tpu.memory_space<vmem>>, vector<1x40x128xf32>
    %438 = vector.shape_cast %437 : vector<1x40x128xf32> to vector<40x128xf32>
    %439 = arith.mulf %438, %13 : vector<40x128xf32>
    %440 = arith.addf %424, %439 : vector<40x128xf32>
    %c15_234 = arith.constant 15 : index
    %c0_235 = arith.constant 0 : index
    %c0_236 = arith.constant 0 : index
    %441 = vector.load %arg3[%c15_234, %c0_235, %c0_236] : memref<24x40x128xf32, #tpu.memory_space<vmem>>, vector<1x40x128xf32>
    %442 = vector.shape_cast %441 : vector<1x40x128xf32> to vector<40x128xf32>
    %443 = arith.mulf %442, %13 : vector<40x128xf32>
    %444 = arith.addf %428, %443 : vector<40x128xf32>
    %c21_237 = arith.constant 21 : index
    %c0_238 = arith.constant 0 : index
    %c0_239 = arith.constant 0 : index
    %445 = vector.load %arg3[%c21_237, %c0_238, %c0_239] : memref<24x40x128xf32, #tpu.memory_space<vmem>>, vector<1x40x128xf32>
    %446 = vector.shape_cast %445 : vector<1x40x128xf32> to vector<40x128xf32>
    %447 = arith.mulf %446, %13 : vector<40x128xf32>
    %448 = arith.addf %432, %447 : vector<40x128xf32>
    %c4_240 = arith.constant 4 : index
    %c0_241 = arith.constant 0 : index
    %c0_242 = arith.constant 0 : index
    %449 = vector.load %arg3[%c4_240, %c0_241, %c0_242] : memref<24x40x128xf32, #tpu.memory_space<vmem>>, vector<1x40x128xf32>
    %450 = vector.shape_cast %449 : vector<1x40x128xf32> to vector<40x128xf32>
    %451 = arith.mulf %450, %16 : vector<40x128xf32>
    %452 = arith.addf %436, %451 : vector<40x128xf32>
    %c10_243 = arith.constant 10 : index
    %c0_244 = arith.constant 0 : index
    %c0_245 = arith.constant 0 : index
    %453 = vector.load %arg3[%c10_243, %c0_244, %c0_245] : memref<24x40x128xf32, #tpu.memory_space<vmem>>, vector<1x40x128xf32>
    %454 = vector.shape_cast %453 : vector<1x40x128xf32> to vector<40x128xf32>
    %455 = arith.mulf %454, %16 : vector<40x128xf32>
    %456 = arith.addf %440, %455 : vector<40x128xf32>
    %c16_246 = arith.constant 16 : index
    %c0_247 = arith.constant 0 : index
    %c0_248 = arith.constant 0 : index
    %457 = vector.load %arg3[%c16_246, %c0_247, %c0_248] : memref<24x40x128xf32, #tpu.memory_space<vmem>>, vector<1x40x128xf32>
    %458 = vector.shape_cast %457 : vector<1x40x128xf32> to vector<40x128xf32>
    %459 = arith.mulf %458, %16 : vector<40x128xf32>
    %460 = arith.addf %444, %459 : vector<40x128xf32>
    %c22_249 = arith.constant 22 : index
    %c0_250 = arith.constant 0 : index
    %c0_251 = arith.constant 0 : index
    %461 = vector.load %arg3[%c22_249, %c0_250, %c0_251] : memref<24x40x128xf32, #tpu.memory_space<vmem>>, vector<1x40x128xf32>
    %462 = vector.shape_cast %461 : vector<1x40x128xf32> to vector<40x128xf32>
    %463 = arith.mulf %462, %16 : vector<40x128xf32>
    %464 = arith.addf %448, %463 : vector<40x128xf32>
    %c5_252 = arith.constant 5 : index
    %c0_253 = arith.constant 0 : index
    %c0_254 = arith.constant 0 : index
    %465 = vector.load %arg3[%c5_252, %c0_253, %c0_254] : memref<24x40x128xf32, #tpu.memory_space<vmem>>, vector<1x40x128xf32>
    %466 = vector.shape_cast %465 : vector<1x40x128xf32> to vector<40x128xf32>
    %467 = arith.mulf %466, %19 : vector<40x128xf32>
    %468 = arith.addf %452, %467 : vector<40x128xf32>
    %c11_255 = arith.constant 11 : index
    %c0_256 = arith.constant 0 : index
    %c0_257 = arith.constant 0 : index
    %469 = vector.load %arg3[%c11_255, %c0_256, %c0_257] : memref<24x40x128xf32, #tpu.memory_space<vmem>>, vector<1x40x128xf32>
    %470 = vector.shape_cast %469 : vector<1x40x128xf32> to vector<40x128xf32>
    %471 = arith.mulf %470, %19 : vector<40x128xf32>
    %472 = arith.addf %456, %471 : vector<40x128xf32>
    %c17_258 = arith.constant 17 : index
    %c0_259 = arith.constant 0 : index
    %c0_260 = arith.constant 0 : index
    %473 = vector.load %arg3[%c17_258, %c0_259, %c0_260] : memref<24x40x128xf32, #tpu.memory_space<vmem>>, vector<1x40x128xf32>
    %474 = vector.shape_cast %473 : vector<1x40x128xf32> to vector<40x128xf32>
    %475 = arith.mulf %474, %19 : vector<40x128xf32>
    %476 = arith.addf %460, %475 : vector<40x128xf32>
    %c23_261 = arith.constant 23 : index
    %c0_262 = arith.constant 0 : index
    %c0_263 = arith.constant 0 : index
    %477 = vector.load %arg3[%c23_261, %c0_262, %c0_263] : memref<24x40x128xf32, #tpu.memory_space<vmem>>, vector<1x40x128xf32>
    %478 = vector.shape_cast %477 : vector<1x40x128xf32> to vector<40x128xf32>
    %479 = arith.mulf %478, %19 : vector<40x128xf32>
    %480 = arith.addf %464, %479 : vector<40x128xf32>
    %481 = arith.minimumf %468, %472 : vector<40x128xf32>
    %482 = arith.minimumf %481, %476 : vector<40x128xf32>
    %483 = arith.minimumf %482, %480 : vector<40x128xf32>
    %c0_264 = arith.constant 0 : index
    %484 = arith.index_cast %1 : i32 to index
    %485 = vector.load %arg5[%c0_264, %484] : memref<40x128xf32, #tpu.memory_space<vmem>>, vector<40x128xf32>
    tpu.vector_store %arg5[%c0_264, %484], %483 {strides = array<i32>} : memref<40x128xf32, #tpu.memory_space<vmem>>, vector<40x128xf32>,
    %c1_i32 = arith.constant 1 : i32
    return
  }
  func.func @transform_0(%arg0: i32) -> (i32, i32, i32) {
    %c0_i32 = arith.constant 0 : i32
    %c0_i32_0 = arith.constant 0 : i32
    %c0_i32_1 = arith.constant 0 : i32
    return %c0_i32, %c0_i32_0, %arg0 : i32, i32, i32
  }
  func.func @transform_1(%arg0: i32) -> (i32, i32, i32) {
    %c0_i32 = arith.constant 0 : i32
    %c0_i32_0 = arith.constant 0 : i32
    %c0_i32_1 = arith.constant 0 : i32
    %c0_i32_2 = arith.constant 0 : i32
    return %c0_i32, %c0_i32_0, %c0_i32_1 : i32, i32, i32
  }
  func.func @transform_2(%arg0: i32) -> (i32, i32, i32) {
    %c0_i32 = arith.constant 0 : i32
    %c0_i32_0 = arith.constant 0 : i32
    %c0_i32_1 = arith.constant 0 : i32
    %c0_i32_2 = arith.constant 0 : i32
    return %c0_i32, %c0_i32_0, %c0_i32_1 : i32, i32, i32
  }
  func.func @transform_3(%arg0: i32) -> (i32, i32, i32) {
    %c0_i32 = arith.constant 0 : i32
    %c0_i32_0 = arith.constant 0 : i32
    %c0_i32_1 = arith.constant 0 : i32
    %c0_i32_2 = arith.constant 0 : i32
    return %c0_i32, %c0_i32_0, %c0_i32_1 : i32, i32, i32
  }
  func.func @transform_4(%arg0: i32) -> (i32, i32) {
    %c0_i32 = arith.constant 0 : i32
    %c0_i32_0 = arith.constant 0 : i32
    return %c0_i32, %arg0 : i32, i32
  }
}

</mosaic_0001>

<llo_original>
// kernel: tpu_custom_call.1
$region0: #{tpu_custom_call.1}
  #allocation0 [shape = 'u32[]', space=smem, size = 0x4, offset = 0x4, fixed_abs, tag = 'smem constant byte address 0x4 - core index']
  #allocation1 [shape = 'u32[144,128]{1,0:T(1,128)}', space=vmem, size = 0x12000, scoped, tag = 'internal scratch']
  %s0 = inlined_call_operand.hbm [shape: f32[6,40,128], index: 0, kind: input, shape index: {}]
  %s1 = inlined_call_operand.hbm [shape: f32[84,40,128], index: 1, kind: input, shape index: {}]
  %s2 = inlined_call_operand.hbm [shape: f32[24,40,128], index: 2, kind: input, shape index: {}]
  %s3 = inlined_call_operand.hbm [shape: f32[4,40,128], index: 3, kind: input, shape index: {}]
  %s4 = inlined_call_operand.hbm [shape: f32[40,128], index: 4, kind: output, shape index: {}]
  %s5 = sld [smem:[#allocation0]]
  $region42: #{tpu_custom_call.1} parent=0
    _
  %s7 = ssub.s32 1, %s5
  %s8 = scalar_select 0, %s7, %s5
  $region1: #{tpu_custom_call.1} parent=0
    #allocation2 [shape = 'u8[122880]{0}', space=vmem, size = 0x1e000, scoped, tag = 'input window, operand 0, single buffered']
    #allocation3 [shape = 's32[1]{0}', space=sflag, size = 0x4, scoped, tag = 'scoped memory for tpu_custom_call.1']
    #allocation4 [shape = 's32[1]{0}', space=sflag, size = 0x4, scoped, tag = 'scoped memory for tpu_custom_call.1']
    #allocation5 [shape = 'u8[1720320]{0}', space=vmem, size = 0x1a4000, scoped, tag = 'input window, operand 1, single buffered']
    #allocation6 [shape = 's32[1]{0}', space=sflag, size = 0x4, scoped, tag = 'scoped memory for tpu_custom_call.1']
    #allocation7 [shape = 'u8[491520]{0}', space=vmem, size = 0x78000, scoped, tag = 'input window, operand 2, single buffered']
    #allocation8 [shape = 'u8[81920]{0}', space=vmem, size = 0x14000, scoped, tag = 'input window, operand 3, single buffered']
    #allocation9 [shape = 's32[1]{0}', space=sflag, size = 0x4, scoped, tag = 'scoped memory for tpu_custom_call.1']
    #allocation10 [shape = 'u8[20480]{0}', space=vmem, size = 0x5000, scoped, tag = 'output window, operand 0, single buffered']
    %9 = vsyncpa [#allocation3], 0
    %10 = vsyncpa [#allocation6], 0
    %11 = vsyncpa [#allocation9], 0
    %12 = vsyncpa [#allocation4], 0
    // Predicated region
    $region2: #{tpu_custom_call.1} parent=1 // pred_check
      _
    $region3: #{tpu_custom_call.1} parent=1 // pred_check_branch
      %14 = sbr.rel (0) target = $region5
    $region4: #{tpu_custom_call.1} parent=1 // pred_region
      %s16 = ssub.s32 3840, 3840
      %17 = vsyncadd [#allocation3], %s16
      %s18 = sshll.u32 [#allocation2], 4
      %s19 = int_to_ptr.vmem [resolvable:$true] %s18
      %24 = dma.hbm_to_vmem [thread:$0]  %s0, 3840, %s19, [#allocation3], 128, 128, 8
    $region5: #{tpu_custom_call.1} parent=1 // pred_fallthru
      _
    // Predicated region
    $region6: #{tpu_custom_call.1} parent=1 // pred_check
      _
    $region7: #{tpu_custom_call.1} parent=1 // pred_check_branch
      %26 = sbr.rel (0) target = $region9
    $region8: #{tpu_custom_call.1} parent=1 // pred_region
      %s28 = ssub.s32 53760, 53760
      %29 = vsyncadd [#allocation6], %s28
      %s30 = sshll.u32 [#allocation5], 4
      %s31 = int_to_ptr.vmem [resolvable:$true] %s30
      %36 = dma.hbm_to_vmem [thread:$0]  %s1, 53760, %s31, [#allocation6], 128, 128, 8
    $region9: #{tpu_custom_call.1} parent=1 // pred_fallthru
      _
    // Predicated region
    $region10: #{tpu_custom_call.1} parent=1 // pred_check
      _
    $region11: #{tpu_custom_call.1} parent=1 // pred_check_branch
      %38 = sbr.rel (0) target = $region13
    $region12: #{tpu_custom_call.1} parent=1 // pred_region
      %s40 = ssub.s32 15360, 15360
      %41 = vsyncadd [#allocation6], %s40
      %s42 = sshll.u32 [#allocation7], 4
      %s43 = int_to_ptr.vmem [resolvable:$true] %s42
      %48 = dma.hbm_to_vmem [thread:$0]  %s2, 15360, %s43, [#allocation6], 128, 128, 8
    $region13: #{tpu_custom_call.1} parent=1 // pred_fallthru
      _
    // Predicated region
    $region14: #{tpu_custom_call.1} parent=1 // pred_check
      _
    $region15: #{tpu_custom_call.1} parent=1 // pred_check_branch
      %50 = sbr.rel (0) target = $region17
    $region16: #{tpu_custom_call.1} parent=1 // pred_region
      %s52 = ssub.s32 2560, 2560
      %53 = vsyncadd [#allocation9], %s52
      %s54 = sshll.u32 [#allocation8], 4
      %s55 = int_to_ptr.vmem [resolvable:$true] %s54
      %60 = dma.hbm_to_vmem [thread:$0]  %s3, 2560, %s55, [#allocation9], 128, 128, 8
    $region17: #{tpu_custom_call.1} parent=1 // pred_fallthru
      _
    // Predicated region
    $region18: #{tpu_custom_call.1} parent=1 // pred_check
      _
    $region19: #{tpu_custom_call.1} parent=1 // pred_check_branch
      %62 = sbr.rel (0) target = $region21
    $region20: #{tpu_custom_call.1} parent=1 // pred_region
      %63 = dma.done [#allocation3], 3840
    $region21: #{tpu_custom_call.1} parent=1 // pred_fallthru
      _
    // Predicated region
    $region22: #{tpu_custom_call.1} parent=1 // pred_check
      _
    $region23: #{tpu_custom_call.1} parent=1 // pred_check_branch
      %65 = sbr.rel (0) target = $region25
    $region24: #{tpu_custom_call.1} parent=1 // pred_region
      %66 = dma.done [#allocation6], 53760
    $region25: #{tpu_custom_call.1} parent=1 // pred_fallthru
      _
    // Predicated region
    $region26: #{tpu_custom_call.1} parent=1 // pred_check
      _
    $region27: #{tpu_custom_call.1} parent=1 // pred_check_branch
      %68 = sbr.rel (0) target = $region29
    $region28: #{tpu_custom_call.1} parent=1 // pred_region
      %69 = dma.done [#allocation6], 15360
    $region29: #{tpu_custom_call.1} parent=1 // pred_fallthru
      _
    // Predicated region
    $region30: #{tpu_custom_call.1} parent=1 // pred_check
      _
    $region31: #{tpu_custom_call.1} parent=1 // pred_check_branch
      %71 = sbr.rel (0) target = $region33
    $region32: #{tpu_custom_call.1} parent=1 // pred_region
      %72 = dma.done [#allocation9], 2560
    $region33: #{tpu_custom_call.1} parent=1 // pred_fallthru
      _
    %v73 = vld [vmem:[#allocation2] sm:$0xff]
    %v74 = vld [vmem:[#allocation2 + $0x8] sm:$0xff]
    %v75 = vld [vmem:[#allocation2 + $0x10] sm:$0xff]
    %v76 = vld [vmem:[#allocation2 + $0x18] sm:$0xff]
    %v77 = vld [vmem:[#allocation2 + $0x20] sm:$0xff]
    %s78 = sadd.s32 0, 40
    %s79 = scalar_lea.vmem [#allocation2], %s78
    %v80 = vld [vmem:[%s79] sm:$0xff]
    %v81 = vld [vmem:[%s79 + $0x8] sm:$0xff]
    %v82 = vld [vmem:[%s79 + $0x10] sm:$0xff]
    %v83 = vld [vmem:[%s79 + $0x18] sm:$0xff]
    %v84 = vld [vmem:[%s79 + $0x20] sm:$0xff]
    %s85 = sadd.s32 0, 80
    %s86 = scalar_lea.vmem [#allocation2], %s85
    %v87 = vld [vmem:[%s86] sm:$0xff]
    %v88 = vld [vmem:[%s86 + $0x8] sm:$0xff]
    %v89 = vld [vmem:[%s86 + $0x10] sm:$0xff]
    %v90 = vld [vmem:[%s86 + $0x18] sm:$0xff]
    %v91 = vld [vmem:[%s86 + $0x20] sm:$0xff]
    %s92 = sadd.s32 0, 120
    %s93 = scalar_lea.vmem [#allocation2], %s92
    %v94 = vld [vmem:[%s93] sm:$0xff]
    %v95 = vld [vmem:[%s93 + $0x8] sm:$0xff]
    %v96 = vld [vmem:[%s93 + $0x10] sm:$0xff]
    %v97 = vld [vmem:[%s93 + $0x18] sm:$0xff]
    %v98 = vld [vmem:[%s93 + $0x20] sm:$0xff]
    %s99 = sadd.s32 0, 160
    %s100 = scalar_lea.vmem [#allocation2], %s99
    %v101 = vld [vmem:[%s100] sm:$0xff]
    %v102 = vld [vmem:[%s100 + $0x8] sm:$0xff]
    %v103 = vld [vmem:[%s100 + $0x10] sm:$0xff]
    %v104 = vld [vmem:[%s100 + $0x18] sm:$0xff]
    %v105 = vld [vmem:[%s100 + $0x20] sm:$0xff]
    %s106 = sadd.s32 0, 200
    %s107 = scalar_lea.vmem [#allocation2], %s106
    %v108 = vld [vmem:[%s107] sm:$0xff]
    %v109 = vld [vmem:[%s107 + $0x8] sm:$0xff]
    %v110 = vld [vmem:[%s107 + $0x10] sm:$0xff]
    %v111 = vld [vmem:[%s107 + $0x18] sm:$0xff]
    %v112 = vld [vmem:[%s107 + $0x20] sm:$0xff]
    %v113 = vld [vmem:[#allocation8] sm:$0xff]
    %v114 = vld [vmem:[#allocation8 + $0x8] sm:$0xff]
    %v115 = vld [vmem:[#allocation8 + $0x10] sm:$0xff]
    %v116 = vld [vmem:[#allocation8 + $0x18] sm:$0xff]
    %v117 = vld [vmem:[#allocation8 + $0x20] sm:$0xff]
    %s118 = scalar_lea.vmem [#allocation8], 40
    %v119 = vld [vmem:[%s118] sm:$0xff]
    %v120 = vld [vmem:[%s118 + $0x8] sm:$0xff]
    %v121 = vld [vmem:[%s118 + $0x10] sm:$0xff]
    %v122 = vld [vmem:[%s118 + $0x18] sm:$0xff]
    %v123 = vld [vmem:[%s118 + $0x20] sm:$0xff]
    %s124 = scalar_lea.vmem [#allocation8], 80
    %v125 = vld [vmem:[%s124] sm:$0xff]
    %v126 = vld [vmem:[%s124 + $0x8] sm:$0xff]
    %v127 = vld [vmem:[%s124 + $0x10] sm:$0xff]
    %v128 = vld [vmem:[%s124 + $0x18] sm:$0xff]
    %v129 = vld [vmem:[%s124 + $0x20] sm:$0xff]
    %s130 = scalar_lea.vmem [#allocation8], 120
    %v131 = vld [vmem:[%s130] sm:$0xff]
    %v132 = vld [vmem:[%s130 + $0x8] sm:$0xff]
    %v133 = vld [vmem:[%s130 + $0x10] sm:$0xff]
    %v134 = vld [vmem:[%s130 + $0x18] sm:$0xff]
    %v135 = vld [vmem:[%s130 + $0x20] sm:$0xff]
    %v136 = vmul.f32 %v73, %v73
    %v137 = vmul.f32 %v74, %v74
    %v138 = vmul.f32 %v75, %v75
    %v139 = vmul.f32 %v76, %v76
    %v140 = vmul.f32 %v77, %v77
    %v141 = vld [vmem:[#allocation5] sm:$0xff]
    %v142 = vld [vmem:[#allocation5 + $0x8] sm:$0xff]
    %v143 = vld [vmem:[#allocation5 + $0x10] sm:$0xff]
    %v144 = vld [vmem:[#allocation5 + $0x18] sm:$0xff]
    %v145 = vld [vmem:[#allocation5 + $0x20] sm:$0xff]
    %v146 = vmul.f32 %v141, %v136
    %v147 = vmul.f32 %v142, %v137
    %v148 = vmul.f32 %v143, %v138
    %v149 = vmul.f32 %v144, %v139
    %v150 = vmul.f32 %v145, %v140
    %v151 = vadd.f32 %v113, %v146
    %v152 = vadd.f32 %v114, %v147
    %v153 = vadd.f32 %v115, %v148
    %v154 = vadd.f32 %v116, %v149
    %v155 = vadd.f32 %v117, %v150
    %s156 = scalar_lea.vmem [#allocation5], 840
    %v157 = vld [vmem:[%s156] sm:$0xff]
    %v158 = vld [vmem:[%s156 + $0x8] sm:$0xff]
    %v159 = vld [vmem:[%s156 + $0x10] sm:$0xff]
    %v160 = vld [vmem:[%s156 + $0x18] sm:$0xff]
    %v161 = vld [vmem:[%s156 + $0x20] sm:$0xff]
    %v162 = vmul.f32 %v157, %v136
    %v163 = vmul.f32 %v158, %v137
    %v164 = vmul.f32 %v159, %v138
    %v165 = vmul.f32 %v160, %v139
    %v166 = vmul.f32 %v161, %v140
    %v167 = vadd.f32 %v119, %v162
    %v168 = vadd.f32 %v120, %v163
    %v169 = vadd.f32 %v121, %v164
    %v170 = vadd.f32 %v122, %v165
    %v171 = vadd.f32 %v123, %v166
    %s172 = scalar_lea.vmem [#allocation5], 1680
    %v173 = vld [vmem:[%s172] sm:$0xff]
    %v174 = vld [vmem:[%s172 + $0x8] sm:$0xff]
    %v175 = vld [vmem:[%s172 + $0x10] sm:$0xff]
    %v176 = vld [vmem:[%s172 + $0x18] sm:$0xff]
    %v177 = vld [vmem:[%s172 + $0x20] sm:$0xff]
    %v178 = vmul.f32 %v173, %v136
    %v179 = vmul.f32 %v174, %v137
    %v180 = vmul.f32 %v175, %v138
    %v181 = vmul.f32 %v176, %v139
    %v182 = vmul.f32 %v177, %v140
    %v183 = vadd.f32 %v125, %v178
    %v184 = vadd.f32 %v126, %v179
    %v185 = vadd.f32 %v127, %v180
    %v186 = vadd.f32 %v128, %v181
    %v187 = vadd.f32 %v129, %v182
    %s188 = scalar_lea.vmem [#allocation5], 2520
    %v189 = vld [vmem:[%s188] sm:$0xff]
    %v190 = vld [vmem:[%s188 + $0x8] sm:$0xff]
    %v191 = vld [vmem:[%s188 + $0x10] sm:$0xff]
    %v192 = vld [vmem:[%s188 + $0x18] sm:$0xff]
    %v193 = vld [vmem:[%s188 + $0x20] sm:$0xff]
    %v194 = vmul.f32 %v189, %v136
    %v195 = vmul.f32 %v190, %v137
    %v196 = vmul.f32 %v191, %v138
    %v197 = vmul.f32 %v192, %v139
    %v198 = vmul.f32 %v193, %v140
    %v199 = vadd.f32 %v131, %v194
    %v200 = vadd.f32 %v132, %v195
    %v201 = vadd.f32 %v133, %v196
    %v202 = vadd.f32 %v134, %v197
    %v203 = vadd.f32 %v135, %v198
    %v204 = vmul.f32 %v73, %v80
    %v205 = vmul.f32 %v74, %v81
    %v206 = vmul.f32 %v75, %v82
    %v207 = vmul.f32 %v76, %v83
    %v208 = vmul.f32 %v77, %v84
    %s209 = scalar_lea.vmem [#allocation5], 40
    %v210 = vld [vmem:[%s209] sm:$0xff]
    %v211 = vld [vmem:[%s209 + $0x8] sm:$0xff]
    %v212 = vld [vmem:[%s209 + $0x10] sm:$0xff]
    %v213 = vld [vmem:[%s209 + $0x18] sm:$0xff]
    %v214 = vld [vmem:[%s209 + $0x20] sm:$0xff]
    %v215 = vmul.f32 %v210, %v204
    %v216 = vmul.f32 %v211, %v205
    %v217 = vmul.f32 %v212, %v206
    %v218 = vmul.f32 %v213, %v207
    %v219 = vmul.f32 %v214, %v208
    %v220 = vadd.f32 %v151, %v215
    %v221 = vadd.f32 %v152, %v216
    %v222 = vadd.f32 %v153, %v217
    %v223 = vadd.f32 %v154, %v218
    %v224 = vadd.f32 %v155, %v219
    %s225 = scalar_lea.vmem [#allocation5], 880
    %v226 = vld [vmem:[%s225] sm:$0xff]
    %v227 = vld [vmem:[%s225 + $0x8] sm:$0xff]
    %v228 = vld [vmem:[%s225 + $0x10] sm:$0xff]
    %v229 = vld [vmem:[%s225 + $0x18] sm:$0xff]
    %v230 = vld [vmem:[%s225 + $0x20] sm:$0xff]
    %v231 = vmul.f32 %v226, %v204
    %v232 = vmul.f32 %v227, %v205
    %v233 = vmul.f32 %v228, %v206
    %v234 = vmul.f32 %v229, %v207
    %v235 = vmul.f32 %v230, %v208
    %v236 = vadd.f32 %v167, %v231
    %v237 = vadd.f32 %v168, %v232
    %v238 = vadd.f32 %v169, %v233
    %v239 = vadd.f32 %v170, %v234
    %v240 = vadd.f32 %v171, %v235
    %s241 = scalar_lea.vmem [#allocation5], 1720
    %v242 = vld [vmem:[%s241] sm:$0xff]
    %v243 = vld [vmem:[%s241 + $0x8] sm:$0xff]
    %v244 = vld [vmem:[%s241 + $0x10] sm:$0xff]
    %v245 = vld [vmem:[%s241 + $0x18] sm:$0xff]
    %v246 = vld [vmem:[%s241 + $0x20] sm:$0xff]
    %v247 = vmul.f32 %v242, %v204
    %v248 = vmul.f32 %v243, %v205
    %v249 = vmul.f32 %v244, %v206
    %v250 = vmul.f32 %v245, %v207
    %v251 = vmul.f32 %v246, %v208
    %v252 = vadd.f32 %v183, %v247
    %v253 = vadd.f32 %v184, %v248
    %v254 = vadd.f32 %v185, %v249
    %v255 = vadd.f32 %v186, %v250
    %v256 = vadd.f32 %v187, %v251
    %s257 = scalar_lea.vmem [#allocation5], 2560
    %v258 = vld [vmem:[%s257] sm:$0xff]
    %v259 = vld [vmem:[%s257 + $0x8] sm:$0xff]
    %v260 = vld [vmem:[%s257 + $0x10] sm:$0xff]
    %v261 = vld [vmem:[%s257 + $0x18] sm:$0xff]
    %v262 = vld [vmem:[%s257 + $0x20] sm:$0xff]
    %v263 = vmul.f32 %v258, %v204
    %v264 = vmul.f32 %v259, %v205
    %v265 = vmul.f32 %v260, %v206
    %v266 = vmul.f32 %v261, %v207
    %v267 = vmul.f32 %v262, %v208
    %v268 = vadd.f32 %v199, %v263
    %v269 = vadd.f32 %v200, %v264
    %v270 = vadd.f32 %v201, %v265
    %v271 = vadd.f32 %v202, %v266
    %v272 = vadd.f32 %v203, %v267
    %v273 = vmul.f32 %v73, %v87
    %v274 = vmul.f32 %v74, %v88
    %v275 = vmul.f32 %v75, %v89
    %v276 = vmul.f32 %v76, %v90
    %v277 = vmul.f32 %v77, %v91
    %s278 = scalar_lea.vmem [#allocation5], 80
    %v279 = vld [vmem:[%s278] sm:$0xff]
    %v280 = vld [vmem:[%s278 + $0x8] sm:$0xff]
    %v281 = vld [vmem:[%s278 + $0x10] sm:$0xff]
    %v282 = vld [vmem:[%s278 + $0x18] sm:$0xff]
    %v283 = vld [vmem:[%s278 + $0x20] sm:$0xff]
    %v284 = vmul.f32 %v279, %v273
    %v285 = vmul.f32 %v280, %v274
    %v286 = vmul.f32 %v281, %v275
    %v287 = vmul.f32 %v282, %v276
    %v288 = vmul.f32 %v283, %v277
    %v289 = vadd.f32 %v220, %v284
    %v290 = vadd.f32 %v221, %v285
    %v291 = vadd.f32 %v222, %v286
    %v292 = vadd.f32 %v223, %v287
    %v293 = vadd.f32 %v224, %v288
    %s294 = scalar_lea.vmem [#allocation5], 920
    %v295 = vld [vmem:[%s294] sm:$0xff]
    %v296 = vld [vmem:[%s294 + $0x8] sm:$0xff]
    %v297 = vld [vmem:[%s294 + $0x10] sm:$0xff]
    %v298 = vld [vmem:[%s294 + $0x18] sm:$0xff]
    %v299 = vld [vmem:[%s294 + $0x20] sm:$0xff]
    %v300 = vmul.f32 %v295, %v273
    %v301 = vmul.f32 %v296, %v274
    %v302 = vmul.f32 %v297, %v275
    %v303 = vmul.f32 %v298, %v276
    %v304 = vmul.f32 %v299, %v277
    %v305 = vadd.f32 %v236, %v300
    %v306 = vadd.f32 %v237, %v301
    %v307 = vadd.f32 %v238, %v302
    %v308 = vadd.f32 %v239, %v303
    %v309 = vadd.f32 %v240, %v304
    %s310 = scalar_lea.vmem [#allocation5], 1760
    %v311 = vld [vmem:[%s310] sm:$0xff]
    %v312 = vld [vmem:[%s310 + $0x8] sm:$0xff]
    %v313 = vld [vmem:[%s310 + $0x10] sm:$0xff]
    %v314 = vld [vmem:[%s310 + $0x18] sm:$0xff]
    %v315 = vld [vmem:[%s310 + $0x20] sm:$0xff]
    %v316 = vmul.f32 %v311, %v273
    %v317 = vmul.f32 %v312, %v274
    %v318 = vmul.f32 %v313, %v275
    %v319 = vmul.f32 %v314, %v276
    %v320 = vmul.f32 %v315, %v277
    %v321 = vadd.f32 %v252, %v316
    %v322 = vadd.f32 %v253, %v317
    %v323 = vadd.f32 %v254, %v318
    %v324 = vadd.f32 %v255, %v319
    %v325 = vadd.f32 %v256, %v320
    %s326 = scalar_lea.vmem [#allocation5], 2600
    %v327 = vld [vmem:[%s326] sm:$0xff]
    %v328 = vld [vmem:[%s326 + $0x8] sm:$0xff]
    %v329 = vld [vmem:[%s326 + $0x10] sm:$0xff]
    %v330 = vld [vmem:[%s326 + $0x18] sm:$0xff]
    %v331 = vld [vmem:[%s326 + $0x20] sm:$0xff]
    %v332 = vmul.f32 %v327, %v273
    %v333 = vmul.f32 %v328, %v274
    %v334 = vmul.f32 %v329, %v275
    %v335 = vmul.f32 %v330, %v276
    %v336 = vmul.f32 %v331, %v277
    %v337 = vadd.f32 %v268, %v332
    %v338 = vadd.f32 %v269, %v333
    %v339 = vadd.f32 %v270, %v334
    %v340 = vadd.f32 %v271, %v335
    %v341 = vadd.f32 %v272, %v336
    %v342 = vmul.f32 %v73, %v94
    %v343 = vmul.f32 %v74, %v95
    %v344 = vmul.f32 %v75, %v96
    %v345 = vmul.f32 %v76, %v97
    %v346 = vmul.f32 %v77, %v98
    %s347 = scalar_lea.vmem [#allocation5], 120
    %v348 = vld [vmem:[%s347] sm:$0xff]
    %v349 = vld [vmem:[%s347 + $0x8] sm:$0xff]
    %v350 = vld [vmem:[%s347 + $0x10] sm:$0xff]
    %v351 = vld [vmem:[%s347 + $0x18] sm:$0xff]
    %v352 = vld [vmem:[%s347 + $0x20] sm:$0xff]
    %v353 = vmul.f32 %v348, %v342
    %v354 = vmul.f32 %v349, %v343
    %v355 = vmul.f32 %v350, %v344
    %v356 = vmul.f32 %v351, %v345
    %v357 = vmul.f32 %v352, %v346
    %v358 = vadd.f32 %v289, %v353
    %v359 = vadd.f32 %v290, %v354
    %v360 = vadd.f32 %v291, %v355
    %v361 = vadd.f32 %v292, %v356
    %v362 = vadd.f32 %v293, %v357
    %s363 = scalar_lea.vmem [#allocation5], 960
    %v364 = vld [vmem:[%s363] sm:$0xff]
    %v365 = vld [vmem:[%s363 + $0x8] sm:$0xff]
    %v366 = vld [vmem:[%s363 + $0x10] sm:$0xff]
    %v367 = vld [vmem:[%s363 + $0x18] sm:$0xff]
    %v368 = vld [vmem:[%s363 + $0x20] sm:$0xff]
    %v369 = vmul.f32 %v364, %v342
    %v370 = vmul.f32 %v365, %v343
    %v371 = vmul.f32 %v366, %v344
    %v372 = vmul.f32 %v367, %v345
    %v373 = vmul.f32 %v368, %v346
    %v374 = vadd.f32 %v305, %v369
    %v375 = vadd.f32 %v306, %v370
    %v376 = vadd.f32 %v307, %v371
    %v377 = vadd.f32 %v308, %v372
    %v378 = vadd.f32 %v309, %v373
    %s379 = scalar_lea.vmem [#allocation5], 1800
    %v380 = vld [vmem:[%s379] sm:$0xff]
    %v381 = vld [vmem:[%s379 + $0x8] sm:$0xff]
    %v382 = vld [vmem:[%s379 + $0x10] sm:$0xff]
    %v383 = vld [vmem:[%s379 + $0x18] sm:$0xff]
    %v384 = vld [vmem:[%s379 + $0x20] sm:$0xff]
    %v385 = vmul.f32 %v380, %v342
    %v386 = vmul.f32 %v381, %v343
    %v387 = vmul.f32 %v382, %v344
    %v388 = vmul.f32 %v383, %v345
    %v389 = vmul.f32 %v384, %v346
    %v390 = vadd.f32 %v321, %v385
    %v391 = vadd.f32 %v322, %v386
    %v392 = vadd.f32 %v323, %v387
    %v393 = vadd.f32 %v324, %v388
    %v394 = vadd.f32 %v325, %v389
    %s395 = scalar_lea.vmem [#allocation5], 2640
    %v396 = vld [vmem:[%s395] sm:$0xff]
    %v397 = vld [vmem:[%s395 + $0x8] sm:$0xff]
    %v398 = vld [vmem:[%s395 + $0x10] sm:$0xff]
    %v399 = vld [vmem:[%s395 + $0x18] sm:$0xff]
    %v400 = vld [vmem:[%s395 + $0x20] sm:$0xff]
    %v401 = vmul.f32 %v396, %v342
    %v402 = vmul.f32 %v397, %v343
    %v403 = vmul.f32 %v398, %v344
    %v404 = vmul.f32 %v399, %v345
    %v405 = vmul.f32 %v400, %v346
    %v406 = vadd.f32 %v337, %v401
    %v407 = vadd.f32 %v338, %v402
    %v408 = vadd.f32 %v339, %v403
    %v409 = vadd.f32 %v340, %v404
    %v410 = vadd.f32 %v341, %v405
    %v411 = vmul.f32 %v73, %v101
    %v412 = vmul.f32 %v74, %v102
    %v413 = vmul.f32 %v75, %v103
    %v414 = vmul.f32 %v76, %v104
    %v415 = vmul.f32 %v77, %v105
    %s416 = scalar_lea.vmem [#allocation5], 160
    %v417 = vld [vmem:[%s416] sm:$0xff]
    %v418 = vld [vmem:[%s416 + $0x8] sm:$0xff]
    %v419 = vld [vmem:[%s416 + $0x10] sm:$0xff]
    %v420 = vld [vmem:[%s416 + $0x18] sm:$0xff]
    %v421 = vld [vmem:[%s416 + $0x20] sm:$0xff]
    %v422 = vmul.f32 %v417, %v411
    %v423 = vmul.f32 %v418, %v412
    %v424 = vmul.f32 %v419, %v413
    %v425 = vmul.f32 %v420, %v414
    %v426 = vmul.f32 %v421, %v415
    %v427 = vadd.f32 %v358, %v422
    %v428 = vadd.f32 %v359, %v423
    %v429 = vadd.f32 %v360, %v424
    %v430 = vadd.f32 %v361, %v425
    %v431 = vadd.f32 %v362, %v426
    %s432 = scalar_lea.vmem [#allocation5], 1000
    %v433 = vld [vmem:[%s432] sm:$0xff]
    %v434 = vld [vmem:[%s432 + $0x8] sm:$0xff]
    %v435 = vld [vmem:[%s432 + $0x10] sm:$0xff]
    %v436 = vld [vmem:[%s432 + $0x18] sm:$0xff]
    %v437 = vld [vmem:[%s432 + $0x20] sm:$0xff]
    %v438 = vmul.f32 %v433, %v411
    %v439 = vmul.f32 %v434, %v412
    %v440 = vmul.f32 %v435, %v413
    %v441 = vmul.f32 %v436, %v414
    %v442 = vmul.f32 %v437, %v415
    %v443 = vadd.f32 %v374, %v438
    %v444 = vadd.f32 %v375, %v439
    %v445 = vadd.f32 %v376, %v440
    %v446 = vadd.f32 %v377, %v441
    %v447 = vadd.f32 %v378, %v442
    %s448 = scalar_lea.vmem [#allocation5], 1840
    %v449 = vld [vmem:[%s448] sm:$0xff]
    %v450 = vld [vmem:[%s448 + $0x8] sm:$0xff]
    %v451 = vld [vmem:[%s448 + $0x10] sm:$0xff]
    %v452 = vld [vmem:[%s448 + $0x18] sm:$0xff]
    %v453 = vld [vmem:[%s448 + $0x20] sm:$0xff]
    %v454 = vmul.f32 %v449, %v411
    %v455 = vmul.f32 %v450, %v412
    %v456 = vmul.f32 %v451, %v413
    %v457 = vmul.f32 %v452, %v414
    %v458 = vmul.f32 %v453, %v415
    %v459 = vadd.f32 %v390, %v454
    %v460 = vadd.f32 %v391, %v455
    %v461 = vadd.f32 %v392, %v456
    %v462 = vadd.f32 %v393, %v457
    %v463 = vadd.f32 %v394, %v458
    %s464 = scalar_lea.vmem [#allocation5], 2680
    %v465 = vld [vmem:[%s464] sm:$0xff]
    %v466 = vld [vmem:[%s464 + $0x8] sm:$0xff]
    %v467 = vld [vmem:[%s464 + $0x10] sm:$0xff]
    %v468 = vld [vmem:[%s464 + $0x18] sm:$0xff]
    %v469 = vld [vmem:[%s464 + $0x20] sm:$0xff]
    %v470 = vmul.f32 %v465, %v411
    %v471 = vmul.f32 %v466, %v412
    %v472 = vmul.f32 %v467, %v413
    %v473 = vmul.f32 %v468, %v414
    %v474 = vmul.f32 %v469, %v415
    %v475 = vadd.f32 %v406, %v470
    %v476 = vadd.f32 %v407, %v471
    %v477 = vadd.f32 %v408, %v472
    %v478 = vadd.f32 %v409, %v473
    %v479 = vadd.f32 %v410, %v474
    %v480 = vmul.f32 %v73, %v108
    %v481 = vmul.f32 %v74, %v109
    %v482 = vmul.f32 %v75, %v110
    %v483 = vmul.f32 %v76, %v111
    %v484 = vmul.f32 %v77, %v112
    %s485 = scalar_lea.vmem [#allocation5], 200
    %v486 = vld [vmem:[%s485] sm:$0xff]
    %v487 = vld [vmem:[%s485 + $0x8] sm:$0xff]
    %v488 = vld [vmem:[%s485 + $0x10] sm:$0xff]
    %v489 = vld [vmem:[%s485 + $0x18] sm:$0xff]
    %v490 = vld [vmem:[%s485 + $0x20] sm:$0xff]
    %v491 = vmul.f32 %v486, %v480
    %v492 = vmul.f32 %v487, %v481
    %v493 = vmul.f32 %v488, %v482
    %v494 = vmul.f32 %v489, %v483
    %v495 = vmul.f32 %v490, %v484
    %v496 = vadd.f32 %v427, %v491
    %v497 = vadd.f32 %v428, %v492
    %v498 = vadd.f32 %v429, %v493
    %v499 = vadd.f32 %v430, %v494
    %v500 = vadd.f32 %v431, %v495
    %s501 = scalar_lea.vmem [#allocation5], 1040
    %v502 = vld [vmem:[%s501] sm:$0xff]
    %v503 = vld [vmem:[%s501 + $0x8] sm:$0xff]
    %v504 = vld [vmem:[%s501 + $0x10] sm:$0xff]
    %v505 = vld [vmem:[%s501 + $0x18] sm:$0xff]
    %v506 = vld [vmem:[%s501 + $0x20] sm:$0xff]
    %v507 = vmul.f32 %v502, %v480
    %v508 = vmul.f32 %v503, %v481
    %v509 = vmul.f32 %v504, %v482
    %v510 = vmul.f32 %v505, %v483
    %v511 = vmul.f32 %v506, %v484
    %v512 = vadd.f32 %v443, %v507
    %v513 = vadd.f32 %v444, %v508
    %v514 = vadd.f32 %v445, %v509
    %v515 = vadd.f32 %v446, %v510
    %v516 = vadd.f32 %v447, %v511
    %s517 = scalar_lea.vmem [#allocation5], 1880
    %v518 = vld [vmem:[%s517] sm:$0xff]
    %v519 = vld [vmem:[%s517 + $0x8] sm:$0xff]
    %v520 = vld [vmem:[%s517 + $0x10] sm:$0xff]
    %v521 = vld [vmem:[%s517 + $0x18] sm:$0xff]
    %v522 = vld [vmem:[%s517 + $0x20] sm:$0xff]
    %v523 = vmul.f32 %v518, %v480
    %v524 = vmul.f32 %v519, %v481
    %v525 = vmul.f32 %v520, %v482
    %v526 = vmul.f32 %v521, %v483
    %v527 = vmul.f32 %v522, %v484
    %v528 = vadd.f32 %v459, %v523
    %v529 = vadd.f32 %v460, %v524
    %v530 = vadd.f32 %v461, %v525
    %v531 = vadd.f32 %v462, %v526
    %v532 = vadd.f32 %v463, %v527
    %s533 = scalar_lea.vmem [#allocation5], 2720
    %v534 = vld [vmem:[%s533] sm:$0xff]
    %v535 = vld [vmem:[%s533 + $0x8] sm:$0xff]
    %v536 = vld [vmem:[%s533 + $0x10] sm:$0xff]
    %v537 = vld [vmem:[%s533 + $0x18] sm:$0xff]
    %v538 = vld [vmem:[%s533 + $0x20] sm:$0xff]
    %v539 = vmul.f32 %v534, %v480
    %v540 = vmul.f32 %v535, %v481
    %v541 = vmul.f32 %v536, %v482
    %v542 = vmul.f32 %v537, %v483
    %v543 = vmul.f32 %v538, %v484
    %v544 = vadd.f32 %v475, %v539
    %v545 = vadd.f32 %v476, %v540
    %v546 = vadd.f32 %v477, %v541
    %v547 = vadd.f32 %v478, %v542
    %v548 = vadd.f32 %v479, %v543
    %v549 = vmul.f32 %v80, %v80
    %v550 = vmul.f32 %v81, %v81
    %v551 = vmul.f32 %v82, %v82
    %v552 = vmul.f32 %v83, %v83
    %v553 = vmul.f32 %v84, %v84
    %s554 = scalar_lea.vmem [#allocation5], 240
    %v555 = vld [vmem:[%s554] sm:$0xff]
    %v556 = vld [vmem:[%s554 + $0x8] sm:$0xff]
    %v557 = vld [vmem:[%s554 + $0x10] sm:$0xff]
    %v558 = vld [vmem:[%s554 + $0x18] sm:$0xff]
    %v559 = vld [vmem:[%s554 + $0x20] sm:$0xff]
    %v560 = vmul.f32 %v555, %v549
    %v561 = vmul.f32 %v556, %v550
    %v562 = vmul.f32 %v557, %v551
    %v563 = vmul.f32 %v558, %v552
    %v564 = vmul.f32 %v559, %v553
    %v565 = vadd.f32 %v496, %v560
    %v566 = vadd.f32 %v497, %v561
    %v567 = vadd.f32 %v498, %v562
    %v568 = vadd.f32 %v499, %v563
    %v569 = vadd.f32 %v500, %v564
    %s570 = scalar_lea.vmem [#allocation5], 1080
    %v571 = vld [vmem:[%s570] sm:$0xff]
    %v572 = vld [vmem:[%s570 + $0x8] sm:$0xff]
    %v573 = vld [vmem:[%s570 + $0x10] sm:$0xff]
    %v574 = vld [vmem:[%s570 + $0x18] sm:$0xff]
    %v575 = vld [vmem:[%s570 + $0x20] sm:$0xff]
    %v576 = vmul.f32 %v571, %v549
    %v577 = vmul.f32 %v572, %v550
    %v578 = vmul.f32 %v573, %v551
    %v579 = vmul.f32 %v574, %v552
    %v580 = vmul.f32 %v575, %v553
    %v581 = vadd.f32 %v512, %v576
    %v582 = vadd.f32 %v513, %v577
    %v583 = vadd.f32 %v514, %v578
    %v584 = vadd.f32 %v515, %v579
    %v585 = vadd.f32 %v516, %v580
    %s586 = scalar_lea.vmem [#allocation5], 1920
    %v587 = vld [vmem:[%s586] sm:$0xff]
    %v588 = vld [vmem:[%s586 + $0x8] sm:$0xff]
    %v589 = vld [vmem:[%s586 + $0x10] sm:$0xff]
    %v590 = vld [vmem:[%s586 + $0x18] sm:$0xff]
    %v591 = vld [vmem:[%s586 + $0x20] sm:$0xff]
    %v592 = vmul.f32 %v587, %v549
    %v593 = vmul.f32 %v588, %v550
    %v594 = vmul.f32 %v589, %v551
    %v595 = vmul.f32 %v590, %v552
    %v596 = vmul.f32 %v591, %v553
    %v597 = vadd.f32 %v528, %v592
    %v598 = vadd.f32 %v529, %v593
    %v599 = vadd.f32 %v530, %v594
    %v600 = vadd.f32 %v531, %v595
    %v601 = vadd.f32 %v532, %v596
    %s602 = scalar_lea.vmem [#allocation5], 2760
    %v603 = vld [vmem:[%s602] sm:$0xff]
    %v604 = vld [vmem:[%s602 + $0x8] sm:$0xff]
    %v605 = vld [vmem:[%s602 + $0x10] sm:$0xff]
    %v606 = vld [vmem:[%s602 + $0x18] sm:$0xff]
    %v607 = vld [vmem:[%s602 + $0x20] sm:$0xff]
    %v608 = vmul.f32 %v603, %v549
    %v609 = vmul.f32 %v604, %v550
    %v610 = vmul.f32 %v605, %v551
    %v611 = vmul.f32 %v606, %v552
    %v612 = vmul.f32 %v607, %v553
    %v613 = vadd.f32 %v544, %v608
    %v614 = vadd.f32 %v545, %v609
    %v615 = vadd.f32 %v546, %v610
    %v616 = vadd.f32 %v547, %v611
    %v617 = vadd.f32 %v548, %v612
    %v618 = vmul.f32 %v80, %v87
    %v619 = vmul.f32 %v81, %v88
    %v620 = vmul.f32 %v82, %v89
    %v621 = vmul.f32 %v83, %v90
    %v622 = vmul.f32 %v84, %v91
    %s623 = scalar_lea.vmem [#allocation5], 280
    %v624 = vld [vmem:[%s623] sm:$0xff]
    %v625 = vld [vmem:[%s623 + $0x8] sm:$0xff]
    %v626 = vld [vmem:[%s623 + $0x10] sm:$0xff]
    %v627 = vld [vmem:[%s623 + $0x18] sm:$0xff]
    %v628 = vld [vmem:[%s623 + $0x20] sm:$0xff]
    %v629 = vmul.f32 %v624, %v618
    %v630 = vmul.f32 %v625, %v619
    %v631 = vmul.f32 %v626, %v620
    %v632 = vmul.f32 %v627, %v621
    %v633 = vmul.f32 %v628, %v622
    %v634 = vadd.f32 %v565, %v629
    %v635 = vadd.f32 %v566, %v630
    %v636 = vadd.f32 %v567, %v631
    %v637 = vadd.f32 %v568, %v632
    %v638 = vadd.f32 %v569, %v633
    %s639 = scalar_lea.vmem [#allocation5], 1120
    %v640 = vld [vmem:[%s639] sm:$0xff]
    %v641 = vld [vmem:[%s639 + $0x8] sm:$0xff]
    %v642 = vld [vmem:[%s639 + $0x10] sm:$0xff]
    %v643 = vld [vmem:[%s639 + $0x18] sm:$0xff]
    %v644 = vld [vmem:[%s639 + $0x20] sm:$0xff]
    %v645 = vmul.f32 %v640, %v618
    %v646 = vmul.f32 %v641, %v619
    %v647 = vmul.f32 %v642, %v620
    %v648 = vmul.f32 %v643, %v621
    %v649 = vmul.f32 %v644, %v622
    %v650 = vadd.f32 %v581, %v645
    %v651 = vadd.f32 %v582, %v646
    %v652 = vadd.f32 %v583, %v647
    %v653 = vadd.f32 %v584, %v648
    %v654 = vadd.f32 %v585, %v649
    %s655 = scalar_lea.vmem [#allocation5], 1960
    %v656 = vld [vmem:[%s655] sm:$0xff]
    %v657 = vld [vmem:[%s655 + $0x8] sm:$0xff]
    %v658 = vld [vmem:[%s655 + $0x10] sm:$0xff]
    %v659 = vld [vmem:[%s655 + $0x18] sm:$0xff]
    %v660 = vld [vmem:[%s655 + $0x20] sm:$0xff]
    %v661 = vmul.f32 %v656, %v618
    %v662 = vmul.f32 %v657, %v619
    %v663 = vmul.f32 %v658, %v620
    %v664 = vmul.f32 %v659, %v621
    %v665 = vmul.f32 %v660, %v622
    %v666 = vadd.f32 %v597, %v661
    %v667 = vadd.f32 %v598, %v662
    %v668 = vadd.f32 %v599, %v663
    %v669 = vadd.f32 %v600, %v664
    %v670 = vadd.f32 %v601, %v665
    %s671 = scalar_lea.vmem [#allocation5], 2800
    %v672 = vld [vmem:[%s671] sm:$0xff]
    %v673 = vld [vmem:[%s671 + $0x8] sm:$0xff]
    %v674 = vld [vmem:[%s671 + $0x10] sm:$0xff]
    %v675 = vld [vmem:[%s671 + $0x18] sm:$0xff]
    %v676 = vld [vmem:[%s671 + $0x20] sm:$0xff]
    %v677 = vmul.f32 %v672, %v618
    %v678 = vmul.f32 %v673, %v619
    %v679 = vmul.f32 %v674, %v620
    %v680 = vmul.f32 %v675, %v621
    %v681 = vmul.f32 %v676, %v622
    %v682 = vadd.f32 %v613, %v677
    %v683 = vadd.f32 %v614, %v678
    %v684 = vadd.f32 %v615, %v679
    %v685 = vadd.f32 %v616, %v680
    %v686 = vadd.f32 %v617, %v681
    %v687 = vmul.f32 %v80, %v94
    %v688 = vmul.f32 %v81, %v95
    %v689 = vmul.f32 %v82, %v96
    %v690 = vmul.f32 %v83, %v97
    %v691 = vmul.f32 %v84, %v98
    %s692 = scalar_lea.vmem [#allocation5], 320
    %v693 = vld [vmem:[%s692] sm:$0xff]
    %v694 = vld [vmem:[%s692 + $0x8] sm:$0xff]
    %v695 = vld [vmem:[%s692 + $0x10] sm:$0xff]
    %v696 = vld [vmem:[%s692 + $0x18] sm:$0xff]
    %v697 = vld [vmem:[%s692 + $0x20] sm:$0xff]
    %v698 = vmul.f32 %v693, %v687
    %v699 = vmul.f32 %v694, %v688
    %v700 = vmul.f32 %v695, %v689
    %v701 = vmul.f32 %v696, %v690
    %v702 = vmul.f32 %v697, %v691
    %v703 = vadd.f32 %v634, %v698
    %v704 = vadd.f32 %v635, %v699
    %v705 = vadd.f32 %v636, %v700
    %v706 = vadd.f32 %v637, %v701
    %v707 = vadd.f32 %v638, %v702
    %s708 = scalar_lea.vmem [#allocation5], 1160
    %v709 = vld [vmem:[%s708] sm:$0xff]
    %v710 = vld [vmem:[%s708 + $0x8] sm:$0xff]
    %v711 = vld [vmem:[%s708 + $0x10] sm:$0xff]
    %v712 = vld [vmem:[%s708 + $0x18] sm:$0xff]
    %v713 = vld [vmem:[%s708 + $0x20] sm:$0xff]
    %v714 = vmul.f32 %v709, %v687
    %v715 = vmul.f32 %v710, %v688
    %v716 = vmul.f32 %v711, %v689
    %v717 = vmul.f32 %v712, %v690
    %v718 = vmul.f32 %v713, %v691
    %v719 = vadd.f32 %v650, %v714
    %v720 = vadd.f32 %v651, %v715
    %v721 = vadd.f32 %v652, %v716
    %v722 = vadd.f32 %v653, %v717
    %v723 = vadd.f32 %v654, %v718
    %s724 = scalar_lea.vmem [#allocation5], 2000
    %v725 = vld [vmem:[%s724] sm:$0xff]
    %v726 = vld [vmem:[%s724 + $0x8] sm:$0xff]
    %v727 = vld [vmem:[%s724 + $0x10] sm:$0xff]
    %v728 = vld [vmem:[%s724 + $0x18] sm:$0xff]
    %v729 = vld [vmem:[%s724 + $0x20] sm:$0xff]
    %v730 = vmul.f32 %v725, %v687
    %v731 = vmul.f32 %v726, %v688
    %v732 = vmul.f32 %v727, %v689
    %v733 = vmul.f32 %v728, %v690
    %v734 = vmul.f32 %v729, %v691
    %v735 = vadd.f32 %v666, %v730
    %v736 = vadd.f32 %v667, %v731
    %v737 = vadd.f32 %v668, %v732
    %v738 = vadd.f32 %v669, %v733
    %v739 = vadd.f32 %v670, %v734
    %s740 = scalar_lea.vmem [#allocation5], 2840
    %v741 = vld [vmem:[%s740] sm:$0xff]
    %v742 = vld [vmem:[%s740 + $0x8] sm:$0xff]
    %v743 = vld [vmem:[%s740 + $0x10] sm:$0xff]
    %v744 = vld [vmem:[%s740 + $0x18] sm:$0xff]
    %v745 = vld [vmem:[%s740 + $0x20] sm:$0xff]
    %v746 = vmul.f32 %v741, %v687
    %v747 = vmul.f32 %v742, %v688
    %v748 = vmul.f32 %v743, %v689
    %v749 = vmul.f32 %v744, %v690
    %v750 = vmul.f32 %v745, %v691
    %v751 = vadd.f32 %v682, %v746
    %v752 = vadd.f32 %v683, %v747
    %v753 = vadd.f32 %v684, %v748
    %v754 = vadd.f32 %v685, %v749
    %v755 = vadd.f32 %v686, %v750
    %v756 = vmul.f32 %v80, %v101
    %v757 = vmul.f32 %v81, %v102
    %v758 = vmul.f32 %v82, %v103
    %v759 = vmul.f32 %v83, %v104
    %v760 = vmul.f32 %v84, %v105
    %s761 = scalar_lea.vmem [#allocation5], 360
    %v762 = vld [vmem:[%s761] sm:$0xff]
    %v763 = vld [vmem:[%s761 + $0x8] sm:$0xff]
    %v764 = vld [vmem:[%s761 + $0x10] sm:$0xff]
    %v765 = vld [vmem:[%s761 + $0x18] sm:$0xff]
    %v766 = vld [vmem:[%s761 + $0x20] sm:$0xff]
    %v767 = vmul.f32 %v762, %v756
    %v768 = vmul.f32 %v763, %v757
    %v769 = vmul.f32 %v764, %v758
    %v770 = vmul.f32 %v765, %v759
    %v771 = vmul.f32 %v766, %v760
    %v772 = vadd.f32 %v703, %v767
    %v773 = vadd.f32 %v704, %v768
    %v774 = vadd.f32 %v705, %v769
    %v775 = vadd.f32 %v706, %v770
    %v776 = vadd.f32 %v707, %v771
    %s777 = scalar_lea.vmem [#allocation5], 1200
    %v778 = vld [vmem:[%s777] sm:$0xff]
    %v779 = vld [vmem:[%s777 + $0x8] sm:$0xff]
    %v780 = vld [vmem:[%s777 + $0x10] sm:$0xff]
    %v781 = vld [vmem:[%s777 + $0x18] sm:$0xff]
    %v782 = vld [vmem:[%s777 + $0x20] sm:$0xff]
    %v783 = vmul.f32 %v778, %v756
    %v784 = vmul.f32 %v779, %v757
    %v785 = vmul.f32 %v780, %v758
    %v786 = vmul.f32 %v781, %v759
    %v787 = vmul.f32 %v782, %v760
    %v788 = vadd.f32 %v719, %v783
    %v789 = vadd.f32 %v720, %v784
    %v790 = vadd.f32 %v721, %v785
    %v791 = vadd.f32 %v722, %v786
    %v792 = vadd.f32 %v723, %v787
    %s793 = scalar_lea.vmem [#allocation5], 2040
    %v794 = vld [vmem:[%s793] sm:$0xff]
    %v795 = vld [vmem:[%s793 + $0x8] sm:$0xff]
    %v796 = vld [vmem:[%s793 + $0x10] sm:$0xff]
    %v797 = vld [vmem:[%s793 + $0x18] sm:$0xff]
    %v798 = vld [vmem:[%s793 + $0x20] sm:$0xff]
    %v799 = vmul.f32 %v794, %v756
    %v800 = vmul.f32 %v795, %v757
    %v801 = vmul.f32 %v796, %v758
    %v802 = vmul.f32 %v797, %v759
    %v803 = vmul.f32 %v798, %v760
    %v804 = vadd.f32 %v735, %v799
    %v805 = vadd.f32 %v736, %v800
    %v806 = vadd.f32 %v737, %v801
    %v807 = vadd.f32 %v738, %v802
    %v808 = vadd.f32 %v739, %v803
    %s809 = scalar_lea.vmem [#allocation5], 2880
    %v810 = vld [vmem:[%s809] sm:$0xff]
    %v811 = vld [vmem:[%s809 + $0x8] sm:$0xff]
    %v812 = vld [vmem:[%s809 + $0x10] sm:$0xff]
    %v813 = vld [vmem:[%s809 + $0x18] sm:$0xff]
    %v814 = vld [vmem:[%s809 + $0x20] sm:$0xff]
    %v815 = vmul.f32 %v810, %v756
    %v816 = vmul.f32 %v811, %v757
    %v817 = vmul.f32 %v812, %v758
    %v818 = vmul.f32 %v813, %v759
    %v819 = vmul.f32 %v814, %v760
    %v820 = vadd.f32 %v751, %v815
    %v821 = vadd.f32 %v752, %v816
    %v822 = vadd.f32 %v753, %v817
    %v823 = vadd.f32 %v754, %v818
    %v824 = vadd.f32 %v755, %v819
    %v825 = vmul.f32 %v80, %v108
    %v826 = vmul.f32 %v81, %v109
    %v827 = vmul.f32 %v82, %v110
    %v828 = vmul.f32 %v83, %v111
    %v829 = vmul.f32 %v84, %v112
    %s830 = scalar_lea.vmem [#allocation5], 400
    %v831 = vld [vmem:[%s830] sm:$0xff]
    %v832 = vld [vmem:[%s830 + $0x8] sm:$0xff]
    %v833 = vld [vmem:[%s830 + $0x10] sm:$0xff]
    %v834 = vld [vmem:[%s830 + $0x18] sm:$0xff]
    %v835 = vld [vmem:[%s830 + $0x20] sm:$0xff]
    %v836 = vmul.f32 %v831, %v825
    %v837 = vmul.f32 %v832, %v826
    %v838 = vmul.f32 %v833, %v827
    %v839 = vmul.f32 %v834, %v828
    %v840 = vmul.f32 %v835, %v829
    %v841 = vadd.f32 %v772, %v836
    %v842 = vadd.f32 %v773, %v837
    %v843 = vadd.f32 %v774, %v838
    %v844 = vadd.f32 %v775, %v839
    %v845 = vadd.f32 %v776, %v840
    %s846 = scalar_lea.vmem [#allocation5], 1240
    %v847 = vld [vmem:[%s846] sm:$0xff]
    %v848 = vld [vmem:[%s846 + $0x8] sm:$0xff]
    %v849 = vld [vmem:[%s846 + $0x10] sm:$0xff]
    %v850 = vld [vmem:[%s846 + $0x18] sm:$0xff]
    %v851 = vld [vmem:[%s846 + $0x20] sm:$0xff]
    %v852 = vmul.f32 %v847, %v825
    %v853 = vmul.f32 %v848, %v826
    %v854 = vmul.f32 %v849, %v827
    %v855 = vmul.f32 %v850, %v828
    %v856 = vmul.f32 %v851, %v829
    %v857 = vadd.f32 %v788, %v852
    %v858 = vadd.f32 %v789, %v853
    %v859 = vadd.f32 %v790, %v854
    %v860 = vadd.f32 %v791, %v855
    %v861 = vadd.f32 %v792, %v856
    %s862 = scalar_lea.vmem [#allocation5], 2080
    %v863 = vld [vmem:[%s862] sm:$0xff]
    %v864 = vld [vmem:[%s862 + $0x8] sm:$0xff]
    %v865 = vld [vmem:[%s862 + $0x10] sm:$0xff]
    %v866 = vld [vmem:[%s862 + $0x18] sm:$0xff]
    %v867 = vld [vmem:[%s862 + $0x20] sm:$0xff]
    %v868 = vmul.f32 %v863, %v825
    %v869 = vmul.f32 %v864, %v826
    %v870 = vmul.f32 %v865, %v827
    %v871 = vmul.f32 %v866, %v828
    %v872 = vmul.f32 %v867, %v829
    %v873 = vadd.f32 %v804, %v868
    %v874 = vadd.f32 %v805, %v869
    %v875 = vadd.f32 %v806, %v870
    %v876 = vadd.f32 %v807, %v871
    %v877 = vadd.f32 %v808, %v872
    %s878 = scalar_lea.vmem [#allocation5], 2920
    %v879 = vld [vmem:[%s878] sm:$0xff]
    %v880 = vld [vmem:[%s878 + $0x8] sm:$0xff]
    %v881 = vld [vmem:[%s878 + $0x10] sm:$0xff]
    %v882 = vld [vmem:[%s878 + $0x18] sm:$0xff]
    %v883 = vld [vmem:[%s878 + $0x20] sm:$0xff]
    %v884 = vmul.f32 %v879, %v825
    %v885 = vmul.f32 %v880, %v826
    %v886 = vmul.f32 %v881, %v827
    %v887 = vmul.f32 %v882, %v828
    %v888 = vmul.f32 %v883, %v829
    %v889 = vadd.f32 %v820, %v884
    %v890 = vadd.f32 %v821, %v885
    %v891 = vadd.f32 %v822, %v886
    %v892 = vadd.f32 %v823, %v887
    %v893 = vadd.f32 %v824, %v888
    %v894 = vmul.f32 %v87, %v87
    %v895 = vmul.f32 %v88, %v88
    %v896 = vmul.f32 %v89, %v89
    %v897 = vmul.f32 %v90, %v90
    %v898 = vmul.f32 %v91, %v91
    %s899 = scalar_lea.vmem [#allocation5], 440
    %v900 = vld [vmem:[%s899] sm:$0xff]
    %v901 = vld [vmem:[%s899 + $0x8] sm:$0xff]
    %v902 = vld [vmem:[%s899 + $0x10] sm:$0xff]
    %v903 = vld [vmem:[%s899 + $0x18] sm:$0xff]
    %v904 = vld [vmem:[%s899 + $0x20] sm:$0xff]
    %v905 = vmul.f32 %v900, %v894
    %v906 = vmul.f32 %v901, %v895
    %v907 = vmul.f32 %v902, %v896
    %v908 = vmul.f32 %v903, %v897
    %v909 = vmul.f32 %v904, %v898
    %v910 = vadd.f32 %v841, %v905
    %v911 = vadd.f32 %v842, %v906
    %v912 = vadd.f32 %v843, %v907
    %v913 = vadd.f32 %v844, %v908
    %v914 = vadd.f32 %v845, %v909
    %s915 = scalar_lea.vmem [#allocation5], 1280
    %v916 = vld [vmem:[%s915] sm:$0xff]
    %v917 = vld [vmem:[%s915 + $0x8] sm:$0xff]
    %v918 = vld [vmem:[%s915 + $0x10] sm:$0xff]
    %v919 = vld [vmem:[%s915 + $0x18] sm:$0xff]
    %v920 = vld [vmem:[%s915 + $0x20] sm:$0xff]
    %v921 = vmul.f32 %v916, %v894
    %v922 = vmul.f32 %v917, %v895
    %v923 = vmul.f32 %v918, %v896
    %v924 = vmul.f32 %v919, %v897
    %v925 = vmul.f32 %v920, %v898
    %v926 = vadd.f32 %v857, %v921
    %v927 = vadd.f32 %v858, %v922
    %v928 = vadd.f32 %v859, %v923
    %v929 = vadd.f32 %v860, %v924
    %v930 = vadd.f32 %v861, %v925
    %s931 = scalar_lea.vmem [#allocation5], 2120
    %v932 = vld [vmem:[%s931] sm:$0xff]
    %v933 = vld [vmem:[%s931 + $0x8] sm:$0xff]
    %v934 = vld [vmem:[%s931 + $0x10] sm:$0xff]
    %v935 = vld [vmem:[%s931 + $0x18] sm:$0xff]
    %v936 = vld [vmem:[%s931 + $0x20] sm:$0xff]
    %v937 = vmul.f32 %v932, %v894
    %v938 = vmul.f32 %v933, %v895
    %v939 = vmul.f32 %v934, %v896
    %v940 = vmul.f32 %v935, %v897
    %v941 = vmul.f32 %v936, %v898
    %v942 = vadd.f32 %v873, %v937
    %v943 = vadd.f32 %v874, %v938
    %v944 = vadd.f32 %v875, %v939
    %v945 = vadd.f32 %v876, %v940
    %v946 = vadd.f32 %v877, %v941
    %s947 = scalar_lea.vmem [#allocation5], 2960
    %v948 = vld [vmem:[%s947] sm:$0xff]
    %v949 = vld [vmem:[%s947 + $0x8] sm:$0xff]
    %v950 = vld [vmem:[%s947 + $0x10] sm:$0xff]
    %v951 = vld [vmem:[%s947 + $0x18] sm:$0xff]
    %v952 = vld [vmem:[%s947 + $0x20] sm:$0xff]
    %v953 = vmul.f32 %v948, %v894
    %v954 = vmul.f32 %v949, %v895
    %v955 = vmul.f32 %v950, %v896
    %v956 = vmul.f32 %v951, %v897
    %v957 = vmul.f32 %v952, %v898
    %v958 = vadd.f32 %v889, %v953
    %v959 = vadd.f32 %v890, %v954
    %v960 = vadd.f32 %v891, %v955
    %v961 = vadd.f32 %v892, %v956
    %v962 = vadd.f32 %v893, %v957
    %v963 = vmul.f32 %v87, %v94
    %v964 = vmul.f32 %v88, %v95
    %v965 = vmul.f32 %v89, %v96
    %v966 = vmul.f32 %v90, %v97
    %v967 = vmul.f32 %v91, %v98
    %s968 = scalar_lea.vmem [#allocation5], 480
    %v969 = vld [vmem:[%s968] sm:$0xff]
    %v970 = vld [vmem:[%s968 + $0x8] sm:$0xff]
    %v971 = vld [vmem:[%s968 + $0x10] sm:$0xff]
    %v972 = vld [vmem:[%s968 + $0x18] sm:$0xff]
    %v973 = vld [vmem:[%s968 + $0x20] sm:$0xff]
    %v974 = vmul.f32 %v969, %v963
    %v975 = vmul.f32 %v970, %v964
    %v976 = vmul.f32 %v971, %v965
    %v977 = vmul.f32 %v972, %v966
    %v978 = vmul.f32 %v973, %v967
    %v979 = vadd.f32 %v910, %v974
    %v980 = vadd.f32 %v911, %v975
    %v981 = vadd.f32 %v912, %v976
    %v982 = vadd.f32 %v913, %v977
    %v983 = vadd.f32 %v914, %v978
    %s984 = scalar_lea.vmem [#allocation5], 1320
    %v985 = vld [vmem:[%s984] sm:$0xff]
    %v986 = vld [vmem:[%s984 + $0x8] sm:$0xff]
    %v987 = vld [vmem:[%s984 + $0x10] sm:$0xff]
    %v988 = vld [vmem:[%s984 + $0x18] sm:$0xff]
    %v989 = vld [vmem:[%s984 + $0x20] sm:$0xff]
    %v990 = vmul.f32 %v985, %v963
    %v991 = vmul.f32 %v986, %v964
    %v992 = vmul.f32 %v987, %v965
    %v993 = vmul.f32 %v988, %v966
    %v994 = vmul.f32 %v989, %v967
    %v995 = vadd.f32 %v926, %v990
    %v996 = vadd.f32 %v927, %v991
    %v997 = vadd.f32 %v928, %v992
    %v998 = vadd.f32 %v929, %v993
    %v999 = vadd.f32 %v930, %v994
    %s1000 = scalar_lea.vmem [#allocation5], 2160
    %v1001 = vld [vmem:[%s1000] sm:$0xff]
    %v1002 = vld [vmem:[%s1000 + $0x8] sm:$0xff]
    %v1003 = vld [vmem:[%s1000 + $0x10] sm:$0xff]
    %v1004 = vld [vmem:[%s1000 + $0x18] sm:$0xff]
    %v1005 = vld [vmem:[%s1000 + $0x20] sm:$0xff]
    %v1006 = vmul.f32 %v1001, %v963
    %v1007 = vmul.f32 %v1002, %v964
    %v1008 = vmul.f32 %v1003, %v965
    %v1009 = vmul.f32 %v1004, %v966
    %v1010 = vmul.f32 %v1005, %v967
    %v1011 = vadd.f32 %v942, %v1006
    %v1012 = vadd.f32 %v943, %v1007
    %v1013 = vadd.f32 %v944, %v1008
    %v1014 = vadd.f32 %v945, %v1009
    %v1015 = vadd.f32 %v946, %v1010
    %s1016 = scalar_lea.vmem [#allocation5], 3000
    %v1017 = vld [vmem:[%s1016] sm:$0xff]
    %v1018 = vld [vmem:[%s1016 + $0x8] sm:$0xff]
    %v1019 = vld [vmem:[%s1016 + $0x10] sm:$0xff]
    %v1020 = vld [vmem:[%s1016 + $0x18] sm:$0xff]
    %v1021 = vld [vmem:[%s1016 + $0x20] sm:$0xff]
    %v1022 = vmul.f32 %v1017, %v963
    %v1023 = vmul.f32 %v1018, %v964
    %v1024 = vmul.f32 %v1019, %v965
    %v1025 = vmul.f32 %v1020, %v966
    %v1026 = vmul.f32 %v1021, %v967
    %v1027 = vadd.f32 %v958, %v1022
    %v1028 = vadd.f32 %v959, %v1023
    %v1029 = vadd.f32 %v960, %v1024
    %v1030 = vadd.f32 %v961, %v1025
    %v1031 = vadd.f32 %v962, %v1026
    %v1032 = vmul.f32 %v87, %v101
    %v1033 = vmul.f32 %v88, %v102
    %v1034 = vmul.f32 %v89, %v103
    %v1035 = vmul.f32 %v90, %v104
    %v1036 = vmul.f32 %v91, %v105
    %s1037 = scalar_lea.vmem [#allocation5], 520
    %v1038 = vld [vmem:[%s1037] sm:$0xff]
    %v1039 = vld [vmem:[%s1037 + $0x8] sm:$0xff]
    %v1040 = vld [vmem:[%s1037 + $0x10] sm:$0xff]
    %v1041 = vld [vmem:[%s1037 + $0x18] sm:$0xff]
    %v1042 = vld [vmem:[%s1037 + $0x20] sm:$0xff]
    %v1043 = vmul.f32 %v1038, %v1032
    %v1044 = vmul.f32 %v1039, %v1033
    %v1045 = vmul.f32 %v1040, %v1034
    %v1046 = vmul.f32 %v1041, %v1035
    %v1047 = vmul.f32 %v1042, %v1036
    %v1048 = vadd.f32 %v979, %v1043
    %v1049 = vadd.f32 %v980, %v1044
    %v1050 = vadd.f32 %v981, %v1045
    %v1051 = vadd.f32 %v982, %v1046
    %v1052 = vadd.f32 %v983, %v1047
    %s1053 = scalar_lea.vmem [#allocation5], 1360
    %v1054 = vld [vmem:[%s1053] sm:$0xff]
    %v1055 = vld [vmem:[%s1053 + $0x8] sm:$0xff]
    %v1056 = vld [vmem:[%s1053 + $0x10] sm:$0xff]
    %v1057 = vld [vmem:[%s1053 + $0x18] sm:$0xff]
    %v1058 = vld [vmem:[%s1053 + $0x20] sm:$0xff]
    %v1059 = vmul.f32 %v1054, %v1032
    %v1060 = vmul.f32 %v1055, %v1033
    %v1061 = vmul.f32 %v1056, %v1034
    %v1062 = vmul.f32 %v1057, %v1035
    %v1063 = vmul.f32 %v1058, %v1036
    %v1064 = vadd.f32 %v995, %v1059
    %v1065 = vadd.f32 %v996, %v1060
    %v1066 = vadd.f32 %v997, %v1061
    %v1067 = vadd.f32 %v998, %v1062
    %v1068 = vadd.f32 %v999, %v1063
    %s1069 = scalar_lea.vmem [#allocation5], 2200
    %v1070 = vld [vmem:[%s1069] sm:$0xff]
    %v1071 = vld [vmem:[%s1069 + $0x8] sm:$0xff]
    %v1072 = vld [vmem:[%s1069 + $0x10] sm:$0xff]
    %v1073 = vld [vmem:[%s1069 + $0x18] sm:$0xff]
    %v1074 = vld [vmem:[%s1069 + $0x20] sm:$0xff]
    %v1075 = vmul.f32 %v1070, %v1032
    %v1076 = vmul.f32 %v1071, %v1033
    %v1077 = vmul.f32 %v1072, %v1034
    %v1078 = vmul.f32 %v1073, %v1035
    %v1079 = vmul.f32 %v1074, %v1036
    %v1080 = vadd.f32 %v1011, %v1075
    %v1081 = vadd.f32 %v1012, %v1076
    %v1082 = vadd.f32 %v1013, %v1077
    %v1083 = vadd.f32 %v1014, %v1078
    %v1084 = vadd.f32 %v1015, %v1079
    %s1085 = scalar_lea.vmem [#allocation5], 3040
    %v1086 = vld [vmem:[%s1085] sm:$0xff]
    %v1087 = vld [vmem:[%s1085 + $0x8] sm:$0xff]
    %v1088 = vld [vmem:[%s1085 + $0x10] sm:$0xff]
    %v1089 = vld [vmem:[%s1085 + $0x18] sm:$0xff]
    %v1090 = vld [vmem:[%s1085 + $0x20] sm:$0xff]
    %v1091 = vmul.f32 %v1086, %v1032
    %v1092 = vmul.f32 %v1087, %v1033
    %v1093 = vmul.f32 %v1088, %v1034
    %v1094 = vmul.f32 %v1089, %v1035
    %v1095 = vmul.f32 %v1090, %v1036
    %v1096 = vadd.f32 %v1027, %v1091
    %v1097 = vadd.f32 %v1028, %v1092
    %v1098 = vadd.f32 %v1029, %v1093
    %v1099 = vadd.f32 %v1030, %v1094
    %v1100 = vadd.f32 %v1031, %v1095
    %v1101 = vmul.f32 %v87, %v108
    %v1102 = vmul.f32 %v88, %v109
    %v1103 = vmul.f32 %v89, %v110
    %v1104 = vmul.f32 %v90, %v111
    %v1105 = vmul.f32 %v91, %v112
    %s1106 = scalar_lea.vmem [#allocation5], 560
    %v1107 = vld [vmem:[%s1106] sm:$0xff]
    %v1108 = vld [vmem:[%s1106 + $0x8] sm:$0xff]
    %v1109 = vld [vmem:[%s1106 + $0x10] sm:$0xff]
    %v1110 = vld [vmem:[%s1106 + $0x18] sm:$0xff]
    %v1111 = vld [vmem:[%s1106 + $0x20] sm:$0xff]
    %v1112 = vmul.f32 %v1107, %v1101
    %v1113 = vmul.f32 %v1108, %v1102
    %v1114 = vmul.f32 %v1109, %v1103
    %v1115 = vmul.f32 %v1110, %v1104
    %v1116 = vmul.f32 %v1111, %v1105
    %v1117 = vadd.f32 %v1048, %v1112
    %v1118 = vadd.f32 %v1049, %v1113
    %v1119 = vadd.f32 %v1050, %v1114
    %v1120 = vadd.f32 %v1051, %v1115
    %v1121 = vadd.f32 %v1052, %v1116
    %s1122 = scalar_lea.vmem [#allocation5], 1400
    %v1123 = vld [vmem:[%s1122] sm:$0xff]
    %v1124 = vld [vmem:[%s1122 + $0x8] sm:$0xff]
    %v1125 = vld [vmem:[%s1122 + $0x10] sm:$0xff]
    %v1126 = vld [vmem:[%s1122 + $0x18] sm:$0xff]
    %v1127 = vld [vmem:[%s1122 + $0x20] sm:$0xff]
    %v1128 = vmul.f32 %v1123, %v1101
    %v1129 = vmul.f32 %v1124, %v1102
    %v1130 = vmul.f32 %v1125, %v1103
    %v1131 = vmul.f32 %v1126, %v1104
    %v1132 = vmul.f32 %v1127, %v1105
    %v1133 = vadd.f32 %v1064, %v1128
    %v1134 = vadd.f32 %v1065, %v1129
    %v1135 = vadd.f32 %v1066, %v1130
    %v1136 = vadd.f32 %v1067, %v1131
    %v1137 = vadd.f32 %v1068, %v1132
    %s1138 = scalar_lea.vmem [#allocation5], 2240
    %v1139 = vld [vmem:[%s1138] sm:$0xff]
    %v1140 = vld [vmem:[%s1138 + $0x8] sm:$0xff]
    %v1141 = vld [vmem:[%s1138 + $0x10] sm:$0xff]
    %v1142 = vld [vmem:[%s1138 + $0x18] sm:$0xff]
    %v1143 = vld [vmem:[%s1138 + $0x20] sm:$0xff]
    %v1144 = vmul.f32 %v1139, %v1101
    %v1145 = vmul.f32 %v1140, %v1102
    %v1146 = vmul.f32 %v1141, %v1103
    %v1147 = vmul.f32 %v1142, %v1104
    %v1148 = vmul.f32 %v1143, %v1105
    %v1149 = vadd.f32 %v1080, %v1144
    %v1150 = vadd.f32 %v1081, %v1145
    %v1151 = vadd.f32 %v1082, %v1146
    %v1152 = vadd.f32 %v1083, %v1147
    %v1153 = vadd.f32 %v1084, %v1148
    %s1154 = scalar_lea.vmem [#allocation5], 3080
    %v1155 = vld [vmem:[%s1154] sm:$0xff]
    %v1156 = vld [vmem:[%s1154 + $0x8] sm:$0xff]
    %v1157 = vld [vmem:[%s1154 + $0x10] sm:$0xff]
    %v1158 = vld [vmem:[%s1154 + $0x18] sm:$0xff]
    %v1159 = vld [vmem:[%s1154 + $0x20] sm:$0xff]
    %v1160 = vmul.f32 %v1155, %v1101
    %v1161 = vmul.f32 %v1156, %v1102
    %v1162 = vmul.f32 %v1157, %v1103
    %v1163 = vmul.f32 %v1158, %v1104
    %v1164 = vmul.f32 %v1159, %v1105
    %v1165 = vadd.f32 %v1096, %v1160
    %v1166 = vadd.f32 %v1097, %v1161
    %v1167 = vadd.f32 %v1098, %v1162
    %v1168 = vadd.f32 %v1099, %v1163
    %v1169 = vadd.f32 %v1100, %v1164
    %v1170 = vmul.f32 %v94, %v94
    %v1171 = vmul.f32 %v95, %v95
    %v1172 = vmul.f32 %v96, %v96
    %v1173 = vmul.f32 %v97, %v97
    %v1174 = vmul.f32 %v98, %v98
    %s1175 = scalar_lea.vmem [#allocation5], 600
    %v1176 = vld [vmem:[%s1175] sm:$0xff]
    %v1177 = vld [vmem:[%s1175 + $0x8] sm:$0xff]
    %v1178 = vld [vmem:[%s1175 + $0x10] sm:$0xff]
    %v1179 = vld [vmem:[%s1175 + $0x18] sm:$0xff]
    %v1180 = vld [vmem:[%s1175 + $0x20] sm:$0xff]
    %v1181 = vmul.f32 %v1176, %v1170
    %v1182 = vmul.f32 %v1177, %v1171
    %v1183 = vmul.f32 %v1178, %v1172
    %v1184 = vmul.f32 %v1179, %v1173
    %v1185 = vmul.f32 %v1180, %v1174
    %v1186 = vadd.f32 %v1117, %v1181
    %v1187 = vadd.f32 %v1118, %v1182
    %v1188 = vadd.f32 %v1119, %v1183
    %v1189 = vadd.f32 %v1120, %v1184
    %v1190 = vadd.f32 %v1121, %v1185
    %s1191 = scalar_lea.vmem [#allocation5], 1440
    %v1192 = vld [vmem:[%s1191] sm:$0xff]
    %v1193 = vld [vmem:[%s1191 + $0x8] sm:$0xff]
    %v1194 = vld [vmem:[%s1191 + $0x10] sm:$0xff]
    %v1195 = vld [vmem:[%s1191 + $0x18] sm:$0xff]
    %v1196 = vld [vmem:[%s1191 + $0x20] sm:$0xff]
    %v1197 = vmul.f32 %v1192, %v1170
    %v1198 = vmul.f32 %v1193, %v1171
    %v1199 = vmul.f32 %v1194, %v1172
    %v1200 = vmul.f32 %v1195, %v1173
    %v1201 = vmul.f32 %v1196, %v1174
    %v1202 = vadd.f32 %v1133, %v1197
    %v1203 = vadd.f32 %v1134, %v1198
    %v1204 = vadd.f32 %v1135, %v1199
    %v1205 = vadd.f32 %v1136, %v1200
    %v1206 = vadd.f32 %v1137, %v1201
    %s1207 = scalar_lea.vmem [#allocation5], 2280
    %v1208 = vld [vmem:[%s1207] sm:$0xff]
    %v1209 = vld [vmem:[%s1207 + $0x8] sm:$0xff]
    %v1210 = vld [vmem:[%s1207 + $0x10] sm:$0xff]
    %v1211 = vld [vmem:[%s1207 + $0x18] sm:$0xff]
    %v1212 = vld [vmem:[%s1207 + $0x20] sm:$0xff]
    %v1213 = vmul.f32 %v1208, %v1170
    %v1214 = vmul.f32 %v1209, %v1171
    %v1215 = vmul.f32 %v1210, %v1172
    %v1216 = vmul.f32 %v1211, %v1173
    %v1217 = vmul.f32 %v1212, %v1174
    %v1218 = vadd.f32 %v1149, %v1213
    %v1219 = vadd.f32 %v1150, %v1214
    %v1220 = vadd.f32 %v1151, %v1215
    %v1221 = vadd.f32 %v1152, %v1216
    %v1222 = vadd.f32 %v1153, %v1217
    %s1223 = scalar_lea.vmem [#allocation5], 3120
    %v1224 = vld [vmem:[%s1223] sm:$0xff]
    %v1225 = vld [vmem:[%s1223 + $0x8] sm:$0xff]
    %v1226 = vld [vmem:[%s1223 + $0x10] sm:$0xff]
    %v1227 = vld [vmem:[%s1223 + $0x18] sm:$0xff]
    %v1228 = vld [vmem:[%s1223 + $0x20] sm:$0xff]
    %v1229 = vmul.f32 %v1224, %v1170
    %v1230 = vmul.f32 %v1225, %v1171
    %v1231 = vmul.f32 %v1226, %v1172
    %v1232 = vmul.f32 %v1227, %v1173
    %v1233 = vmul.f32 %v1228, %v1174
    %v1234 = vadd.f32 %v1165, %v1229
    %v1235 = vadd.f32 %v1166, %v1230
    %v1236 = vadd.f32 %v1167, %v1231
    %v1237 = vadd.f32 %v1168, %v1232
    %v1238 = vadd.f32 %v1169, %v1233
    %v1239 = vmul.f32 %v94, %v101
    %v1240 = vmul.f32 %v95, %v102
    %v1241 = vmul.f32 %v96, %v103
    %v1242 = vmul.f32 %v97, %v104
    %v1243 = vmul.f32 %v98, %v105
    %s1244 = scalar_lea.vmem [#allocation5], 640
    %v1245 = vld [vmem:[%s1244] sm:$0xff]
    %v1246 = vld [vmem:[%s1244 + $0x8] sm:$0xff]
    %v1247 = vld [vmem:[%s1244 + $0x10] sm:$0xff]
    %v1248 = vld [vmem:[%s1244 + $0x18] sm:$0xff]
    %v1249 = vld [vmem:[%s1244 + $0x20] sm:$0xff]
    %v1250 = vmul.f32 %v1245, %v1239
    %v1251 = vmul.f32 %v1246, %v1240
    %v1252 = vmul.f32 %v1247, %v1241
    %v1253 = vmul.f32 %v1248, %v1242
    %v1254 = vmul.f32 %v1249, %v1243
    %v1255 = vadd.f32 %v1186, %v1250
    %v1256 = vadd.f32 %v1187, %v1251
    %v1257 = vadd.f32 %v1188, %v1252
    %v1258 = vadd.f32 %v1189, %v1253
    %v1259 = vadd.f32 %v1190, %v1254
    %s1260 = scalar_lea.vmem [#allocation5], 1480
    %v1261 = vld [vmem:[%s1260] sm:$0xff]
    %v1262 = vld [vmem:[%s1260 + $0x8] sm:$0xff]
    %v1263 = vld [vmem:[%s1260 + $0x10] sm:$0xff]
    %v1264 = vld [vmem:[%s1260 + $0x18] sm:$0xff]
    %v1265 = vld [vmem:[%s1260 + $0x20] sm:$0xff]
    %v1266 = vmul.f32 %v1261, %v1239
    %v1267 = vmul.f32 %v1262, %v1240
    %v1268 = vmul.f32 %v1263, %v1241
    %v1269 = vmul.f32 %v1264, %v1242
    %v1270 = vmul.f32 %v1265, %v1243
    %v1271 = vadd.f32 %v1202, %v1266
    %v1272 = vadd.f32 %v1203, %v1267
    %v1273 = vadd.f32 %v1204, %v1268
    %v1274 = vadd.f32 %v1205, %v1269
    %v1275 = vadd.f32 %v1206, %v1270
    %s1276 = scalar_lea.vmem [#allocation5], 2320
    %v1277 = vld [vmem:[%s1276] sm:$0xff]
    %v1278 = vld [vmem:[%s1276 + $0x8] sm:$0xff]
    %v1279 = vld [vmem:[%s1276 + $0x10] sm:$0xff]
    %v1280 = vld [vmem:[%s1276 + $0x18] sm:$0xff]
    %v1281 = vld [vmem:[%s1276 + $0x20] sm:$0xff]
    %v1282 = vmul.f32 %v1277, %v1239
    %v1283 = vmul.f32 %v1278, %v1240
    %v1284 = vmul.f32 %v1279, %v1241
    %v1285 = vmul.f32 %v1280, %v1242
    %v1286 = vmul.f32 %v1281, %v1243
    %v1287 = vadd.f32 %v1218, %v1282
    %v1288 = vadd.f32 %v1219, %v1283
    %v1289 = vadd.f32 %v1220, %v1284
    %v1290 = vadd.f32 %v1221, %v1285
    %v1291 = vadd.f32 %v1222, %v1286
    %s1292 = scalar_lea.vmem [#allocation5], 3160
    %v1293 = vld [vmem:[%s1292] sm:$0xff]
    %v1294 = vld [vmem:[%s1292 + $0x8] sm:$0xff]
    %v1295 = vld [vmem:[%s1292 + $0x10] sm:$0xff]
    %v1296 = vld [vmem:[%s1292 + $0x18] sm:$0xff]
    %v1297 = vld [vmem:[%s1292 + $0x20] sm:$0xff]
    %v1298 = vmul.f32 %v1293, %v1239
    %v1299 = vmul.f32 %v1294, %v1240
    %v1300 = vmul.f32 %v1295, %v1241
    %v1301 = vmul.f32 %v1296, %v1242
    %v1302 = vmul.f32 %v1297, %v1243
    %v1303 = vadd.f32 %v1234, %v1298
    %v1304 = vadd.f32 %v1235, %v1299
    %v1305 = vadd.f32 %v1236, %v1300
    %v1306 = vadd.f32 %v1237, %v1301
    %v1307 = vadd.f32 %v1238, %v1302
    %v1308 = vmul.f32 %v94, %v108
    %v1309 = vmul.f32 %v95, %v109
    %v1310 = vmul.f32 %v96, %v110
    %v1311 = vmul.f32 %v97, %v111
    %v1312 = vmul.f32 %v98, %v112
    %s1313 = scalar_lea.vmem [#allocation5], 680
    %v1314 = vld [vmem:[%s1313] sm:$0xff]
    %v1315 = vld [vmem:[%s1313 + $0x8] sm:$0xff]
    %v1316 = vld [vmem:[%s1313 + $0x10] sm:$0xff]
    %v1317 = vld [vmem:[%s1313 + $0x18] sm:$0xff]
    %v1318 = vld [vmem:[%s1313 + $0x20] sm:$0xff]
    %v1319 = vmul.f32 %v1314, %v1308
    %v1320 = vmul.f32 %v1315, %v1309
    %v1321 = vmul.f32 %v1316, %v1310
    %v1322 = vmul.f32 %v1317, %v1311
    %v1323 = vmul.f32 %v1318, %v1312
    %v1324 = vadd.f32 %v1255, %v1319
    %v1325 = vadd.f32 %v1256, %v1320
    %v1326 = vadd.f32 %v1257, %v1321
    %v1327 = vadd.f32 %v1258, %v1322
    %v1328 = vadd.f32 %v1259, %v1323
    %s1329 = scalar_lea.vmem [#allocation5], 1520
    %v1330 = vld [vmem:[%s1329] sm:$0xff]
    %v1331 = vld [vmem:[%s1329 + $0x8] sm:$0xff]
    %v1332 = vld [vmem:[%s1329 + $0x10] sm:$0xff]
    %v1333 = vld [vmem:[%s1329 + $0x18] sm:$0xff]
    %v1334 = vld [vmem:[%s1329 + $0x20] sm:$0xff]
    %v1335 = vmul.f32 %v1330, %v1308
    %v1336 = vmul.f32 %v1331, %v1309
    %v1337 = vmul.f32 %v1332, %v1310
    %v1338 = vmul.f32 %v1333, %v1311
    %v1339 = vmul.f32 %v1334, %v1312
    %v1340 = vadd.f32 %v1271, %v1335
    %v1341 = vadd.f32 %v1272, %v1336
    %v1342 = vadd.f32 %v1273, %v1337
    %v1343 = vadd.f32 %v1274, %v1338
    %v1344 = vadd.f32 %v1275, %v1339
    %s1345 = scalar_lea.vmem [#allocation5], 2360
    %v1346 = vld [vmem:[%s1345] sm:$0xff]
    %v1347 = vld [vmem:[%s1345 + $0x8] sm:$0xff]
    %v1348 = vld [vmem:[%s1345 + $0x10] sm:$0xff]
    %v1349 = vld [vmem:[%s1345 + $0x18] sm:$0xff]
    %v1350 = vld [vmem:[%s1345 + $0x20] sm:$0xff]
    %v1351 = vmul.f32 %v1346, %v1308
    %v1352 = vmul.f32 %v1347, %v1309
    %v1353 = vmul.f32 %v1348, %v1310
    %v1354 = vmul.f32 %v1349, %v1311
    %v1355 = vmul.f32 %v1350, %v1312
    %v1356 = vadd.f32 %v1287, %v1351
    %v1357 = vadd.f32 %v1288, %v1352
    %v1358 = vadd.f32 %v1289, %v1353
    %v1359 = vadd.f32 %v1290, %v1354
    %v1360 = vadd.f32 %v1291, %v1355
    %s1361 = scalar_lea.vmem [#allocation5], 3200
    %v1362 = vld [vmem:[%s1361] sm:$0xff]
    %v1363 = vld [vmem:[%s1361 + $0x8] sm:$0xff]
    %v1364 = vld [vmem:[%s1361 + $0x10] sm:$0xff]
    %v1365 = vld [vmem:[%s1361 + $0x18] sm:$0xff]
    %v1366 = vld [vmem:[%s1361 + $0x20] sm:$0xff]
    %v1367 = vmul.f32 %v1362, %v1308
    %v1368 = vmul.f32 %v1363, %v1309
    %v1369 = vmul.f32 %v1364, %v1310
    %v1370 = vmul.f32 %v1365, %v1311
    %v1371 = vmul.f32 %v1366, %v1312
    %v1372 = vadd.f32 %v1303, %v1367
    %v1373 = vadd.f32 %v1304, %v1368
    %v1374 = vadd.f32 %v1305, %v1369
    %v1375 = vadd.f32 %v1306, %v1370
    %v1376 = vadd.f32 %v1307, %v1371
    %v1377 = vmul.f32 %v101, %v101
    %v1378 = vmul.f32 %v102, %v102
    %v1379 = vmul.f32 %v103, %v103
    %v1380 = vmul.f32 %v104, %v104
    %v1381 = vmul.f32 %v105, %v105
    %s1382 = scalar_lea.vmem [#allocation5], 720
    %v1383 = vld [vmem:[%s1382] sm:$0xff]
    %v1384 = vld [vmem:[%s1382 + $0x8] sm:$0xff]
    %v1385 = vld [vmem:[%s1382 + $0x10] sm:$0xff]
    %v1386 = vld [vmem:[%s1382 + $0x18] sm:$0xff]
    %v1387 = vld [vmem:[%s1382 + $0x20] sm:$0xff]
    %v1388 = vmul.f32 %v1383, %v1377
    %v1389 = vmul.f32 %v1384, %v1378
    %v1390 = vmul.f32 %v1385, %v1379
    %v1391 = vmul.f32 %v1386, %v1380
    %v1392 = vmul.f32 %v1387, %v1381
    %v1393 = vadd.f32 %v1324, %v1388
    %v1394 = vadd.f32 %v1325, %v1389
    %v1395 = vadd.f32 %v1326, %v1390
    %v1396 = vadd.f32 %v1327, %v1391
    %v1397 = vadd.f32 %v1328, %v1392
    %s1398 = scalar_lea.vmem [#allocation5], 1560
    %v1399 = vld [vmem:[%s1398] sm:$0xff]
    %v1400 = vld [vmem:[%s1398 + $0x8] sm:$0xff]
    %v1401 = vld [vmem:[%s1398 + $0x10] sm:$0xff]
    %v1402 = vld [vmem:[%s1398 + $0x18] sm:$0xff]
    %v1403 = vld [vmem:[%s1398 + $0x20] sm:$0xff]
    %v1404 = vmul.f32 %v1399, %v1377
    %v1405 = vmul.f32 %v1400, %v1378
    %v1406 = vmul.f32 %v1401, %v1379
    %v1407 = vmul.f32 %v1402, %v1380
    %v1408 = vmul.f32 %v1403, %v1381
    %v1409 = vadd.f32 %v1340, %v1404
    %v1410 = vadd.f32 %v1341, %v1405
    %v1411 = vadd.f32 %v1342, %v1406
    %v1412 = vadd.f32 %v1343, %v1407
    %v1413 = vadd.f32 %v1344, %v1408
    %s1414 = scalar_lea.vmem [#allocation5], 2400
    %v1415 = vld [vmem:[%s1414] sm:$0xff]
    %v1416 = vld [vmem:[%s1414 + $0x8] sm:$0xff]
    %v1417 = vld [vmem:[%s1414 + $0x10] sm:$0xff]
    %v1418 = vld [vmem:[%s1414 + $0x18] sm:$0xff]
    %v1419 = vld [vmem:[%s1414 + $0x20] sm:$0xff]
    %v1420 = vmul.f32 %v1415, %v1377
    %v1421 = vmul.f32 %v1416, %v1378
    %v1422 = vmul.f32 %v1417, %v1379
    %v1423 = vmul.f32 %v1418, %v1380
    %v1424 = vmul.f32 %v1419, %v1381
    %v1425 = vadd.f32 %v1356, %v1420
    %v1426 = vadd.f32 %v1357, %v1421
    %v1427 = vadd.f32 %v1358, %v1422
    %v1428 = vadd.f32 %v1359, %v1423
    %v1429 = vadd.f32 %v1360, %v1424
    %s1430 = scalar_lea.vmem [#allocation5], 3240
    %v1431 = vld [vmem:[%s1430] sm:$0xff]
    %v1432 = vld [vmem:[%s1430 + $0x8] sm:$0xff]
    %v1433 = vld [vmem:[%s1430 + $0x10] sm:$0xff]
    %v1434 = vld [vmem:[%s1430 + $0x18] sm:$0xff]
    %v1435 = vld [vmem:[%s1430 + $0x20] sm:$0xff]
    %v1436 = vmul.f32 %v1431, %v1377
    %v1437 = vmul.f32 %v1432, %v1378
    %v1438 = vmul.f32 %v1433, %v1379
    %v1439 = vmul.f32 %v1434, %v1380
    %v1440 = vmul.f32 %v1435, %v1381
    %v1441 = vadd.f32 %v1372, %v1436
    %v1442 = vadd.f32 %v1373, %v1437
    %v1443 = vadd.f32 %v1374, %v1438
    %v1444 = vadd.f32 %v1375, %v1439
    %v1445 = vadd.f32 %v1376, %v1440
    %v1446 = vmul.f32 %v101, %v108
    %v1447 = vmul.f32 %v102, %v109
    %v1448 = vmul.f32 %v103, %v110
    %v1449 = vmul.f32 %v104, %v111
    %v1450 = vmul.f32 %v105, %v112
    %s1451 = scalar_lea.vmem [#allocation5], 760
    %v1452 = vld [vmem:[%s1451] sm:$0xff]
    %v1453 = vld [vmem:[%s1451 + $0x8] sm:$0xff]
    %v1454 = vld [vmem:[%s1451 + $0x10] sm:$0xff]
    %v1455 = vld [vmem:[%s1451 + $0x18] sm:$0xff]
    %v1456 = vld [vmem:[%s1451 + $0x20] sm:$0xff]
    %v1457 = vmul.f32 %v1452, %v1446
    %v1458 = vmul.f32 %v1453, %v1447
    %v1459 = vmul.f32 %v1454, %v1448
    %v1460 = vmul.f32 %v1455, %v1449
    %v1461 = vmul.f32 %v1456, %v1450
    %v1462 = vadd.f32 %v1393, %v1457
    %v1463 = vadd.f32 %v1394, %v1458
    %v1464 = vadd.f32 %v1395, %v1459
    %v1465 = vadd.f32 %v1396, %v1460
    %v1466 = vadd.f32 %v1397, %v1461
    %s1467 = scalar_lea.vmem [#allocation5], 1600
    %v1468 = vld [vmem:[%s1467] sm:$0xff]
    %v1469 = vld [vmem:[%s1467 + $0x8] sm:$0xff]
    %v1470 = vld [vmem:[%s1467 + $0x10] sm:$0xff]
    %v1471 = vld [vmem:[%s1467 + $0x18] sm:$0xff]
    %v1472 = vld [vmem:[%s1467 + $0x20] sm:$0xff]
    %v1473 = vmul.f32 %v1468, %v1446
    %v1474 = vmul.f32 %v1469, %v1447
    %v1475 = vmul.f32 %v1470, %v1448
    %v1476 = vmul.f32 %v1471, %v1449
    %v1477 = vmul.f32 %v1472, %v1450
    %v1478 = vadd.f32 %v1409, %v1473
    %v1479 = vadd.f32 %v1410, %v1474
    %v1480 = vadd.f32 %v1411, %v1475
    %v1481 = vadd.f32 %v1412, %v1476
    %v1482 = vadd.f32 %v1413, %v1477
    %s1483 = scalar_lea.vmem [#allocation5], 2440
    %v1484 = vld [vmem:[%s1483] sm:$0xff]
    %v1485 = vld [vmem:[%s1483 + $0x8] sm:$0xff]
    %v1486 = vld [vmem:[%s1483 + $0x10] sm:$0xff]
    %v1487 = vld [vmem:[%s1483 + $0x18] sm:$0xff]
    %v1488 = vld [vmem:[%s1483 + $0x20] sm:$0xff]
    %v1489 = vmul.f32 %v1484, %v1446
    %v1490 = vmul.f32 %v1485, %v1447
    %v1491 = vmul.f32 %v1486, %v1448
    %v1492 = vmul.f32 %v1487, %v1449
    %v1493 = vmul.f32 %v1488, %v1450
    %v1494 = vadd.f32 %v1425, %v1489
    %v1495 = vadd.f32 %v1426, %v1490
    %v1496 = vadd.f32 %v1427, %v1491
    %v1497 = vadd.f32 %v1428, %v1492
    %v1498 = vadd.f32 %v1429, %v1493
    %s1499 = scalar_lea.vmem [#allocation5], 3280
    %v1500 = vld [vmem:[%s1499] sm:$0xff]
    %v1501 = vld [vmem:[%s1499 + $0x8] sm:$0xff]
    %v1502 = vld [vmem:[%s1499 + $0x10] sm:$0xff]
    %v1503 = vld [vmem:[%s1499 + $0x18] sm:$0xff]
    %v1504 = vld [vmem:[%s1499 + $0x20] sm:$0xff]
    %v1505 = vmul.f32 %v1500, %v1446
    %v1506 = vmul.f32 %v1501, %v1447
    %v1507 = vmul.f32 %v1502, %v1448
    %v1508 = vmul.f32 %v1503, %v1449
    %v1509 = vmul.f32 %v1504, %v1450
    %v1510 = vadd.f32 %v1441, %v1505
    %v1511 = vadd.f32 %v1442, %v1506
    %v1512 = vadd.f32 %v1443, %v1507
    %v1513 = vadd.f32 %v1444, %v1508
    %v1514 = vadd.f32 %v1445, %v1509
    %v1515 = vmul.f32 %v108, %v108
    %v1516 = vmul.f32 %v109, %v109
    %v1517 = vmul.f32 %v110, %v110
    %v1518 = vmul.f32 %v111, %v111
    %v1519 = vmul.f32 %v112, %v112
    %s1520 = scalar_lea.vmem [#allocation5], 800
    %v1521 = vld [vmem:[%s1520] sm:$0xff]
    %v1522 = vld [vmem:[%s1520 + $0x8] sm:$0xff]
    %v1523 = vld [vmem:[%s1520 + $0x10] sm:$0xff]
    %v1524 = vld [vmem:[%s1520 + $0x18] sm:$0xff]
    %v1525 = vld [vmem:[%s1520 + $0x20] sm:$0xff]
    %v1526 = vmul.f32 %v1521, %v1515
    %v1527 = vmul.f32 %v1522, %v1516
    %v1528 = vmul.f32 %v1523, %v1517
    %v1529 = vmul.f32 %v1524, %v1518
    %v1530 = vmul.f32 %v1525, %v1519
    %v1531 = vadd.f32 %v1462, %v1526
    %v1532 = vadd.f32 %v1463, %v1527
    %v1533 = vadd.f32 %v1464, %v1528
    %v1534 = vadd.f32 %v1465, %v1529
    %v1535 = vadd.f32 %v1466, %v1530
    %s1536 = scalar_lea.vmem [#allocation5], 1640
    %v1537 = vld [vmem:[%s1536] sm:$0xff]
    %v1538 = vld [vmem:[%s1536 + $0x8] sm:$0xff]
    %v1539 = vld [vmem:[%s1536 + $0x10] sm:$0xff]
    %v1540 = vld [vmem:[%s1536 + $0x18] sm:$0xff]
    %v1541 = vld [vmem:[%s1536 + $0x20] sm:$0xff]
    %v1542 = vmul.f32 %v1537, %v1515
    %v1543 = vmul.f32 %v1538, %v1516
    %v1544 = vmul.f32 %v1539, %v1517
    %v1545 = vmul.f32 %v1540, %v1518
    %v1546 = vmul.f32 %v1541, %v1519
    %v1547 = vadd.f32 %v1478, %v1542
    %v1548 = vadd.f32 %v1479, %v1543
    %v1549 = vadd.f32 %v1480, %v1544
    %v1550 = vadd.f32 %v1481, %v1545
    %v1551 = vadd.f32 %v1482, %v1546
    %s1552 = scalar_lea.vmem [#allocation5], 2480
    %v1553 = vld [vmem:[%s1552] sm:$0xff]
    %v1554 = vld [vmem:[%s1552 + $0x8] sm:$0xff]
    %v1555 = vld [vmem:[%s1552 + $0x10] sm:$0xff]
    %v1556 = vld [vmem:[%s1552 + $0x18] sm:$0xff]
    %v1557 = vld [vmem:[%s1552 + $0x20] sm:$0xff]
    %v1558 = vmul.f32 %v1553, %v1515
    %v1559 = vmul.f32 %v1554, %v1516
    %v1560 = vmul.f32 %v1555, %v1517
    %v1561 = vmul.f32 %v1556, %v1518
    %v1562 = vmul.f32 %v1557, %v1519
    %v1563 = vadd.f32 %v1494, %v1558
    %v1564 = vadd.f32 %v1495, %v1559
    %v1565 = vadd.f32 %v1496, %v1560
    %v1566 = vadd.f32 %v1497, %v1561
    %v1567 = vadd.f32 %v1498, %v1562
    %s1568 = scalar_lea.vmem [#allocation5], 3320
    %v1569 = vld [vmem:[%s1568] sm:$0xff]
    %v1570 = vld [vmem:[%s1568 + $0x8] sm:$0xff]
    %v1571 = vld [vmem:[%s1568 + $0x10] sm:$0xff]
    %v1572 = vld [vmem:[%s1568 + $0x18] sm:$0xff]
    %v1573 = vld [vmem:[%s1568 + $0x20] sm:$0xff]
    %v1574 = vmul.f32 %v1569, %v1515
    %v1575 = vmul.f32 %v1570, %v1516
    %v1576 = vmul.f32 %v1571, %v1517
    %v1577 = vmul.f32 %v1572, %v1518
    %v1578 = vmul.f32 %v1573, %v1519
    %v1579 = vadd.f32 %v1510, %v1574
    %v1580 = vadd.f32 %v1511, %v1575
    %v1581 = vadd.f32 %v1512, %v1576
    %v1582 = vadd.f32 %v1513, %v1577
    %v1583 = vadd.f32 %v1514, %v1578
    %v1584 = vld [vmem:[#allocation7] sm:$0xff]
    %v1585 = vld [vmem:[#allocation7 + $0x8] sm:$0xff]
    %v1586 = vld [vmem:[#allocation7 + $0x10] sm:$0xff]
    %v1587 = vld [vmem:[#allocation7 + $0x18] sm:$0xff]
    %v1588 = vld [vmem:[#allocation7 + $0x20] sm:$0xff]
    %v1589 = vmul.f32 %v1584, %v73
    %v1590 = vmul.f32 %v1585, %v74
    %v1591 = vmul.f32 %v1586, %v75
    %v1592 = vmul.f32 %v1587, %v76
    %v1593 = vmul.f32 %v1588, %v77
    %v1594 = vadd.f32 %v1531, %v1589
    %v1595 = vadd.f32 %v1532, %v1590
    %v1596 = vadd.f32 %v1533, %v1591
    %v1597 = vadd.f32 %v1534, %v1592
    %v1598 = vadd.f32 %v1535, %v1593
    %s1599 = scalar_lea.vmem [#allocation7], 240
    %v1600 = vld [vmem:[%s1599] sm:$0xff]
    %v1601 = vld [vmem:[%s1599 + $0x8] sm:$0xff]
    %v1602 = vld [vmem:[%s1599 + $0x10] sm:$0xff]
    %v1603 = vld [vmem:[%s1599 + $0x18] sm:$0xff]
    %v1604 = vld [vmem:[%s1599 + $0x20] sm:$0xff]
    %v1605 = vmul.f32 %v1600, %v73
    %v1606 = vmul.f32 %v1601, %v74
    %v1607 = vmul.f32 %v1602, %v75
    %v1608 = vmul.f32 %v1603, %v76
    %v1609 = vmul.f32 %v1604, %v77
    %v1610 = vadd.f32 %v1547, %v1605
    %v1611 = vadd.f32 %v1548, %v1606
    %v1612 = vadd.f32 %v1549, %v1607
    %v1613 = vadd.f32 %v1550, %v1608
    %v1614 = vadd.f32 %v1551, %v1609
    %s1615 = scalar_lea.vmem [#allocation7], 480
    %v1616 = vld [vmem:[%s1615] sm:$0xff]
    %v1617 = vld [vmem:[%s1615 + $0x8] sm:$0xff]
    %v1618 = vld [vmem:[%s1615 + $0x10] sm:$0xff]
    %v1619 = vld [vmem:[%s1615 + $0x18] sm:$0xff]
    %v1620 = vld [vmem:[%s1615 + $0x20] sm:$0xff]
    %v1621 = vmul.f32 %v1616, %v73
    %v1622 = vmul.f32 %v1617, %v74
    %v1623 = vmul.f32 %v1618, %v75
    %v1624 = vmul.f32 %v1619, %v76
    %v1625 = vmul.f32 %v1620, %v77
    %v1626 = vadd.f32 %v1563, %v1621
    %v1627 = vadd.f32 %v1564, %v1622
    %v1628 = vadd.f32 %v1565, %v1623
    %v1629 = vadd.f32 %v1566, %v1624
    %v1630 = vadd.f32 %v1567, %v1625
    %s1631 = scalar_lea.vmem [#allocation7], 720
    %v1632 = vld [vmem:[%s1631] sm:$0xff]
    %v1633 = vld [vmem:[%s1631 + $0x8] sm:$0xff]
    %v1634 = vld [vmem:[%s1631 + $0x10] sm:$0xff]
    %v1635 = vld [vmem:[%s1631 + $0x18] sm:$0xff]
    %v1636 = vld [vmem:[%s1631 + $0x20] sm:$0xff]
    %v1637 = vmul.f32 %v1632, %v73
    %v1638 = vmul.f32 %v1633, %v74
    %v1639 = vmul.f32 %v1634, %v75
    %v1640 = vmul.f32 %v1635, %v76
    %v1641 = vmul.f32 %v1636, %v77
    %v1642 = vadd.f32 %v1579, %v1637
    %v1643 = vadd.f32 %v1580, %v1638
    %v1644 = vadd.f32 %v1581, %v1639
    %v1645 = vadd.f32 %v1582, %v1640
    %v1646 = vadd.f32 %v1583, %v1641
    %s1647 = scalar_lea.vmem [#allocation7], 40
    %v1648 = vld [vmem:[%s1647] sm:$0xff]
    %v1649 = vld [vmem:[%s1647 + $0x8] sm:$0xff]
    %v1650 = vld [vmem:[%s1647 + $0x10] sm:$0xff]
    %v1651 = vld [vmem:[%s1647 + $0x18] sm:$0xff]
    %v1652 = vld [vmem:[%s1647 + $0x20] sm:$0xff]
    %v1653 = vmul.f32 %v1648, %v80
    %v1654 = vmul.f32 %v1649, %v81
    %v1655 = vmul.f32 %v1650, %v82
    %v1656 = vmul.f32 %v1651, %v83
    %v1657 = vmul.f32 %v1652, %v84
    %v1658 = vadd.f32 %v1594, %v1653
    %v1659 = vadd.f32 %v1595, %v1654
    %v1660 = vadd.f32 %v1596, %v1655
    %v1661 = vadd.f32 %v1597, %v1656
    %v1662 = vadd.f32 %v1598, %v1657
    %s1663 = scalar_lea.vmem [#allocation7], 280
    %v1664 = vld [vmem:[%s1663] sm:$0xff]
    %v1665 = vld [vmem:[%s1663 + $0x8] sm:$0xff]
    %v1666 = vld [vmem:[%s1663 + $0x10] sm:$0xff]
    %v1667 = vld [vmem:[%s1663 + $0x18] sm:$0xff]
    %v1668 = vld [vmem:[%s1663 + $0x20] sm:$0xff]
    %v1669 = vmul.f32 %v1664, %v80
    %v1670 = vmul.f32 %v1665, %v81
    %v1671 = vmul.f32 %v1666, %v82
    %v1672 = vmul.f32 %v1667, %v83
    %v1673 = vmul.f32 %v1668, %v84
    %v1674 = vadd.f32 %v1610, %v1669
    %v1675 = vadd.f32 %v1611, %v1670
    %v1676 = vadd.f32 %v1612, %v1671
    %v1677 = vadd.f32 %v1613, %v1672
    %v1678 = vadd.f32 %v1614, %v1673
    %s1679 = scalar_lea.vmem [#allocation7], 520
    %v1680 = vld [vmem:[%s1679] sm:$0xff]
    %v1681 = vld [vmem:[%s1679 + $0x8] sm:$0xff]
    %v1682 = vld [vmem:[%s1679 + $0x10] sm:$0xff]
    %v1683 = vld [vmem:[%s1679 + $0x18] sm:$0xff]
    %v1684 = vld [vmem:[%s1679 + $0x20] sm:$0xff]
    %v1685 = vmul.f32 %v1680, %v80
    %v1686 = vmul.f32 %v1681, %v81
    %v1687 = vmul.f32 %v1682, %v82
    %v1688 = vmul.f32 %v1683, %v83
    %v1689 = vmul.f32 %v1684, %v84
    %v1690 = vadd.f32 %v1626, %v1685
    %v1691 = vadd.f32 %v1627, %v1686
    %v1692 = vadd.f32 %v1628, %v1687
    %v1693 = vadd.f32 %v1629, %v1688
    %v1694 = vadd.f32 %v1630, %v1689
    %s1695 = scalar_lea.vmem [#allocation7], 760
    %v1696 = vld [vmem:[%s1695] sm:$0xff]
    %v1697 = vld [vmem:[%s1695 + $0x8] sm:$0xff]
    %v1698 = vld [vmem:[%s1695 + $0x10] sm:$0xff]
    %v1699 = vld [vmem:[%s1695 + $0x18] sm:$0xff]
    %v1700 = vld [vmem:[%s1695 + $0x20] sm:$0xff]
    %v1701 = vmul.f32 %v1696, %v80
    %v1702 = vmul.f32 %v1697, %v81
    %v1703 = vmul.f32 %v1698, %v82
    %v1704 = vmul.f32 %v1699, %v83
    %v1705 = vmul.f32 %v1700, %v84
    %v1706 = vadd.f32 %v1642, %v1701
    %v1707 = vadd.f32 %v1643, %v1702
    %v1708 = vadd.f32 %v1644, %v1703
    %v1709 = vadd.f32 %v1645, %v1704
    %v1710 = vadd.f32 %v1646, %v1705
    %s1711 = scalar_lea.vmem [#allocation7], 80
    %v1712 = vld [vmem:[%s1711] sm:$0xff]
    %v1713 = vld [vmem:[%s1711 + $0x8] sm:$0xff]
    %v1714 = vld [vmem:[%s1711 + $0x10] sm:$0xff]
    %v1715 = vld [vmem:[%s1711 + $0x18] sm:$0xff]
    %v1716 = vld [vmem:[%s1711 + $0x20] sm:$0xff]
    %v1717 = vmul.f32 %v1712, %v87
    %v1718 = vmul.f32 %v1713, %v88
    %v1719 = vmul.f32 %v1714, %v89
    %v1720 = vmul.f32 %v1715, %v90
    %v1721 = vmul.f32 %v1716, %v91
    %v1722 = vadd.f32 %v1658, %v1717
    %v1723 = vadd.f32 %v1659, %v1718
    %v1724 = vadd.f32 %v1660, %v1719
    %v1725 = vadd.f32 %v1661, %v1720
    %v1726 = vadd.f32 %v1662, %v1721
    %s1727 = scalar_lea.vmem [#allocation7], 320
    %v1728 = vld [vmem:[%s1727] sm:$0xff]
    %v1729 = vld [vmem:[%s1727 + $0x8] sm:$0xff]
    %v1730 = vld [vmem:[%s1727 + $0x10] sm:$0xff]
    %v1731 = vld [vmem:[%s1727 + $0x18] sm:$0xff]
    %v1732 = vld [vmem:[%s1727 + $0x20] sm:$0xff]
    %v1733 = vmul.f32 %v1728, %v87
    %v1734 = vmul.f32 %v1729, %v88
    %v1735 = vmul.f32 %v1730, %v89
    %v1736 = vmul.f32 %v1731, %v90
    %v1737 = vmul.f32 %v1732, %v91
    %v1738 = vadd.f32 %v1674, %v1733
    %v1739 = vadd.f32 %v1675, %v1734
    %v1740 = vadd.f32 %v1676, %v1735
    %v1741 = vadd.f32 %v1677, %v1736
    %v1742 = vadd.f32 %v1678, %v1737
    %s1743 = scalar_lea.vmem [#allocation7], 560
    %v1744 = vld [vmem:[%s1743] sm:$0xff]
    %v1745 = vld [vmem:[%s1743 + $0x8] sm:$0xff]
    %v1746 = vld [vmem:[%s1743 + $0x10] sm:$0xff]
    %v1747 = vld [vmem:[%s1743 + $0x18] sm:$0xff]
    %v1748 = vld [vmem:[%s1743 + $0x20] sm:$0xff]
    %v1749 = vmul.f32 %v1744, %v87
    %v1750 = vmul.f32 %v1745, %v88
    %v1751 = vmul.f32 %v1746, %v89
    %v1752 = vmul.f32 %v1747, %v90
    %v1753 = vmul.f32 %v1748, %v91
    %v1754 = vadd.f32 %v1690, %v1749
    %v1755 = vadd.f32 %v1691, %v1750
    %v1756 = vadd.f32 %v1692, %v1751
    %v1757 = vadd.f32 %v1693, %v1752
    %v1758 = vadd.f32 %v1694, %v1753
    %s1759 = scalar_lea.vmem [#allocation7], 800
    %v1760 = vld [vmem:[%s1759] sm:$0xff]
    %v1761 = vld [vmem:[%s1759 + $0x8] sm:$0xff]
    %v1762 = vld [vmem:[%s1759 + $0x10] sm:$0xff]
    %v1763 = vld [vmem:[%s1759 + $0x18] sm:$0xff]
    %v1764 = vld [vmem:[%s1759 + $0x20] sm:$0xff]
    %v1765 = vmul.f32 %v1760, %v87
    %v1766 = vmul.f32 %v1761, %v88
    %v1767 = vmul.f32 %v1762, %v89
    %v1768 = vmul.f32 %v1763, %v90
    %v1769 = vmul.f32 %v1764, %v91
    %v1770 = vadd.f32 %v1706, %v1765
    %v1771 = vadd.f32 %v1707, %v1766
    %v1772 = vadd.f32 %v1708, %v1767
    %v1773 = vadd.f32 %v1709, %v1768
    %v1774 = vadd.f32 %v1710, %v1769
    %s1775 = scalar_lea.vmem [#allocation7], 120
    %v1776 = vld [vmem:[%s1775] sm:$0xff]
    %v1777 = vld [vmem:[%s1775 + $0x8] sm:$0xff]
    %v1778 = vld [vmem:[%s1775 + $0x10] sm:$0xff]
    %v1779 = vld [vmem:[%s1775 + $0x18] sm:$0xff]
    %v1780 = vld [vmem:[%s1775 + $0x20] sm:$0xff]
    %v1781 = vmul.f32 %v1776, %v94
    %v1782 = vmul.f32 %v1777, %v95
    %v1783 = vmul.f32 %v1778, %v96
    %v1784 = vmul.f32 %v1779, %v97
    %v1785 = vmul.f32 %v1780, %v98
    %v1786 = vadd.f32 %v1722, %v1781
    %v1787 = vadd.f32 %v1723, %v1782
    %v1788 = vadd.f32 %v1724, %v1783
    %v1789 = vadd.f32 %v1725, %v1784
    %v1790 = vadd.f32 %v1726, %v1785
    %s1791 = scalar_lea.vmem [#allocation7], 360
    %v1792 = vld [vmem:[%s1791] sm:$0xff]
    %v1793 = vld [vmem:[%s1791 + $0x8] sm:$0xff]
    %v1794 = vld [vmem:[%s1791 + $0x10] sm:$0xff]
    %v1795 = vld [vmem:[%s1791 + $0x18] sm:$0xff]
    %v1796 = vld [vmem:[%s1791 + $0x20] sm:$0xff]
    %v1797 = vmul.f32 %v1792, %v94
    %v1798 = vmul.f32 %v1793, %v95
    %v1799 = vmul.f32 %v1794, %v96
    %v1800 = vmul.f32 %v1795, %v97
    %v1801 = vmul.f32 %v1796, %v98
    %v1802 = vadd.f32 %v1738, %v1797
    %v1803 = vadd.f32 %v1739, %v1798
    %v1804 = vadd.f32 %v1740, %v1799
    %v1805 = vadd.f32 %v1741, %v1800
    %v1806 = vadd.f32 %v1742, %v1801
    %s1807 = scalar_lea.vmem [#allocation7], 600
    %v1808 = vld [vmem:[%s1807] sm:$0xff]
    %v1809 = vld [vmem:[%s1807 + $0x8] sm:$0xff]
    %v1810 = vld [vmem:[%s1807 + $0x10] sm:$0xff]
    %v1811 = vld [vmem:[%s1807 + $0x18] sm:$0xff]
    %v1812 = vld [vmem:[%s1807 + $0x20] sm:$0xff]
    %v1813 = vmul.f32 %v1808, %v94
    %v1814 = vmul.f32 %v1809, %v95
    %v1815 = vmul.f32 %v1810, %v96
    %v1816 = vmul.f32 %v1811, %v97
    %v1817 = vmul.f32 %v1812, %v98
    %v1818 = vadd.f32 %v1754, %v1813
    %v1819 = vadd.f32 %v1755, %v1814
    %v1820 = vadd.f32 %v1756, %v1815
    %v1821 = vadd.f32 %v1757, %v1816
    %v1822 = vadd.f32 %v1758, %v1817
    %s1823 = scalar_lea.vmem [#allocation7], 840
    %v1824 = vld [vmem:[%s1823] sm:$0xff]
    %v1825 = vld [vmem:[%s1823 + $0x8] sm:$0xff]
    %v1826 = vld [vmem:[%s1823 + $0x10] sm:$0xff]
    %v1827 = vld [vmem:[%s1823 + $0x18] sm:$0xff]
    %v1828 = vld [vmem:[%s1823 + $0x20] sm:$0xff]
    %v1829 = vmul.f32 %v1824, %v94
    %v1830 = vmul.f32 %v1825, %v95
    %v1831 = vmul.f32 %v1826, %v96
    %v1832 = vmul.f32 %v1827, %v97
    %v1833 = vmul.f32 %v1828, %v98
    %v1834 = vadd.f32 %v1770, %v1829
    %v1835 = vadd.f32 %v1771, %v1830
    %v1836 = vadd.f32 %v1772, %v1831
    %v1837 = vadd.f32 %v1773, %v1832
    %v1838 = vadd.f32 %v1774, %v1833
    %s1839 = scalar_lea.vmem [#allocation7], 160
    %v1840 = vld [vmem:[%s1839] sm:$0xff]
    %v1841 = vld [vmem:[%s1839 + $0x8] sm:$0xff]
    %v1842 = vld [vmem:[%s1839 + $0x10] sm:$0xff]
    %v1843 = vld [vmem:[%s1839 + $0x18] sm:$0xff]
    %v1844 = vld [vmem:[%s1839 + $0x20] sm:$0xff]
    %v1845 = vmul.f32 %v1840, %v101
    %v1846 = vmul.f32 %v1841, %v102
    %v1847 = vmul.f32 %v1842, %v103
    %v1848 = vmul.f32 %v1843, %v104
    %v1849 = vmul.f32 %v1844, %v105
    %v1850 = vadd.f32 %v1786, %v1845
    %v1851 = vadd.f32 %v1787, %v1846
    %v1852 = vadd.f32 %v1788, %v1847
    %v1853 = vadd.f32 %v1789, %v1848
    %v1854 = vadd.f32 %v1790, %v1849
    %s1855 = scalar_lea.vmem [#allocation7], 400
    %v1856 = vld [vmem:[%s1855] sm:$0xff]
    %v1857 = vld [vmem:[%s1855 + $0x8] sm:$0xff]
    %v1858 = vld [vmem:[%s1855 + $0x10] sm:$0xff]
    %v1859 = vld [vmem:[%s1855 + $0x18] sm:$0xff]
    %v1860 = vld [vmem:[%s1855 + $0x20] sm:$0xff]
    %v1861 = vmul.f32 %v1856, %v101
    %v1862 = vmul.f32 %v1857, %v102
    %v1863 = vmul.f32 %v1858, %v103
    %v1864 = vmul.f32 %v1859, %v104
    %v1865 = vmul.f32 %v1860, %v105
    %v1866 = vadd.f32 %v1802, %v1861
    %v1867 = vadd.f32 %v1803, %v1862
    %v1868 = vadd.f32 %v1804, %v1863
    %v1869 = vadd.f32 %v1805, %v1864
    %v1870 = vadd.f32 %v1806, %v1865
    %s1871 = scalar_lea.vmem [#allocation7], 640
    %v1872 = vld [vmem:[%s1871] sm:$0xff]
    %v1873 = vld [vmem:[%s1871 + $0x8] sm:$0xff]
    %v1874 = vld [vmem:[%s1871 + $0x10] sm:$0xff]
    %v1875 = vld [vmem:[%s1871 + $0x18] sm:$0xff]
    %v1876 = vld [vmem:[%s1871 + $0x20] sm:$0xff]
    %v1877 = vmul.f32 %v1872, %v101
    %v1878 = vmul.f32 %v1873, %v102
    %v1879 = vmul.f32 %v1874, %v103
    %v1880 = vmul.f32 %v1875, %v104
    %v1881 = vmul.f32 %v1876, %v105
    %v1882 = vadd.f32 %v1818, %v1877
    %v1883 = vadd.f32 %v1819, %v1878
    %v1884 = vadd.f32 %v1820, %v1879
    %v1885 = vadd.f32 %v1821, %v1880
    %v1886 = vadd.f32 %v1822, %v1881
    %s1887 = scalar_lea.vmem [#allocation7], 880
    %v1888 = vld [vmem:[%s1887] sm:$0xff]
    %v1889 = vld [vmem:[%s1887 + $0x8] sm:$0xff]
    %v1890 = vld [vmem:[%s1887 + $0x10] sm:$0xff]
    %v1891 = vld [vmem:[%s1887 + $0x18] sm:$0xff]
    %v1892 = vld [vmem:[%s1887 + $0x20] sm:$0xff]
    %v1893 = vmul.f32 %v1888, %v101
    %v1894 = vmul.f32 %v1889, %v102
    %v1895 = vmul.f32 %v1890, %v103
    %v1896 = vmul.f32 %v1891, %v104
    %v1897 = vmul.f32 %v1892, %v105
    %v1898 = vadd.f32 %v1834, %v1893
    %v1899 = vadd.f32 %v1835, %v1894
    %v1900 = vadd.f32 %v1836, %v1895
    %v1901 = vadd.f32 %v1837, %v1896
    %v1902 = vadd.f32 %v1838, %v1897
    %s1903 = scalar_lea.vmem [#allocation7], 200
    %v1904 = vld [vmem:[%s1903] sm:$0xff]
    %v1905 = vld [vmem:[%s1903 + $0x8] sm:$0xff]
    %v1906 = vld [vmem:[%s1903 + $0x10] sm:$0xff]
    %v1907 = vld [vmem:[%s1903 + $0x18] sm:$0xff]
    %v1908 = vld [vmem:[%s1903 + $0x20] sm:$0xff]
    %v1909 = vmul.f32 %v1904, %v108
    %v1910 = vmul.f32 %v1905, %v109
    %v1911 = vmul.f32 %v1906, %v110
    %v1912 = vmul.f32 %v1907, %v111
    %v1913 = vmul.f32 %v1908, %v112
    %v1914 = vadd.f32 %v1850, %v1909
    %v1915 = vadd.f32 %v1851, %v1910
    %v1916 = vadd.f32 %v1852, %v1911
    %v1917 = vadd.f32 %v1853, %v1912
    %v1918 = vadd.f32 %v1854, %v1913
    %s1919 = scalar_lea.vmem [#allocation7], 440
    %v1920 = vld [vmem:[%s1919] sm:$0xff]
    %v1921 = vld [vmem:[%s1919 + $0x8] sm:$0xff]
    %v1922 = vld [vmem:[%s1919 + $0x10] sm:$0xff]
    %v1923 = vld [vmem:[%s1919 + $0x18] sm:$0xff]
    %v1924 = vld [vmem:[%s1919 + $0x20] sm:$0xff]
    %v1925 = vmul.f32 %v1920, %v108
    %v1926 = vmul.f32 %v1921, %v109
    %v1927 = vmul.f32 %v1922, %v110
    %v1928 = vmul.f32 %v1923, %v111
    %v1929 = vmul.f32 %v1924, %v112
    %v1930 = vadd.f32 %v1866, %v1925
    %v1931 = vadd.f32 %v1867, %v1926
    %v1932 = vadd.f32 %v1868, %v1927
    %v1933 = vadd.f32 %v1869, %v1928
    %v1934 = vadd.f32 %v1870, %v1929
    %s1935 = scalar_lea.vmem [#allocation7], 680
    %v1936 = vld [vmem:[%s1935] sm:$0xff]
    %v1937 = vld [vmem:[%s1935 + $0x8] sm:$0xff]
    %v1938 = vld [vmem:[%s1935 + $0x10] sm:$0xff]
    %v1939 = vld [vmem:[%s1935 + $0x18] sm:$0xff]
    %v1940 = vld [vmem:[%s1935 + $0x20] sm:$0xff]
    %v1941 = vmul.f32 %v1936, %v108
    %v1942 = vmul.f32 %v1937, %v109
    %v1943 = vmul.f32 %v1938, %v110
    %v1944 = vmul.f32 %v1939, %v111
    %v1945 = vmul.f32 %v1940, %v112
    %v1946 = vadd.f32 %v1882, %v1941
    %v1947 = vadd.f32 %v1883, %v1942
    %v1948 = vadd.f32 %v1884, %v1943
    %v1949 = vadd.f32 %v1885, %v1944
    %v1950 = vadd.f32 %v1886, %v1945
    %s1951 = scalar_lea.vmem [#allocation7], 920
    %v1952 = vld [vmem:[%s1951] sm:$0xff]
    %v1953 = vld [vmem:[%s1951 + $0x8] sm:$0xff]
    %v1954 = vld [vmem:[%s1951 + $0x10] sm:$0xff]
    %v1955 = vld [vmem:[%s1951 + $0x18] sm:$0xff]
    %v1956 = vld [vmem:[%s1951 + $0x20] sm:$0xff]
    %v1957 = vmul.f32 %v1952, %v108
    %v1958 = vmul.f32 %v1953, %v109
    %v1959 = vmul.f32 %v1954, %v110
    %v1960 = vmul.f32 %v1955, %v111
    %v1961 = vmul.f32 %v1956, %v112
    %v1962 = vadd.f32 %v1898, %v1957
    %v1963 = vadd.f32 %v1899, %v1958
    %v1964 = vadd.f32 %v1900, %v1959
    %v1965 = vadd.f32 %v1901, %v1960
    %v1966 = vadd.f32 %v1902, %v1961
    %v1967 = vmin.f32 %v1914, %v1930
    %v1968 = vmin.f32 %v1915, %v1931
    %v1969 = vmin.f32 %v1916, %v1932
    %v1970 = vmin.f32 %v1917, %v1933
    %v1971 = vmin.f32 %v1918, %v1934
    %v1972 = vmin.f32 %v1967, %v1946
    %v1973 = vmin.f32 %v1968, %v1947
    %v1974 = vmin.f32 %v1969, %v1948
    %v1975 = vmin.f32 %v1970, %v1949
    %v1976 = vmin.f32 %v1971, %v1950
    %v1977 = vmin.f32 %v1972, %v1962
    %v1978 = vmin.f32 %v1973, %v1963
    %v1979 = vmin.f32 %v1974, %v1964
    %v1980 = vmin.f32 %v1975, %v1965
    %v1981 = vmin.f32 %v1976, %v1966
    %1982 = vst [vmem:[#allocation10] sm:$0xff] %v1977
    %1983 = vst [vmem:[#allocation10 + $0x8] sm:$0xff] %v1978
    %1984 = vst [vmem:[#allocation10 + $0x10] sm:$0xff] %v1979
    %1985 = vst [vmem:[#allocation10 + $0x18] sm:$0xff] %v1980
    %1986 = vst [vmem:[#allocation10 + $0x20] sm:$0xff] %v1981
    // Predicated region
    $region34: #{tpu_custom_call.1} parent=1 // pred_check
      _
    $region35: #{tpu_custom_call.1} parent=1 // pred_check_branch
      %1988 = sbr.rel (0) target = $region37
    $region36: #{tpu_custom_call.1} parent=1 // pred_region
      %s1990 = ssub.s32 640, 640
      %1991 = vsyncadd [#allocation4], %s1990
      %s1992 = sshll.u32 [#allocation10], 4
      %s1993 = int_to_ptr.vmem [resolvable:$true] %s1992
      %1998 = dma.vmem_to_hbm [thread:$0]  %s1993, 640, %s4, [#allocation4], 128, 128, 8
    $region37: #{tpu_custom_call.1} parent=1 // pred_fallthru
      _
    // Predicated region
    $region38: #{tpu_custom_call.1} parent=1 // pred_check
      _
    $region39: #{tpu_custom_call.1} parent=1 // pred_check_branch
      %2000 = sbr.rel (0) target = $region41
    $region40: #{tpu_custom_call.1} parent=1 // pred_region
      %2001 = dma.done [#allocation4], 640
    $region41: #{tpu_custom_call.1} parent=1 // pred_fallthru
      _
    %2002 = vsyncpa [#allocation3], 1
    %2003 = vsyncpa [#allocation6], 1
    %2004 = vsyncpa [#allocation9], 1
    %2005 = vsyncpa [#allocation4], 1

</llo_original>
